<compile_context>
chip_gen: v5e
topology: v5e:2x2
jax: 0.10.0
libtpu: 0.0.40
codegen_flags: <defaults>
</compile_context>

<pallas_src>
import functools

import jax
import jax.numpy as jnp
from jax.experimental import pallas as pl
from jax.experimental.pallas import tpu as pltpu


def _round_up(x, m):
    return (x + m - 1) // m * m


# -------------- fused Conv2d(4, 1, 2) + ReLU + MaxPool2d(2) kernel -----------

def _conv_relu_pool_kernel(x_ref, w_ref, b_ref, o_ref, *, kh, kw, hp, wp, cin, cout):
    """Grid step (n, pr): compute pooled output row `pr` of image `n`.

    x_ref: [Hpad, Wpad, Cin]   whole padded image (resident across pr steps)
    w_ref: [kh*kw, Cin, Cout]  tap-major conv weights
    b_ref: [1, Cout]
    o_ref: [Wp, Cout]          one pooled output row
    """
    pr = pl.program_id(1)
    wcols = 2 * wp                                   # conv columns feeding this pooled row
    # The two conv rows of pooled row pr read padded input rows 2*pr .. 2*pr+kh.
    win = x_ref[pl.ds(2 * pr, kh + 1)]               # [kh+1, Wpad, Cin]
    bias = b_ref[...]                                # [1, Cout]

    conv_rows = []
    for r_off in range(2):                           # the 2 conv rows in the 2x2 pool window
        acc = jnp.zeros((wcols, cout), jnp.float32)
        for di in range(kh):
            xrow = win[r_off + di]                   # [Wpad, Cin]
            for dj in range(kw):
                patch = xrow[dj:dj + wcols, :]       # [2*Wp, Cin] static shifted slice
                wt = w_ref[di * kw + dj]             # [Cin, Cout]
                if cin == 1:
                    acc = acc + patch * wt           # VPU outer product (skip K=1 MXU matmul)
                else:
                    acc = acc + jnp.dot(patch, wt, preferred_element_type=jnp.float32)
        conv_rows.append(jnp.maximum(acc + bias, 0.0))    # conv + bias + ReLU

    m = jnp.maximum(conv_rows[0], conv_rows[1])      # max over the 2 rows   [2*Wp, Cout]
    # Max over adjacent column pairs -> pooled row [Wp, Cout].
    pooled = jnp.concatenate(
        [jnp.max(m[2 * pc:2 * pc + 2, :], axis=0, keepdims=True) for pc in range(wp)],
        axis=0)
    o_ref[...] = pooled.astype(o_ref.dtype)


def conv_relu_pool(x, w_taps, b, *, pad=2):
    """x: [N,H,W,Cin] NHWC, w_taps: [kh*kw,Cin,Cout], b: [1,Cout] -> [N,Hp,Wp,Cout]."""
    n, h, w, cin = x.shape
    kk, _, cout = w_taps.shape
    kh = kw = int(round(kk ** 0.5))
    hpad, wpad = h + 2 * pad, w + 2 * pad
    ho, wo = hpad - kh + 1, wpad - kw + 1            # conv output size (stride 1)
    hp, wp = ho // 2, wo // 2                        # floor-mode 2x2 max pool

    xp = jnp.pad(x, ((0, 0), (pad, pad), (pad, pad), (0, 0)))

    kernel = functools.partial(_conv_relu_pool_kernel,
                               kh=kh, kw=kw, hp=hp, wp=wp, cin=cin, cout=cout)
    flops = 2 * n * hp * 2 * (2 * wp) * kh * kw * cin * cout
    bytes_accessed = 4 * (xp.size + w_taps.size + b.size + n * hp * wp * cout)

    return pl.pallas_call(
        kernel,
        out_shape=jax.ShapeDtypeStruct((n, hp, wp, cout), jnp.float32),
        grid=(n, hp),
        in_specs=[
            pl.BlockSpec((None, hpad, wpad, cin), lambda i, j: (i, 0, 0, 0)),
            pl.BlockSpec((kh * kw, cin, cout), lambda i, j: (0, 0, 0)),
            pl.BlockSpec((1, cout), lambda i, j: (0, 0)),
        ],
        out_specs=pl.BlockSpec((None, None, wp, cout), lambda i, j: (i, j, 0, 0)),
        compiler_params=pltpu.CompilerParams(
            dimension_semantics=("parallel", "arbitrary"),
            vmem_limit_bytes=32 * 1024 * 1024),
        cost_estimate=pl.CostEstimate(flops=int(flops), transcendentals=0,
                                      bytes_accessed=int(bytes_accessed)),
    )(xp, w_taps, b)


# ----------------- fused Linear x4 + biases + Softsign kernel ----------------

def _mlp_softsign_kernel(x_ref, w1_ref, b1_ref, w2_ref, b2_ref, w3_ref, b3_ref,
                         w4_ref, b4_ref, o_ref):
    h = jnp.dot(x_ref[...], w1_ref[...], preferred_element_type=jnp.float32) + b1_ref[...]
    # TODO(synk): Dropout(p=0.5) layers are identity at inference (eval mode).
    h = jnp.dot(h, w2_ref[...], preferred_element_type=jnp.float32) + b2_ref[...]
    h = jnp.dot(h, w3_ref[...], preferred_element_type=jnp.float32) + b3_ref[...]
    y = jnp.dot(h, w4_ref[...], preferred_element_type=jnp.float32) + b4_ref[...]
    o_ref[...] = (y / (1.0 + jnp.abs(y))).astype(o_ref.dtype)     # Softsign


def mlp_softsign(flat, w1, b1, w2, b2, w3, b3, w4, b4):
    n, k = flat.shape
    d1, d2, d3, d4 = w1.shape[1], w2.shape[1], w3.shape[1], w4.shape[1]
    tm = min(256, _round_up(n, 8))                   # row tile; keeps VMEM use v7x-safe
    n_pad = _round_up(n, tm)
    if n_pad != n:                                   # avoid ragged edge blocks entirely
        flat = jnp.pad(flat, ((0, n_pad - n), (0, 0)))

    flops = 2 * n_pad * (k * d1 + d1 * d2 + d2 * d3 + d3 * d4)
    bytes_accessed = 4 * (n_pad * k + w1.size + w2.size + w3.size + w4.size
                          + b1.size + b2.size + b3.size + b4.size + n_pad * d4)

    def full(a):
        return pl.BlockSpec(a.shape, lambda i: (0, 0))

    out = pl.pallas_call(
        _mlp_softsign_kernel,
        out_shape=jax.ShapeDtypeStruct((n_pad, d4), jnp.float32),
        grid=(n_pad // tm,),
        in_specs=[pl.BlockSpec((tm, k), lambda i: (i, 0)),
                  full(w1), full(b1), full(w2), full(b2),
                  full(w3), full(b3), full(w4), full(b4)],
        out_specs=pl.BlockSpec((tm, d4), lambda i: (i, 0)),
        compiler_params=pltpu.CompilerParams(
            dimension_semantics=("parallel",),
            vmem_limit_bytes=32 * 1024 * 1024),
        cost_estimate=pl.CostEstimate(flops=int(flops), transcendentals=0,
                                      bytes_accessed=int(bytes_accessed)),
    )(flat, w1, b1, w2, b2, w3, b3, w4, b4)
    return out[:n]


# ----------------------- parameter layout conversion -------------------------

def prepare_params(torch_params):
    """Convert torch-layout params to kernel layout.  Run ONCE, outside jit."""
    def conv_w(w_oihw):                               # OIHW -> [kh*kw, Cin, Cout] tap-major
        o, i, kh, kw = w_oihw.shape
        return jnp.transpose(w_oihw, (2, 3, 1, 0)).reshape(kh * kw, i, o)

    c3 = torch_params["w3"].shape[0]                  # 64
    s = int(round((torch_params["fw1"].shape[1] // c3) ** 0.5))   # 4
    # fc1 consumes the NHWC-flattened conv3 output: permute its input dim from
    # torch's NCHW flatten order (c*s*s + h*s + w) to NHWC order ((h*s + w)*c3 + c),
    # so the activation flatten in the forward pass is a free reshape.
    fw1 = jnp.transpose(torch_params["fw1"].reshape(-1, c3, s, s), (2, 3, 1, 0))
    fw1 = fw1.reshape(s * s * c3, -1)

    kp = {
        "w1": conv_w(torch_params["w1"]), "b1": torch_params["b1"].reshape(1, -1),
        "w2": conv_w(torch_params["w2"]), "b2": torch_params["b2"].reshape(1, -1),
        "w3": conv_w(torch_params["w3"]), "b3": torch_params["b3"].reshape(1, -1),
        "fw1": fw1,                       "fb1": torch_params["fb1"].reshape(1, -1),
        "fw2": torch_params["fw2"].T,     "fb2": torch_params["fb2"].reshape(1, -1),
        "fw3": torch_params["fw3"].T,     "fb3": torch_params["fb3"].reshape(1, -1),
        "fw4": torch_params["fw4"].T,     "fb4": torch_params["fb4"].reshape(1, -1),
    }
    return jax.tree.map(lambda a: jnp.asarray(a, jnp.float32), kp)


# --------------------------------- forward -----------------------------------

def cnn_forward(x_nchw, kp):
    x = jnp.transpose(x_nchw, (0, 2, 3, 1)).astype(jnp.float32)   # NCHW -> NHWC
    x = conv_relu_pool(x, kp["w1"], kp["b1"])        # [N, 14, 14, 16]
    x = conv_relu_pool(x, kp["w2"], kp["b2"])        # [N,  7,  7, 32]
    x = conv_relu_pool(x, kp["w3"], kp["b3"])        # [N,  4,  4, 64]
    flat = x.reshape(x.shape[0], -1)                 # NHWC flatten (fc1 pre-permuted)
    return mlp_softsign(flat, kp["fw1"], kp["fb1"], kp["fw2"], kp["fb2"],
                        kp["fw3"], kp["fb3"], kp["fw4"], kp["fb4"])   # [N, 1]


# ----------------------------------- main -------------------------------------

if __name__ == "__main__":
    key = jax.random.PRNGKey(0)
    keys = jax.random.split(key, 16)

    def nrm(k, shape, scale=0.05):
        return scale * jax.random.normal(k, shape, jnp.float32)

    # Deterministic synthetic parameters (shapes from CNN.__init__, torch layout).
    torch_params = dict(
        w1=nrm(keys[0], (16, 1, 4, 4)),   b1=nrm(keys[1], (16,)),
        w2=nrm(keys[2], (32, 16, 4, 4)),  b2=nrm(keys[3], (32,)),
        w3=nrm(keys[4], (64, 32, 4, 4)),  b3=nrm(keys[5], (64,)),
        fw1=nrm(keys[6], (256, 1024)),    fb1=nrm(keys[7], (256,)),
        fw2=nrm(keys[8], (128, 256)),     fb2=nrm(keys[9], (128,)),
        fw3=nrm(keys[10], (16, 128)),     fb3=nrm(keys[11], (16,)),
        fw4=nrm(keys[12], (1, 16)),       fb4=nrm(keys[13], (1,)),
    )
    kernel_params = prepare_params(torch_params)     # one-time layout conversion

    x = jax.random.normal(keys[14], (2, 1, 28, 28), jnp.float32)

    out = jax.jit(cnn_forward)(x, kernel_params)
    out = jax.block_until_ready(out)
    assert out.shape == (2, 1) and out.dtype == jnp.float32
    assert bool(jnp.all(jnp.isfinite(out)))
    # Softsign output must lie in (-1, 1).
    assert bool(jnp.all(jnp.abs(out) < 1.0))
    print("KERNEL_OK")
</pallas_src>

<mosaic_0001>
module attributes {stable_mosaic.version = 11 : i64} {
  func.func @_conv_relu_pool_kernel(%arg0: i32, %arg1: i32, %arg2: memref<1x32x32x1xf32, #tpu.memory_space<vmem>>, %arg3: memref<16x1x16xf32, #tpu.memory_space<vmem>>, %arg4: memref<1x16xf32, #tpu.memory_space<vmem>>, %arg5: memref<1x1x14x16xf32, #tpu.memory_space<vmem>>) attributes {dimension_semantics = [#tpu.dimension_semantics<parallel>, #tpu.dimension_semantics<arbitrary>], iteration_bounds = array<i64: 2, 14>, scalar_prefetch = 0 : i64, scratch_operands = 0 : i64, tpu.core_type = #tpu.core_type<tc>, window_params = [{transform_indices = @transform_0, window_bounds = array<i64: 1, 32, 32, 1>}, {pipeline_mode = #tpu.pipeline_mode<synchronous>, transform_indices = @transform_1, window_bounds = array<i64: 16, 1, 16>}, {pipeline_mode = #tpu.pipeline_mode<synchronous>, transform_indices = @transform_2, window_bounds = array<i64: 1, 16>}, {transform_indices = @transform_3, window_bounds = array<i64: 1, 1, 14, 16>}]} {
    %c2_i32 = arith.constant 2 : i32
    %0 = arith.muli %c2_i32, %arg1 : i32
    %c0 = arith.constant 0 : index
    %1 = arith.index_cast %0 : i32 to index
    %c0_0 = arith.constant 0 : index
    %c0_1 = arith.constant 0 : index
    %2 = vector.load %arg2[%c0, %1, %c0_0, %c0_1] : memref<1x32x32x1xf32, #tpu.memory_space<vmem>>, vector<1x5x32x1xf32>
    %3 = vector.shape_cast %2 : vector<1x5x32x1xf32> to vector<5x32x1xf32>
    %c0_2 = arith.constant 0 : index
    %c0_3 = arith.constant 0 : index
    %4 = vector.load %arg4[%c0_2, %c0_3] : memref<1x16xf32, #tpu.memory_space<vmem>>, vector<1x16xf32>
    %cst = arith.constant 0.000000e+00 : f32
    %5 = vector.broadcast %cst : f32 to vector<28x16xf32>
    %6 = vector.extract_strided_slice %3 {offsets = [0, 0, 0], sizes = [1, 32, 1], strides = [1, 1, 1]} : vector<5x32x1xf32> to vector<1x32x1xf32>
    %7 = vector.shape_cast %6 : vector<1x32x1xf32> to vector<32x1xf32>
    %8 = vector.extract_strided_slice %7 {offsets = [0, 0], sizes = [28, 1], strides = [1, 1]} : vector<32x1xf32> to vector<28x1xf32>
    %c0_4 = arith.constant 0 : index
    %c0_5 = arith.constant 0 : index
    %c0_6 = arith.constant 0 : index
    %9 = vector.load %arg3[%c0_4, %c0_5, %c0_6] : memref<16x1x16xf32, #tpu.memory_space<vmem>>, vector<1x1x16xf32>
    %10 = vector.shape_cast %9 : vector<1x1x16xf32> to vector<1x16xf32>
    %11 = vector.broadcast %8 : vector<28x1xf32> to vector<28x16xf32>
    %12 = vector.broadcast %10 : vector<1x16xf32> to vector<28x16xf32>
    %13 = arith.mulf %11, %12 : vector<28x16xf32>
    %14 = arith.addf %5, %13 : vector<28x16xf32>
    %15 = vector.extract_strided_slice %7 {offsets = [1, 0], sizes = [28, 1], strides = [1, 1]} : vector<32x1xf32> to vector<28x1xf32>
    %c1 = arith.constant 1 : index
    %c0_7 = arith.constant 0 : index
    %c0_8 = arith.constant 0 : index
    %16 = vector.load %arg3[%c1, %c0_7, %c0_8] : memref<16x1x16xf32, #tpu.memory_space<vmem>>, vector<1x1x16xf32>
    %17 = vector.shape_cast %16 : vector<1x1x16xf32> to vector<1x16xf32>
    %18 = vector.broadcast %15 : vector<28x1xf32> to vector<28x16xf32>
    %19 = vector.broadcast %17 : vector<1x16xf32> to vector<28x16xf32>
    %20 = arith.mulf %18, %19 : vector<28x16xf32>
    %21 = arith.addf %14, %20 : vector<28x16xf32>
    %22 = vector.extract_strided_slice %7 {offsets = [2, 0], sizes = [28, 1], strides = [1, 1]} : vector<32x1xf32> to vector<28x1xf32>
    %c2 = arith.constant 2 : index
    %c0_9 = arith.constant 0 : index
    %c0_10 = arith.constant 0 : index
    %23 = vector.load %arg3[%c2, %c0_9, %c0_10] : memref<16x1x16xf32, #tpu.memory_space<vmem>>, vector<1x1x16xf32>
    %24 = vector.shape_cast %23 : vector<1x1x16xf32> to vector<1x16xf32>
    %25 = vector.broadcast %22 : vector<28x1xf32> to vector<28x16xf32>
    %26 = vector.broadcast %24 : vector<1x16xf32> to vector<28x16xf32>
    %27 = arith.mulf %25, %26 : vector<28x16xf32>
    %28 = arith.addf %21, %27 : vector<28x16xf32>
    %29 = vector.extract_strided_slice %7 {offsets = [3, 0], sizes = [28, 1], strides = [1, 1]} : vector<32x1xf32> to vector<28x1xf32>
    %c3 = arith.constant 3 : index
    %c0_11 = arith.constant 0 : index
    %c0_12 = arith.constant 0 : index
    %30 = vector.load %arg3[%c3, %c0_11, %c0_12] : memref<16x1x16xf32, #tpu.memory_space<vmem>>, vector<1x1x16xf32>
    %31 = vector.shape_cast %30 : vector<1x1x16xf32> to vector<1x16xf32>
    %32 = vector.broadcast %29 : vector<28x1xf32> to vector<28x16xf32>
    %33 = vector.broadcast %31 : vector<1x16xf32> to vector<28x16xf32>
    %34 = arith.mulf %32, %33 : vector<28x16xf32>
    %35 = arith.addf %28, %34 : vector<28x16xf32>
    %36 = vector.extract_strided_slice %3 {offsets = [1, 0, 0], sizes = [1, 32, 1], strides = [1, 1, 1]} : vector<5x32x1xf32> to vector<1x32x1xf32>
    %37 = vector.shape_cast %36 : vector<1x32x1xf32> to vector<32x1xf32>
    %38 = vector.extract_strided_slice %37 {offsets = [0, 0], sizes = [28, 1], strides = [1, 1]} : vector<32x1xf32> to vector<28x1xf32>
    %c4 = arith.constant 4 : index
    %c0_13 = arith.constant 0 : index
    %c0_14 = arith.constant 0 : index
    %39 = vector.load %arg3[%c4, %c0_13, %c0_14] : memref<16x1x16xf32, #tpu.memory_space<vmem>>, vector<1x1x16xf32>
    %40 = vector.shape_cast %39 : vector<1x1x16xf32> to vector<1x16xf32>
    %41 = vector.broadcast %38 : vector<28x1xf32> to vector<28x16xf32>
    %42 = vector.broadcast %40 : vector<1x16xf32> to vector<28x16xf32>
    %43 = arith.mulf %41, %42 : vector<28x16xf32>
    %44 = arith.addf %35, %43 : vector<28x16xf32>
    %45 = vector.extract_strided_slice %37 {offsets = [1, 0], sizes = [28, 1], strides = [1, 1]} : vector<32x1xf32> to vector<28x1xf32>
    %c5 = arith.constant 5 : index
    %c0_15 = arith.constant 0 : index
    %c0_16 = arith.constant 0 : index
    %46 = vector.load %arg3[%c5, %c0_15, %c0_16] : memref<16x1x16xf32, #tpu.memory_space<vmem>>, vector<1x1x16xf32>
    %47 = vector.shape_cast %46 : vector<1x1x16xf32> to vector<1x16xf32>
    %48 = vector.broadcast %45 : vector<28x1xf32> to vector<28x16xf32>
    %49 = vector.broadcast %47 : vector<1x16xf32> to vector<28x16xf32>
    %50 = arith.mulf %48, %49 : vector<28x16xf32>
    %51 = arith.addf %44, %50 : vector<28x16xf32>
    %52 = vector.extract_strided_slice %37 {offsets = [2, 0], sizes = [28, 1], strides = [1, 1]} : vector<32x1xf32> to vector<28x1xf32>
    %c6 = arith.constant 6 : index
    %c0_17 = arith.constant 0 : index
    %c0_18 = arith.constant 0 : index
    %53 = vector.load %arg3[%c6, %c0_17, %c0_18] : memref<16x1x16xf32, #tpu.memory_space<vmem>>, vector<1x1x16xf32>
    %54 = vector.shape_cast %53 : vector<1x1x16xf32> to vector<1x16xf32>
    %55 = vector.broadcast %52 : vector<28x1xf32> to vector<28x16xf32>
    %56 = vector.broadcast %54 : vector<1x16xf32> to vector<28x16xf32>
    %57 = arith.mulf %55, %56 : vector<28x16xf32>
    %58 = arith.addf %51, %57 : vector<28x16xf32>
    %59 = vector.extract_strided_slice %37 {offsets = [3, 0], sizes = [28, 1], strides = [1, 1]} : vector<32x1xf32> to vector<28x1xf32>
    %c7 = arith.constant 7 : index
    %c0_19 = arith.constant 0 : index
    %c0_20 = arith.constant 0 : index
    %60 = vector.load %arg3[%c7, %c0_19, %c0_20] : memref<16x1x16xf32, #tpu.memory_space<vmem>>, vector<1x1x16xf32>
    %61 = vector.shape_cast %60 : vector<1x1x16xf32> to vector<1x16xf32>
    %62 = vector.broadcast %59 : vector<28x1xf32> to vector<28x16xf32>
    %63 = vector.broadcast %61 : vector<1x16xf32> to vector<28x16xf32>
    %64 = arith.mulf %62, %63 : vector<28x16xf32>
    %65 = arith.addf %58, %64 : vector<28x16xf32>
    %66 = vector.extract_strided_slice %3 {offsets = [2, 0, 0], sizes = [1, 32, 1], strides = [1, 1, 1]} : vector<5x32x1xf32> to vector<1x32x1xf32>
    %67 = vector.shape_cast %66 : vector<1x32x1xf32> to vector<32x1xf32>
    %68 = vector.extract_strided_slice %67 {offsets = [0, 0], sizes = [28, 1], strides = [1, 1]} : vector<32x1xf32> to vector<28x1xf32>
    %c8 = arith.constant 8 : index
    %c0_21 = arith.constant 0 : index
    %c0_22 = arith.constant 0 : index
    %69 = vector.load %arg3[%c8, %c0_21, %c0_22] : memref<16x1x16xf32, #tpu.memory_space<vmem>>, vector<1x1x16xf32>
    %70 = vector.shape_cast %69 : vector<1x1x16xf32> to vector<1x16xf32>
    %71 = vector.broadcast %68 : vector<28x1xf32> to vector<28x16xf32>
    %72 = vector.broadcast %70 : vector<1x16xf32> to vector<28x16xf32>
    %73 = arith.mulf %71, %72 : vector<28x16xf32>
    %74 = arith.addf %65, %73 : vector<28x16xf32>
    %75 = vector.extract_strided_slice %67 {offsets = [1, 0], sizes = [28, 1], strides = [1, 1]} : vector<32x1xf32> to vector<28x1xf32>
    %c9 = arith.constant 9 : index
    %c0_23 = arith.constant 0 : index
    %c0_24 = arith.constant 0 : index
    %76 = vector.load %arg3[%c9, %c0_23, %c0_24] : memref<16x1x16xf32, #tpu.memory_space<vmem>>, vector<1x1x16xf32>
    %77 = vector.shape_cast %76 : vector<1x1x16xf32> to vector<1x16xf32>
    %78 = vector.broadcast %75 : vector<28x1xf32> to vector<28x16xf32>
    %79 = vector.broadcast %77 : vector<1x16xf32> to vector<28x16xf32>
    %80 = arith.mulf %78, %79 : vector<28x16xf32>
    %81 = arith.addf %74, %80 : vector<28x16xf32>
    %82 = vector.extract_strided_slice %67 {offsets = [2, 0], sizes = [28, 1], strides = [1, 1]} : vector<32x1xf32> to vector<28x1xf32>
    %c10 = arith.constant 10 : index
    %c0_25 = arith.constant 0 : index
    %c0_26 = arith.constant 0 : index
    %83 = vector.load %arg3[%c10, %c0_25, %c0_26] : memref<16x1x16xf32, #tpu.memory_space<vmem>>, vector<1x1x16xf32>
    %84 = vector.shape_cast %83 : vector<1x1x16xf32> to vector<1x16xf32>
    %85 = vector.broadcast %82 : vector<28x1xf32> to vector<28x16xf32>
    %86 = vector.broadcast %84 : vector<1x16xf32> to vector<28x16xf32>
    %87 = arith.mulf %85, %86 : vector<28x16xf32>
    %88 = arith.addf %81, %87 : vector<28x16xf32>
    %89 = vector.extract_strided_slice %67 {offsets = [3, 0], sizes = [28, 1], strides = [1, 1]} : vector<32x1xf32> to vector<28x1xf32>
    %c11 = arith.constant 11 : index
    %c0_27 = arith.constant 0 : index
    %c0_28 = arith.constant 0 : index
    %90 = vector.load %arg3[%c11, %c0_27, %c0_28] : memref<16x1x16xf32, #tpu.memory_space<vmem>>, vector<1x1x16xf32>
    %91 = vector.shape_cast %90 : vector<1x1x16xf32> to vector<1x16xf32>
    %92 = vector.broadcast %89 : vector<28x1xf32> to vector<28x16xf32>
    %93 = vector.broadcast %91 : vector<1x16xf32> to vector<28x16xf32>
    %94 = arith.mulf %92, %93 : vector<28x16xf32>
    %95 = arith.addf %88, %94 : vector<28x16xf32>
    %96 = vector.extract_strided_slice %3 {offsets = [3, 0, 0], sizes = [1, 32, 1], strides = [1, 1, 1]} : vector<5x32x1xf32> to vector<1x32x1xf32>
    %97 = vector.shape_cast %96 : vector<1x32x1xf32> to vector<32x1xf32>
    %98 = vector.extract_strided_slice %97 {offsets = [0, 0], sizes = [28, 1], strides = [1, 1]} : vector<32x1xf32> to vector<28x1xf32>
    %c12 = arith.constant 12 : index
    %c0_29 = arith.constant 0 : index
    %c0_30 = arith.constant 0 : index
    %99 = vector.load %arg3[%c12, %c0_29, %c0_30] : memref<16x1x16xf32, #tpu.memory_space<vmem>>, vector<1x1x16xf32>
    %100 = vector.shape_cast %99 : vector<1x1x16xf32> to vector<1x16xf32>
    %101 = vector.broadcast %98 : vector<28x1xf32> to vector<28x16xf32>
    %102 = vector.broadcast %100 : vector<1x16xf32> to vector<28x16xf32>
    %103 = arith.mulf %101, %102 : vector<28x16xf32>
    %104 = arith.addf %95, %103 : vector<28x16xf32>
    %105 = vector.extract_strided_slice %97 {offsets = [1, 0], sizes = [28, 1], strides = [1, 1]} : vector<32x1xf32> to vector<28x1xf32>
    %c13 = arith.constant 13 : index
    %c0_31 = arith.constant 0 : index
    %c0_32 = arith.constant 0 : index
    %106 = vector.load %arg3[%c13, %c0_31, %c0_32] : memref<16x1x16xf32, #tpu.memory_space<vmem>>, vector<1x1x16xf32>
    %107 = vector.shape_cast %106 : vector<1x1x16xf32> to vector<1x16xf32>
    %108 = vector.broadcast %105 : vector<28x1xf32> to vector<28x16xf32>
    %109 = vector.broadcast %107 : vector<1x16xf32> to vector<28x16xf32>
    %110 = arith.mulf %108, %109 : vector<28x16xf32>
    %111 = arith.addf %104, %110 : vector<28x16xf32>
    %112 = vector.extract_strided_slice %97 {offsets = [2, 0], sizes = [28, 1], strides = [1, 1]} : vector<32x1xf32> to vector<28x1xf32>
    %c14 = arith.constant 14 : index
    %c0_33 = arith.constant 0 : index
    %c0_34 = arith.constant 0 : index
    %113 = vector.load %arg3[%c14, %c0_33, %c0_34] : memref<16x1x16xf32, #tpu.memory_space<vmem>>, vector<1x1x16xf32>
    %114 = vector.shape_cast %113 : vector<1x1x16xf32> to vector<1x16xf32>
    %115 = vector.broadcast %112 : vector<28x1xf32> to vector<28x16xf32>
    %116 = vector.broadcast %114 : vector<1x16xf32> to vector<28x16xf32>
    %117 = arith.mulf %115, %116 : vector<28x16xf32>
    %118 = arith.addf %111, %117 : vector<28x16xf32>
    %119 = vector.extract_strided_slice %97 {offsets = [3, 0], sizes = [28, 1], strides = [1, 1]} : vector<32x1xf32> to vector<28x1xf32>
    %c15 = arith.constant 15 : index
    %c0_35 = arith.constant 0 : index
    %c0_36 = arith.constant 0 : index
    %120 = vector.load %arg3[%c15, %c0_35, %c0_36] : memref<16x1x16xf32, #tpu.memory_space<vmem>>, vector<1x1x16xf32>
    %121 = vector.shape_cast %120 : vector<1x1x16xf32> to vector<1x16xf32>
    %122 = vector.broadcast %119 : vector<28x1xf32> to vector<28x16xf32>
    %123 = vector.broadcast %121 : vector<1x16xf32> to vector<28x16xf32>
    %124 = arith.mulf %122, %123 : vector<28x16xf32>
    %125 = arith.addf %118, %124 : vector<28x16xf32>
    %126 = vector.broadcast %4 : vector<1x16xf32> to vector<28x16xf32>
    %127 = arith.addf %125, %126 : vector<28x16xf32>
    %cst_37 = arith.constant 0.000000e+00 : f32
    %128 = vector.broadcast %cst_37 : f32 to vector<28x16xf32>
    %129 = arith.maximumf %127, %128 : vector<28x16xf32>
    %cst_38 = arith.constant 0.000000e+00 : f32
    %130 = vector.broadcast %cst_38 : f32 to vector<28x16xf32>
    %131 = vector.extract_strided_slice %3 {offsets = [1, 0, 0], sizes = [1, 32, 1], strides = [1, 1, 1]} : vector<5x32x1xf32> to vector<1x32x1xf32>
    %132 = vector.shape_cast %131 : vector<1x32x1xf32> to vector<32x1xf32>
    %133 = vector.extract_strided_slice %132 {offsets = [0, 0], sizes = [28, 1], strides = [1, 1]} : vector<32x1xf32> to vector<28x1xf32>
    %c0_39 = arith.constant 0 : index
    %c0_40 = arith.constant 0 : index
    %c0_41 = arith.constant 0 : index
    %134 = vector.load %arg3[%c0_39, %c0_40, %c0_41] : memref<16x1x16xf32, #tpu.memory_space<vmem>>, vector<1x1x16xf32>
    %135 = vector.shape_cast %134 : vector<1x1x16xf32> to vector<1x16xf32>
    %136 = vector.broadcast %133 : vector<28x1xf32> to vector<28x16xf32>
    %137 = vector.broadcast %135 : vector<1x16xf32> to vector<28x16xf32>
    %138 = arith.mulf %136, %137 : vector<28x16xf32>
    %139 = arith.addf %130, %138 : vector<28x16xf32>
    %140 = vector.extract_strided_slice %132 {offsets = [1, 0], sizes = [28, 1], strides = [1, 1]} : vector<32x1xf32> to vector<28x1xf32>
    %c1_42 = arith.constant 1 : index
    %c0_43 = arith.constant 0 : index
    %c0_44 = arith.constant 0 : index
    %141 = vector.load %arg3[%c1_42, %c0_43, %c0_44] : memref<16x1x16xf32, #tpu.memory_space<vmem>>, vector<1x1x16xf32>
    %142 = vector.shape_cast %141 : vector<1x1x16xf32> to vector<1x16xf32>
    %143 = vector.broadcast %140 : vector<28x1xf32> to vector<28x16xf32>
    %144 = vector.broadcast %142 : vector<1x16xf32> to vector<28x16xf32>
    %145 = arith.mulf %143, %144 : vector<28x16xf32>
    %146 = arith.addf %139, %145 : vector<28x16xf32>
    %147 = vector.extract_strided_slice %132 {offsets = [2, 0], sizes = [28, 1], strides = [1, 1]} : vector<32x1xf32> to vector<28x1xf32>
    %c2_45 = arith.constant 2 : index
    %c0_46 = arith.constant 0 : index
    %c0_47 = arith.constant 0 : index
    %148 = vector.load %arg3[%c2_45, %c0_46, %c0_47] : memref<16x1x16xf32, #tpu.memory_space<vmem>>, vector<1x1x16xf32>
    %149 = vector.shape_cast %148 : vector<1x1x16xf32> to vector<1x16xf32>
    %150 = vector.broadcast %147 : vector<28x1xf32> to vector<28x16xf32>
    %151 = vector.broadcast %149 : vector<1x16xf32> to vector<28x16xf32>
    %152 = arith.mulf %150, %151 : vector<28x16xf32>
    %153 = arith.addf %146, %152 : vector<28x16xf32>
    %154 = vector.extract_strided_slice %132 {offsets = [3, 0], sizes = [28, 1], strides = [1, 1]} : vector<32x1xf32> to vector<28x1xf32>
    %c3_48 = arith.constant 3 : index
    %c0_49 = arith.constant 0 : index
    %c0_50 = arith.constant 0 : index
    %155 = vector.load %arg3[%c3_48, %c0_49, %c0_50] : memref<16x1x16xf32, #tpu.memory_space<vmem>>, vector<1x1x16xf32>
    %156 = vector.shape_cast %155 : vector<1x1x16xf32> to vector<1x16xf32>
    %157 = vector.broadcast %154 : vector<28x1xf32> to vector<28x16xf32>
    %158 = vector.broadcast %156 : vector<1x16xf32> to vector<28x16xf32>
    %159 = arith.mulf %157, %158 : vector<28x16xf32>
    %160 = arith.addf %153, %159 : vector<28x16xf32>
    %161 = vector.extract_strided_slice %3 {offsets = [2, 0, 0], sizes = [1, 32, 1], strides = [1, 1, 1]} : vector<5x32x1xf32> to vector<1x32x1xf32>
    %162 = vector.shape_cast %161 : vector<1x32x1xf32> to vector<32x1xf32>
    %163 = vector.extract_strided_slice %162 {offsets = [0, 0], sizes = [28, 1], strides = [1, 1]} : vector<32x1xf32> to vector<28x1xf32>
    %c4_51 = arith.constant 4 : index
    %c0_52 = arith.constant 0 : index
    %c0_53 = arith.constant 0 : index
    %164 = vector.load %arg3[%c4_51, %c0_52, %c0_53] : memref<16x1x16xf32, #tpu.memory_space<vmem>>, vector<1x1x16xf32>
    %165 = vector.shape_cast %164 : vector<1x1x16xf32> to vector<1x16xf32>
    %166 = vector.broadcast %163 : vector<28x1xf32> to vector<28x16xf32>
    %167 = vector.broadcast %165 : vector<1x16xf32> to vector<28x16xf32>
    %168 = arith.mulf %166, %167 : vector<28x16xf32>
    %169 = arith.addf %160, %168 : vector<28x16xf32>
    %170 = vector.extract_strided_slice %162 {offsets = [1, 0], sizes = [28, 1], strides = [1, 1]} : vector<32x1xf32> to vector<28x1xf32>
    %c5_54 = arith.constant 5 : index
    %c0_55 = arith.constant 0 : index
    %c0_56 = arith.constant 0 : index
    %171 = vector.load %arg3[%c5_54, %c0_55, %c0_56] : memref<16x1x16xf32, #tpu.memory_space<vmem>>, vector<1x1x16xf32>
    %172 = vector.shape_cast %171 : vector<1x1x16xf32> to vector<1x16xf32>
    %173 = vector.broadcast %170 : vector<28x1xf32> to vector<28x16xf32>
    %174 = vector.broadcast %172 : vector<1x16xf32> to vector<28x16xf32>
    %175 = arith.mulf %173, %174 : vector<28x16xf32>
    %176 = arith.addf %169, %175 : vector<28x16xf32>
    %177 = vector.extract_strided_slice %162 {offsets = [2, 0], sizes = [28, 1], strides = [1, 1]} : vector<32x1xf32> to vector<28x1xf32>
    %c6_57 = arith.constant 6 : index
    %c0_58 = arith.constant 0 : index
    %c0_59 = arith.constant 0 : index
    %178 = vector.load %arg3[%c6_57, %c0_58, %c0_59] : memref<16x1x16xf32, #tpu.memory_space<vmem>>, vector<1x1x16xf32>
    %179 = vector.shape_cast %178 : vector<1x1x16xf32> to vector<1x16xf32>
    %180 = vector.broadcast %177 : vector<28x1xf32> to vector<28x16xf32>
    %181 = vector.broadcast %179 : vector<1x16xf32> to vector<28x16xf32>
    %182 = arith.mulf %180, %181 : vector<28x16xf32>
    %183 = arith.addf %176, %182 : vector<28x16xf32>
    %184 = vector.extract_strided_slice %162 {offsets = [3, 0], sizes = [28, 1], strides = [1, 1]} : vector<32x1xf32> to vector<28x1xf32>
    %c7_60 = arith.constant 7 : index
    %c0_61 = arith.constant 0 : index
    %c0_62 = arith.constant 0 : index
    %185 = vector.load %arg3[%c7_60, %c0_61, %c0_62] : memref<16x1x16xf32, #tpu.memory_space<vmem>>, vector<1x1x16xf32>
    %186 = vector.shape_cast %185 : vector<1x1x16xf32> to vector<1x16xf32>
    %187 = vector.broadcast %184 : vector<28x1xf32> to vector<28x16xf32>
    %188 = vector.broadcast %186 : vector<1x16xf32> to vector<28x16xf32>
    %189 = arith.mulf %187, %188 : vector<28x16xf32>
    %190 = arith.addf %183, %189 : vector<28x16xf32>
    %191 = vector.extract_strided_slice %3 {offsets = [3, 0, 0], sizes = [1, 32, 1], strides = [1, 1, 1]} : vector<5x32x1xf32> to vector<1x32x1xf32>
    %192 = vector.shape_cast %191 : vector<1x32x1xf32> to vector<32x1xf32>
    %193 = vector.extract_strided_slice %192 {offsets = [0, 0], sizes = [28, 1], strides = [1, 1]} : vector<32x1xf32> to vector<28x1xf32>
    %c8_63 = arith.constant 8 : index
    %c0_64 = arith.constant 0 : index
    %c0_65 = arith.constant 0 : index
    %194 = vector.load %arg3[%c8_63, %c0_64, %c0_65] : memref<16x1x16xf32, #tpu.memory_space<vmem>>, vector<1x1x16xf32>
    %195 = vector.shape_cast %194 : vector<1x1x16xf32> to vector<1x16xf32>
    %196 = vector.broadcast %193 : vector<28x1xf32> to vector<28x16xf32>
    %197 = vector.broadcast %195 : vector<1x16xf32> to vector<28x16xf32>
    %198 = arith.mulf %196, %197 : vector<28x16xf32>
    %199 = arith.addf %190, %198 : vector<28x16xf32>
    %200 = vector.extract_strided_slice %192 {offsets = [1, 0], sizes = [28, 1], strides = [1, 1]} : vector<32x1xf32> to vector<28x1xf32>
    %c9_66 = arith.constant 9 : index
    %c0_67 = arith.constant 0 : index
    %c0_68 = arith.constant 0 : index
    %201 = vector.load %arg3[%c9_66, %c0_67, %c0_68] : memref<16x1x16xf32, #tpu.memory_space<vmem>>, vector<1x1x16xf32>
    %202 = vector.shape_cast %201 : vector<1x1x16xf32> to vector<1x16xf32>
    %203 = vector.broadcast %200 : vector<28x1xf32> to vector<28x16xf32>
    %204 = vector.broadcast %202 : vector<1x16xf32> to vector<28x16xf32>
    %205 = arith.mulf %203, %204 : vector<28x16xf32>
    %206 = arith.addf %199, %205 : vector<28x16xf32>
    %207 = vector.extract_strided_slice %192 {offsets = [2, 0], sizes = [28, 1], strides = [1, 1]} : vector<32x1xf32> to vector<28x1xf32>
    %c10_69 = arith.constant 10 : index
    %c0_70 = arith.constant 0 : index
    %c0_71 = arith.constant 0 : index
    %208 = vector.load %arg3[%c10_69, %c0_70, %c0_71] : memref<16x1x16xf32, #tpu.memory_space<vmem>>, vector<1x1x16xf32>
    %209 = vector.shape_cast %208 : vector<1x1x16xf32> to vector<1x16xf32>
    %210 = vector.broadcast %207 : vector<28x1xf32> to vector<28x16xf32>
    %211 = vector.broadcast %209 : vector<1x16xf32> to vector<28x16xf32>
    %212 = arith.mulf %210, %211 : vector<28x16xf32>
    %213 = arith.addf %206, %212 : vector<28x16xf32>
    %214 = vector.extract_strided_slice %192 {offsets = [3, 0], sizes = [28, 1], strides = [1, 1]} : vector<32x1xf32> to vector<28x1xf32>
    %c11_72 = arith.constant 11 : index
    %c0_73 = arith.constant 0 : index
    %c0_74 = arith.constant 0 : index
    %215 = vector.load %arg3[%c11_72, %c0_73, %c0_74] : memref<16x1x16xf32, #tpu.memory_space<vmem>>, vector<1x1x16xf32>
    %216 = vector.shape_cast %215 : vector<1x1x16xf32> to vector<1x16xf32>
    %217 = vector.broadcast %214 : vector<28x1xf32> to vector<28x16xf32>
    %218 = vector.broadcast %216 : vector<1x16xf32> to vector<28x16xf32>
    %219 = arith.mulf %217, %218 : vector<28x16xf32>
    %220 = arith.addf %213, %219 : vector<28x16xf32>
    %221 = vector.extract_strided_slice %3 {offsets = [4, 0, 0], sizes = [1, 32, 1], strides = [1, 1, 1]} : vector<5x32x1xf32> to vector<1x32x1xf32>
    %222 = vector.shape_cast %221 : vector<1x32x1xf32> to vector<32x1xf32>
    %223 = vector.extract_strided_slice %222 {offsets = [0, 0], sizes = [28, 1], strides = [1, 1]} : vector<32x1xf32> to vector<28x1xf32>
    %c12_75 = arith.constant 12 : index
    %c0_76 = arith.constant 0 : index
    %c0_77 = arith.constant 0 : index
    %224 = vector.load %arg3[%c12_75, %c0_76, %c0_77] : memref<16x1x16xf32, #tpu.memory_space<vmem>>, vector<1x1x16xf32>
    %225 = vector.shape_cast %224 : vector<1x1x16xf32> to vector<1x16xf32>
    %226 = vector.broadcast %223 : vector<28x1xf32> to vector<28x16xf32>
    %227 = vector.broadcast %225 : vector<1x16xf32> to vector<28x16xf32>
    %228 = arith.mulf %226, %227 : vector<28x16xf32>
    %229 = arith.addf %220, %228 : vector<28x16xf32>
    %230 = vector.extract_strided_slice %222 {offsets = [1, 0], sizes = [28, 1], strides = [1, 1]} : vector<32x1xf32> to vector<28x1xf32>
    %c13_78 = arith.constant 13 : index
    %c0_79 = arith.constant 0 : index
    %c0_80 = arith.constant 0 : index
    %231 = vector.load %arg3[%c13_78, %c0_79, %c0_80] : memref<16x1x16xf32, #tpu.memory_space<vmem>>, vector<1x1x16xf32>
    %232 = vector.shape_cast %231 : vector<1x1x16xf32> to vector<1x16xf32>
    %233 = vector.broadcast %230 : vector<28x1xf32> to vector<28x16xf32>
    %234 = vector.broadcast %232 : vector<1x16xf32> to vector<28x16xf32>
    %235 = arith.mulf %233, %234 : vector<28x16xf32>
    %236 = arith.addf %229, %235 : vector<28x16xf32>
    %237 = vector.extract_strided_slice %222 {offsets = [2, 0], sizes = [28, 1], strides = [1, 1]} : vector<32x1xf32> to vector<28x1xf32>
    %c14_81 = arith.constant 14 : index
    %c0_82 = arith.constant 0 : index
    %c0_83 = arith.constant 0 : index
    %238 = vector.load %arg3[%c14_81, %c0_82, %c0_83] : memref<16x1x16xf32, #tpu.memory_space<vmem>>, vector<1x1x16xf32>
    %239 = vector.shape_cast %238 : vector<1x1x16xf32> to vector<1x16xf32>
    %240 = vector.broadcast %237 : vector<28x1xf32> to vector<28x16xf32>
    %241 = vector.broadcast %239 : vector<1x16xf32> to vector<28x16xf32>
    %242 = arith.mulf %240, %241 : vector<28x16xf32>
    %243 = arith.addf %236, %242 : vector<28x16xf32>
    %244 = vector.extract_strided_slice %222 {offsets = [3, 0], sizes = [28, 1], strides = [1, 1]} : vector<32x1xf32> to vector<28x1xf32>
    %c15_84 = arith.constant 15 : index
    %c0_85 = arith.constant 0 : index
    %c0_86 = arith.constant 0 : index
    %245 = vector.load %arg3[%c15_84, %c0_85, %c0_86] : memref<16x1x16xf32, #tpu.memory_space<vmem>>, vector<1x1x16xf32>
    %246 = vector.shape_cast %245 : vector<1x1x16xf32> to vector<1x16xf32>
    %247 = vector.broadcast %244 : vector<28x1xf32> to vector<28x16xf32>
    %248 = vector.broadcast %246 : vector<1x16xf32> to vector<28x16xf32>
    %249 = arith.mulf %247, %248 : vector<28x16xf32>
    %250 = arith.addf %243, %249 : vector<28x16xf32>
    %251 = vector.broadcast %4 : vector<1x16xf32> to vector<28x16xf32>
    %252 = arith.addf %250, %251 : vector<28x16xf32>
    %cst_87 = arith.constant 0.000000e+00 : f32
    %253 = vector.broadcast %cst_87 : f32 to vector<28x16xf32>
    %254 = arith.maximumf %252, %253 : vector<28x16xf32>
    %255 = arith.maximumf %129, %254 : vector<28x16xf32>
    %256 = vector.extract_strided_slice %255 {offsets = [0, 0], sizes = [2, 16], strides = [1, 1]} : vector<28x16xf32> to vector<2x16xf32>
    %cst_88 = arith.constant dense<0xFF800000> : vector<16xf32>
    %257 = vector.multi_reduction <maximumf>, %256, %cst_88 [0] : vector<2x16xf32> to vector<16xf32>
    %258 = vector.shape_cast %257 : vector<16xf32> to vector<1x16xf32>
    %259 = vector.extract_strided_slice %255 {offsets = [2, 0], sizes = [2, 16], strides = [1, 1]} : vector<28x16xf32> to vector<2x16xf32>
    %cst_89 = arith.constant dense<0xFF800000> : vector<16xf32>
    %260 = vector.multi_reduction <maximumf>, %259, %cst_89 [0] : vector<2x16xf32> to vector<16xf32>
    %261 = vector.shape_cast %260 : vector<16xf32> to vector<1x16xf32>
    %262 = vector.extract_strided_slice %255 {offsets = [4, 0], sizes = [2, 16], strides = [1, 1]} : vector<28x16xf32> to vector<2x16xf32>
    %cst_90 = arith.constant dense<0xFF800000> : vector<16xf32>
    %263 = vector.multi_reduction <maximumf>, %262, %cst_90 [0] : vector<2x16xf32> to vector<16xf32>
    %264 = vector.shape_cast %263 : vector<16xf32> to vector<1x16xf32>
    %265 = vector.extract_strided_slice %255 {offsets = [6, 0], sizes = [2, 16], strides = [1, 1]} : vector<28x16xf32> to vector<2x16xf32>
    %cst_91 = arith.constant dense<0xFF800000> : vector<16xf32>
    %266 = vector.multi_reduction <maximumf>, %265, %cst_91 [0] : vector<2x16xf32> to vector<16xf32>
    %267 = vector.shape_cast %266 : vector<16xf32> to vector<1x16xf32>
    %268 = vector.extract_strided_slice %255 {offsets = [8, 0], sizes = [2, 16], strides = [1, 1]} : vector<28x16xf32> to vector<2x16xf32>
    %cst_92 = arith.constant dense<0xFF800000> : vector<16xf32>
    %269 = vector.multi_reduction <maximumf>, %268, %cst_92 [0] : vector<2x16xf32> to vector<16xf32>
    %270 = vector.shape_cast %269 : vector<16xf32> to vector<1x16xf32>
    %271 = vector.extract_strided_slice %255 {offsets = [10, 0], sizes = [2, 16], strides = [1, 1]} : vector<28x16xf32> to vector<2x16xf32>
    %cst_93 = arith.constant dense<0xFF800000> : vector<16xf32>
    %272 = vector.multi_reduction <maximumf>, %271, %cst_93 [0] : vector<2x16xf32> to vector<16xf32>
    %273 = vector.shape_cast %272 : vector<16xf32> to vector<1x16xf32>
    %274 = vector.extract_strided_slice %255 {offsets = [12, 0], sizes = [2, 16], strides = [1, 1]} : vector<28x16xf32> to vector<2x16xf32>
    %cst_94 = arith.constant dense<0xFF800000> : vector<16xf32>
    %275 = vector.multi_reduction <maximumf>, %274, %cst_94 [0] : vector<2x16xf32> to vector<16xf32>
    %276 = vector.shape_cast %275 : vector<16xf32> to vector<1x16xf32>
    %277 = vector.extract_strided_slice %255 {offsets = [14, 0], sizes = [2, 16], strides = [1, 1]} : vector<28x16xf32> to vector<2x16xf32>
    %cst_95 = arith.constant dense<0xFF800000> : vector<16xf32>
    %278 = vector.multi_reduction <maximumf>, %277, %cst_95 [0] : vector<2x16xf32> to vector<16xf32>
    %279 = vector.shape_cast %278 : vector<16xf32> to vector<1x16xf32>
    %280 = vector.extract_strided_slice %255 {offsets = [16, 0], sizes = [2, 16], strides = [1, 1]} : vector<28x16xf32> to vector<2x16xf32>
    %cst_96 = arith.constant dense<0xFF800000> : vector<16xf32>
    %281 = vector.multi_reduction <maximumf>, %280, %cst_96 [0] : vector<2x16xf32> to vector<16xf32>
    %282 = vector.shape_cast %281 : vector<16xf32> to vector<1x16xf32>
    %283 = vector.extract_strided_slice %255 {offsets = [18, 0], sizes = [2, 16], strides = [1, 1]} : vector<28x16xf32> to vector<2x16xf32>
    %cst_97 = arith.constant dense<0xFF800000> : vector<16xf32>
    %284 = vector.multi_reduction <maximumf>, %283, %cst_97 [0] : vector<2x16xf32> to vector<16xf32>
    %285 = vector.shape_cast %284 : vector<16xf32> to vector<1x16xf32>
    %286 = vector.extract_strided_slice %255 {offsets = [20, 0], sizes = [2, 16], strides = [1, 1]} : vector<28x16xf32> to vector<2x16xf32>
    %cst_98 = arith.constant dense<0xFF800000> : vector<16xf32>
    %287 = vector.multi_reduction <maximumf>, %286, %cst_98 [0] : vector<2x16xf32> to vector<16xf32>
    %288 = vector.shape_cast %287 : vector<16xf32> to vector<1x16xf32>
    %289 = vector.extract_strided_slice %255 {offsets = [22, 0], sizes = [2, 16], strides = [1, 1]} : vector<28x16xf32> to vector<2x16xf32>
    %cst_99 = arith.constant dense<0xFF800000> : vector<16xf32>
    %290 = vector.multi_reduction <maximumf>, %289, %cst_99 [0] : vector<2x16xf32> to vector<16xf32>
    %291 = vector.shape_cast %290 : vector<16xf32> to vector<1x16xf32>
    %292 = vector.extract_strided_slice %255 {offsets = [24, 0], sizes = [2, 16], strides = [1, 1]} : vector<28x16xf32> to vector<2x16xf32>
    %cst_100 = arith.constant dense<0xFF800000> : vector<16xf32>
    %293 = vector.multi_reduction <maximumf>, %292, %cst_100 [0] : vector<2x16xf32> to vector<16xf32>
    %294 = vector.shape_cast %293 : vector<16xf32> to vector<1x16xf32>
    %295 = vector.extract_strided_slice %255 {offsets = [26, 0], sizes = [2, 16], strides = [1, 1]} : vector<28x16xf32> to vector<2x16xf32>
    %cst_101 = arith.constant dense<0xFF800000> : vector<16xf32>
    %296 = vector.multi_reduction <maximumf>, %295, %cst_101 [0] : vector<2x16xf32> to vector<16xf32>
    %297 = vector.shape_cast %296 : vector<16xf32> to vector<1x16xf32>
    %298 = tpu.concatenate %258, %261, %264, %267, %270, %273, %276, %279, %282, %285, %288, %291, %294, %297 in 0 : vector<1x16xf32>, vector<1x16xf32>, vector<1x16xf32>, vector<1x16xf32>, vector<1x16xf32>, vector<1x16xf32>, vector<1x16xf32>, vector<1x16xf32>, vector<1x16xf32>, vector<1x16xf32>, vector<1x16xf32>, vector<1x16xf32>, vector<1x16xf32>, vector<1x16xf32> -> vector<14x16xf32>
    %c0_102 = arith.constant 0 : index
    %c0_103 = arith.constant 0 : index
    %c0_104 = arith.constant 0 : index
    %c0_105 = arith.constant 0 : index
    %299 = vector.load %arg5[%c0_102, %c0_103, %c0_104, %c0_105] : memref<1x1x14x16xf32, #tpu.memory_space<vmem>>, vector<1x1x14x16xf32>
    %300 = vector.shape_cast %299 : vector<1x1x14x16xf32> to vector<14x16xf32>
    %301 = vector.shape_cast %298 : vector<14x16xf32> to vector<1x1x14x16xf32>
    tpu.vector_store %arg5[%c0_102, %c0_103, %c0_104, %c0_105], %301 {strides = array<i32>} : memref<1x1x14x16xf32, #tpu.memory_space<vmem>>, vector<1x1x14x16xf32>,
    return
  }
  func.func @transform_0(%arg0: i32, %arg1: i32) -> (i32, i32, i32, i32) {
    %c0_i32 = arith.constant 0 : i32
    %c0_i32_0 = arith.constant 0 : i32
    %c0_i32_1 = arith.constant 0 : i32
    %c0_i32_2 = arith.constant 0 : i32
    return %arg0, %c0_i32, %c0_i32_0, %c0_i32_1 : i32, i32, i32, i32
  }
  func.func @transform_1(%arg0: i32, %arg1: i32) -> (i32, i32, i32) {
    %c0_i32 = arith.constant 0 : i32
    %c0_i32_0 = arith.constant 0 : i32
    %c0_i32_1 = arith.constant 0 : i32
    %c0_i32_2 = arith.constant 0 : i32
    return %c0_i32, %c0_i32_0, %c0_i32_1 : i32, i32, i32
  }
  func.func @transform_2(%arg0: i32, %arg1: i32) -> (i32, i32) {
    %c0_i32 = arith.constant 0 : i32
    %c0_i32_0 = arith.constant 0 : i32
    %c0_i32_1 = arith.constant 0 : i32
    return %c0_i32, %c0_i32_0 : i32, i32
  }
  func.func @transform_3(%arg0: i32, %arg1: i32) -> (i32, i32, i32, i32) {
    %c0_i32 = arith.constant 0 : i32
    %c0_i32_0 = arith.constant 0 : i32
    %c0_i32_1 = arith.constant 0 : i32
    return %arg0, %arg1, %c0_i32, %c0_i32_0 : i32, i32, i32, i32
  }
}

module attributes {stable_mosaic.version = 11 : i64} {
  func.func @_conv_relu_pool_kernel(%arg0: i32, %arg1: i32, %arg2: memref<1x18x18x16xf32, #tpu.memory_space<vmem>>, %arg3: memref<16x16x32xf32, #tpu.memory_space<vmem>>, %arg4: memref<1x32xf32, #tpu.memory_space<vmem>>, %arg5: memref<1x1x7x32xf32, #tpu.memory_space<vmem>>) attributes {dimension_semantics = [#tpu.dimension_semantics<parallel>, #tpu.dimension_semantics<arbitrary>], iteration_bounds = array<i64: 2, 7>, scalar_prefetch = 0 : i64, scratch_operands = 0 : i64, tpu.core_type = #tpu.core_type<tc>, window_params = [{transform_indices = @transform_0, window_bounds = array<i64: 1, 18, 18, 16>}, {pipeline_mode = #tpu.pipeline_mode<synchronous>, transform_indices = @transform_1, window_bounds = array<i64: 16, 16, 32>}, {pipeline_mode = #tpu.pipeline_mode<synchronous>, transform_indices = @transform_2, window_bounds = array<i64: 1, 32>}, {transform_indices = @transform_3, window_bounds = array<i64: 1, 1, 7, 32>}]} {
    %c2_i32 = arith.constant 2 : i32
    %0 = arith.muli %c2_i32, %arg1 : i32
    %c0 = arith.constant 0 : index
    %1 = arith.index_cast %0 : i32 to index
    %c0_0 = arith.constant 0 : index
    %c0_1 = arith.constant 0 : index
    %2 = vector.load %arg2[%c0, %1, %c0_0, %c0_1] : memref<1x18x18x16xf32, #tpu.memory_space<vmem>>, vector<1x5x18x16xf32>
    %3 = vector.shape_cast %2 : vector<1x5x18x16xf32> to vector<5x18x16xf32>
    %c0_2 = arith.constant 0 : index
    %c0_3 = arith.constant 0 : index
    %4 = vector.load %arg4[%c0_2, %c0_3] : memref<1x32xf32, #tpu.memory_space<vmem>>, vector<1x32xf32>
    %cst = arith.constant 0.000000e+00 : f32
    %5 = vector.broadcast %cst : f32 to vector<14x32xf32>
    %6 = vector.extract_strided_slice %3 {offsets = [0, 0, 0], sizes = [1, 18, 16], strides = [1, 1, 1]} : vector<5x18x16xf32> to vector<1x18x16xf32>
    %7 = vector.shape_cast %6 : vector<1x18x16xf32> to vector<18x16xf32>
    %8 = vector.extract_strided_slice %7 {offsets = [0, 0], sizes = [14, 16], strides = [1, 1]} : vector<18x16xf32> to vector<14x16xf32>
    %c0_4 = arith.constant 0 : index
    %c0_5 = arith.constant 0 : index
    %c0_6 = arith.constant 0 : index
    %9 = vector.load %arg3[%c0_4, %c0_5, %c0_6] : memref<16x16x32xf32, #tpu.memory_space<vmem>>, vector<1x16x32xf32>
    %10 = vector.shape_cast %9 : vector<1x16x32xf32> to vector<16x32xf32>
    %cst_7 = arith.constant dense<0.000000e+00> : vector<14x32xf32>
    %11 = tpu.matmul %8, %10, %cst_7 {dimension_numbers = #tpu.dot_dimension_numbers<[1], [0], [0], [1], [0, 0, 1, 1], [], []>} : vector<14x16xf32>, vector<16x32xf32>, vector<14x32xf32> -> vector<14x32xf32>
    %12 = arith.addf %5, %11 : vector<14x32xf32>
    %13 = vector.extract_strided_slice %7 {offsets = [1, 0], sizes = [14, 16], strides = [1, 1]} : vector<18x16xf32> to vector<14x16xf32>
    %c1 = arith.constant 1 : index
    %c0_8 = arith.constant 0 : index
    %c0_9 = arith.constant 0 : index
    %14 = vector.load %arg3[%c1, %c0_8, %c0_9] : memref<16x16x32xf32, #tpu.memory_space<vmem>>, vector<1x16x32xf32>
    %15 = vector.shape_cast %14 : vector<1x16x32xf32> to vector<16x32xf32>
    %cst_10 = arith.constant dense<0.000000e+00> : vector<14x32xf32>
    %16 = tpu.matmul %13, %15, %cst_10 {dimension_numbers = #tpu.dot_dimension_numbers<[1], [0], [0], [1], [0, 0, 1, 1], [], []>} : vector<14x16xf32>, vector<16x32xf32>, vector<14x32xf32> -> vector<14x32xf32>
    %17 = arith.addf %12, %16 : vector<14x32xf32>
    %18 = vector.extract_strided_slice %7 {offsets = [2, 0], sizes = [14, 16], strides = [1, 1]} : vector<18x16xf32> to vector<14x16xf32>
    %c2 = arith.constant 2 : index
    %c0_11 = arith.constant 0 : index
    %c0_12 = arith.constant 0 : index
    %19 = vector.load %arg3[%c2, %c0_11, %c0_12] : memref<16x16x32xf32, #tpu.memory_space<vmem>>, vector<1x16x32xf32>
    %20 = vector.shape_cast %19 : vector<1x16x32xf32> to vector<16x32xf32>
    %cst_13 = arith.constant dense<0.000000e+00> : vector<14x32xf32>
    %21 = tpu.matmul %18, %20, %cst_13 {dimension_numbers = #tpu.dot_dimension_numbers<[1], [0], [0], [1], [0, 0, 1, 1], [], []>} : vector<14x16xf32>, vector<16x32xf32>, vector<14x32xf32> -> vector<14x32xf32>
    %22 = arith.addf %17, %21 : vector<14x32xf32>
    %23 = vector.extract_strided_slice %7 {offsets = [3, 0], sizes = [14, 16], strides = [1, 1]} : vector<18x16xf32> to vector<14x16xf32>
    %c3 = arith.constant 3 : index
    %c0_14 = arith.constant 0 : index
    %c0_15 = arith.constant 0 : index
    %24 = vector.load %arg3[%c3, %c0_14, %c0_15] : memref<16x16x32xf32, #tpu.memory_space<vmem>>, vector<1x16x32xf32>
    %25 = vector.shape_cast %24 : vector<1x16x32xf32> to vector<16x32xf32>
    %cst_16 = arith.constant dense<0.000000e+00> : vector<14x32xf32>
    %26 = tpu.matmul %23, %25, %cst_16 {dimension_numbers = #tpu.dot_dimension_numbers<[1], [0], [0], [1], [0, 0, 1, 1], [], []>} : vector<14x16xf32>, vector<16x32xf32>, vector<14x32xf32> -> vector<14x32xf32>
    %27 = arith.addf %22, %26 : vector<14x32xf32>
    %28 = vector.extract_strided_slice %3 {offsets = [1, 0, 0], sizes = [1, 18, 16], strides = [1, 1, 1]} : vector<5x18x16xf32> to vector<1x18x16xf32>
    %29 = vector.shape_cast %28 : vector<1x18x16xf32> to vector<18x16xf32>
    %30 = vector.extract_strided_slice %29 {offsets = [0, 0], sizes = [14, 16], strides = [1, 1]} : vector<18x16xf32> to vector<14x16xf32>
    %c4 = arith.constant 4 : index
    %c0_17 = arith.constant 0 : index
    %c0_18 = arith.constant 0 : index
    %31 = vector.load %arg3[%c4, %c0_17, %c0_18] : memref<16x16x32xf32, #tpu.memory_space<vmem>>, vector<1x16x32xf32>
    %32 = vector.shape_cast %31 : vector<1x16x32xf32> to vector<16x32xf32>
    %cst_19 = arith.constant dense<0.000000e+00> : vector<14x32xf32>
    %33 = tpu.matmul %30, %32, %cst_19 {dimension_numbers = #tpu.dot_dimension_numbers<[1], [0], [0], [1], [0, 0, 1, 1], [], []>} : vector<14x16xf32>, vector<16x32xf32>, vector<14x32xf32> -> vector<14x32xf32>
    %34 = arith.addf %27, %33 : vector<14x32xf32>
    %35 = vector.extract_strided_slice %29 {offsets = [1, 0], sizes = [14, 16], strides = [1, 1]} : vector<18x16xf32> to vector<14x16xf32>
    %c5 = arith.constant 5 : index
    %c0_20 = arith.constant 0 : index
    %c0_21 = arith.constant 0 : index
    %36 = vector.load %arg3[%c5, %c0_20, %c0_21] : memref<16x16x32xf32, #tpu.memory_space<vmem>>, vector<1x16x32xf32>
    %37 = vector.shape_cast %36 : vector<1x16x32xf32> to vector<16x32xf32>
    %cst_22 = arith.constant dense<0.000000e+00> : vector<14x32xf32>
    %38 = tpu.matmul %35, %37, %cst_22 {dimension_numbers = #tpu.dot_dimension_numbers<[1], [0], [0], [1], [0, 0, 1, 1], [], []>} : vector<14x16xf32>, vector<16x32xf32>, vector<14x32xf32> -> vector<14x32xf32>
    %39 = arith.addf %34, %38 : vector<14x32xf32>
    %40 = vector.extract_strided_slice %29 {offsets = [2, 0], sizes = [14, 16], strides = [1, 1]} : vector<18x16xf32> to vector<14x16xf32>
    %c6 = arith.constant 6 : index
    %c0_23 = arith.constant 0 : index
    %c0_24 = arith.constant 0 : index
    %41 = vector.load %arg3[%c6, %c0_23, %c0_24] : memref<16x16x32xf32, #tpu.memory_space<vmem>>, vector<1x16x32xf32>
    %42 = vector.shape_cast %41 : vector<1x16x32xf32> to vector<16x32xf32>
    %cst_25 = arith.constant dense<0.000000e+00> : vector<14x32xf32>
    %43 = tpu.matmul %40, %42, %cst_25 {dimension_numbers = #tpu.dot_dimension_numbers<[1], [0], [0], [1], [0, 0, 1, 1], [], []>} : vector<14x16xf32>, vector<16x32xf32>, vector<14x32xf32> -> vector<14x32xf32>
    %44 = arith.addf %39, %43 : vector<14x32xf32>
    %45 = vector.extract_strided_slice %29 {offsets = [3, 0], sizes = [14, 16], strides = [1, 1]} : vector<18x16xf32> to vector<14x16xf32>
    %c7 = arith.constant 7 : index
    %c0_26 = arith.constant 0 : index
    %c0_27 = arith.constant 0 : index
    %46 = vector.load %arg3[%c7, %c0_26, %c0_27] : memref<16x16x32xf32, #tpu.memory_space<vmem>>, vector<1x16x32xf32>
    %47 = vector.shape_cast %46 : vector<1x16x32xf32> to vector<16x32xf32>
    %cst_28 = arith.constant dense<0.000000e+00> : vector<14x32xf32>
    %48 = tpu.matmul %45, %47, %cst_28 {dimension_numbers = #tpu.dot_dimension_numbers<[1], [0], [0], [1], [0, 0, 1, 1], [], []>} : vector<14x16xf32>, vector<16x32xf32>, vector<14x32xf32> -> vector<14x32xf32>
    %49 = arith.addf %44, %48 : vector<14x32xf32>
    %50 = vector.extract_strided_slice %3 {offsets = [2, 0, 0], sizes = [1, 18, 16], strides = [1, 1, 1]} : vector<5x18x16xf32> to vector<1x18x16xf32>
    %51 = vector.shape_cast %50 : vector<1x18x16xf32> to vector<18x16xf32>
    %52 = vector.extract_strided_slice %51 {offsets = [0, 0], sizes = [14, 16], strides = [1, 1]} : vector<18x16xf32> to vector<14x16xf32>
    %c8 = arith.constant 8 : index
    %c0_29 = arith.constant 0 : index
    %c0_30 = arith.constant 0 : index
    %53 = vector.load %arg3[%c8, %c0_29, %c0_30] : memref<16x16x32xf32, #tpu.memory_space<vmem>>, vector<1x16x32xf32>
    %54 = vector.shape_cast %53 : vector<1x16x32xf32> to vector<16x32xf32>
    %cst_31 = arith.constant dense<0.000000e+00> : vector<14x32xf32>
    %55 = tpu.matmul %52, %54, %cst_31 {dimension_numbers = #tpu.dot_dimension_numbers<[1], [0], [0], [1], [0, 0, 1, 1], [], []>} : vector<14x16xf32>, vector<16x32xf32>, vector<14x32xf32> -> vector<14x32xf32>
    %56 = arith.addf %49, %55 : vector<14x32xf32>
    %57 = vector.extract_strided_slice %51 {offsets = [1, 0], sizes = [14, 16], strides = [1, 1]} : vector<18x16xf32> to vector<14x16xf32>
    %c9 = arith.constant 9 : index
    %c0_32 = arith.constant 0 : index
    %c0_33 = arith.constant 0 : index
    %58 = vector.load %arg3[%c9, %c0_32, %c0_33] : memref<16x16x32xf32, #tpu.memory_space<vmem>>, vector<1x16x32xf32>
    %59 = vector.shape_cast %58 : vector<1x16x32xf32> to vector<16x32xf32>
    %cst_34 = arith.constant dense<0.000000e+00> : vector<14x32xf32>
    %60 = tpu.matmul %57, %59, %cst_34 {dimension_numbers = #tpu.dot_dimension_numbers<[1], [0], [0], [1], [0, 0, 1, 1], [], []>} : vector<14x16xf32>, vector<16x32xf32>, vector<14x32xf32> -> vector<14x32xf32>
    %61 = arith.addf %56, %60 : vector<14x32xf32>
    %62 = vector.extract_strided_slice %51 {offsets = [2, 0], sizes = [14, 16], strides = [1, 1]} : vector<18x16xf32> to vector<14x16xf32>
    %c10 = arith.constant 10 : index
    %c0_35 = arith.constant 0 : index
    %c0_36 = arith.constant 0 : index
    %63 = vector.load %arg3[%c10, %c0_35, %c0_36] : memref<16x16x32xf32, #tpu.memory_space<vmem>>, vector<1x16x32xf32>
    %64 = vector.shape_cast %63 : vector<1x16x32xf32> to vector<16x32xf32>
    %cst_37 = arith.constant dense<0.000000e+00> : vector<14x32xf32>
    %65 = tpu.matmul %62, %64, %cst_37 {dimension_numbers = #tpu.dot_dimension_numbers<[1], [0], [0], [1], [0, 0, 1, 1], [], []>} : vector<14x16xf32>, vector<16x32xf32>, vector<14x32xf32> -> vector<14x32xf32>
    %66 = arith.addf %61, %65 : vector<14x32xf32>
    %67 = vector.extract_strided_slice %51 {offsets = [3, 0], sizes = [14, 16], strides = [1, 1]} : vector<18x16xf32> to vector<14x16xf32>
    %c11 = arith.constant 11 : index
    %c0_38 = arith.constant 0 : index
    %c0_39 = arith.constant 0 : index
    %68 = vector.load %arg3[%c11, %c0_38, %c0_39] : memref<16x16x32xf32, #tpu.memory_space<vmem>>, vector<1x16x32xf32>
    %69 = vector.shape_cast %68 : vector<1x16x32xf32> to vector<16x32xf32>
    %cst_40 = arith.constant dense<0.000000e+00> : vector<14x32xf32>
    %70 = tpu.matmul %67, %69, %cst_40 {dimension_numbers = #tpu.dot_dimension_numbers<[1], [0], [0], [1], [0, 0, 1, 1], [], []>} : vector<14x16xf32>, vector<16x32xf32>, vector<14x32xf32> -> vector<14x32xf32>
    %71 = arith.addf %66, %70 : vector<14x32xf32>
    %72 = vector.extract_strided_slice %3 {offsets = [3, 0, 0], sizes = [1, 18, 16], strides = [1, 1, 1]} : vector<5x18x16xf32> to vector<1x18x16xf32>
    %73 = vector.shape_cast %72 : vector<1x18x16xf32> to vector<18x16xf32>
    %74 = vector.extract_strided_slice %73 {offsets = [0, 0], sizes = [14, 16], strides = [1, 1]} : vector<18x16xf32> to vector<14x16xf32>
    %c12 = arith.constant 12 : index
    %c0_41 = arith.constant 0 : index
    %c0_42 = arith.constant 0 : index
    %75 = vector.load %arg3[%c12, %c0_41, %c0_42] : memref<16x16x32xf32, #tpu.memory_space<vmem>>, vector<1x16x32xf32>
    %76 = vector.shape_cast %75 : vector<1x16x32xf32> to vector<16x32xf32>
    %cst_43 = arith.constant dense<0.000000e+00> : vector<14x32xf32>
    %77 = tpu.matmul %74, %76, %cst_43 {dimension_numbers = #tpu.dot_dimension_numbers<[1], [0], [0], [1], [0, 0, 1, 1], [], []>} : vector<14x16xf32>, vector<16x32xf32>, vector<14x32xf32> -> vector<14x32xf32>
    %78 = arith.addf %71, %77 : vector<14x32xf32>
    %79 = vector.extract_strided_slice %73 {offsets = [1, 0], sizes = [14, 16], strides = [1, 1]} : vector<18x16xf32> to vector<14x16xf32>
    %c13 = arith.constant 13 : index
    %c0_44 = arith.constant 0 : index
    %c0_45 = arith.constant 0 : index
    %80 = vector.load %arg3[%c13, %c0_44, %c0_45] : memref<16x16x32xf32, #tpu.memory_space<vmem>>, vector<1x16x32xf32>
    %81 = vector.shape_cast %80 : vector<1x16x32xf32> to vector<16x32xf32>
    %cst_46 = arith.constant dense<0.000000e+00> : vector<14x32xf32>
    %82 = tpu.matmul %79, %81, %cst_46 {dimension_numbers = #tpu.dot_dimension_numbers<[1], [0], [0], [1], [0, 0, 1, 1], [], []>} : vector<14x16xf32>, vector<16x32xf32>, vector<14x32xf32> -> vector<14x32xf32>
    %83 = arith.addf %78, %82 : vector<14x32xf32>
    %84 = vector.extract_strided_slice %73 {offsets = [2, 0], sizes = [14, 16], strides = [1, 1]} : vector<18x16xf32> to vector<14x16xf32>
    %c14 = arith.constant 14 : index
    %c0_47 = arith.constant 0 : index
    %c0_48 = arith.constant 0 : index
    %85 = vector.load %arg3[%c14, %c0_47, %c0_48] : memref<16x16x32xf32, #tpu.memory_space<vmem>>, vector<1x16x32xf32>
    %86 = vector.shape_cast %85 : vector<1x16x32xf32> to vector<16x32xf32>
    %cst_49 = arith.constant dense<0.000000e+00> : vector<14x32xf32>
    %87 = tpu.matmul %84, %86, %cst_49 {dimension_numbers = #tpu.dot_dimension_numbers<[1], [0], [0], [1], [0, 0, 1, 1], [], []>} : vector<14x16xf32>, vector<16x32xf32>, vector<14x32xf32> -> vector<14x32xf32>
    %88 = arith.addf %83, %87 : vector<14x32xf32>
    %89 = vector.extract_strided_slice %73 {offsets = [3, 0], sizes = [14, 16], strides = [1, 1]} : vector<18x16xf32> to vector<14x16xf32>
    %c15 = arith.constant 15 : index
    %c0_50 = arith.constant 0 : index
    %c0_51 = arith.constant 0 : index
    %90 = vector.load %arg3[%c15, %c0_50, %c0_51] : memref<16x16x32xf32, #tpu.memory_space<vmem>>, vector<1x16x32xf32>
    %91 = vector.shape_cast %90 : vector<1x16x32xf32> to vector<16x32xf32>
    %cst_52 = arith.constant dense<0.000000e+00> : vector<14x32xf32>
    %92 = tpu.matmul %89, %91, %cst_52 {dimension_numbers = #tpu.dot_dimension_numbers<[1], [0], [0], [1], [0, 0, 1, 1], [], []>} : vector<14x16xf32>, vector<16x32xf32>, vector<14x32xf32> -> vector<14x32xf32>
    %93 = arith.addf %88, %92 : vector<14x32xf32>
    %94 = vector.broadcast %4 : vector<1x32xf32> to vector<14x32xf32>
    %95 = arith.addf %93, %94 : vector<14x32xf32>
    %cst_53 = arith.constant 0.000000e+00 : f32
    %96 = vector.broadcast %cst_53 : f32 to vector<14x32xf32>
    %97 = arith.maximumf %95, %96 : vector<14x32xf32>
    %cst_54 = arith.constant 0.000000e+00 : f32
    %98 = vector.broadcast %cst_54 : f32 to vector<14x32xf32>
    %99 = vector.extract_strided_slice %3 {offsets = [1, 0, 0], sizes = [1, 18, 16], strides = [1, 1, 1]} : vector<5x18x16xf32> to vector<1x18x16xf32>
    %100 = vector.shape_cast %99 : vector<1x18x16xf32> to vector<18x16xf32>
    %101 = vector.extract_strided_slice %100 {offsets = [0, 0], sizes = [14, 16], strides = [1, 1]} : vector<18x16xf32> to vector<14x16xf32>
    %c0_55 = arith.constant 0 : index
    %c0_56 = arith.constant 0 : index
    %c0_57 = arith.constant 0 : index
    %102 = vector.load %arg3[%c0_55, %c0_56, %c0_57] : memref<16x16x32xf32, #tpu.memory_space<vmem>>, vector<1x16x32xf32>
    %103 = vector.shape_cast %102 : vector<1x16x32xf32> to vector<16x32xf32>
    %cst_58 = arith.constant dense<0.000000e+00> : vector<14x32xf32>
    %104 = tpu.matmul %101, %103, %cst_58 {dimension_numbers = #tpu.dot_dimension_numbers<[1], [0], [0], [1], [0, 0, 1, 1], [], []>} : vector<14x16xf32>, vector<16x32xf32>, vector<14x32xf32> -> vector<14x32xf32>
    %105 = arith.addf %98, %104 : vector<14x32xf32>
    %106 = vector.extract_strided_slice %100 {offsets = [1, 0], sizes = [14, 16], strides = [1, 1]} : vector<18x16xf32> to vector<14x16xf32>
    %c1_59 = arith.constant 1 : index
    %c0_60 = arith.constant 0 : index
    %c0_61 = arith.constant 0 : index
    %107 = vector.load %arg3[%c1_59, %c0_60, %c0_61] : memref<16x16x32xf32, #tpu.memory_space<vmem>>, vector<1x16x32xf32>
    %108 = vector.shape_cast %107 : vector<1x16x32xf32> to vector<16x32xf32>
    %cst_62 = arith.constant dense<0.000000e+00> : vector<14x32xf32>
    %109 = tpu.matmul %106, %108, %cst_62 {dimension_numbers = #tpu.dot_dimension_numbers<[1], [0], [0], [1], [0, 0, 1, 1], [], []>} : vector<14x16xf32>, vector<16x32xf32>, vector<14x32xf32> -> vector<14x32xf32>
    %110 = arith.addf %105, %109 : vector<14x32xf32>
    %111 = vector.extract_strided_slice %100 {offsets = [2, 0], sizes = [14, 16], strides = [1, 1]} : vector<18x16xf32> to vector<14x16xf32>
    %c2_63 = arith.constant 2 : index
    %c0_64 = arith.constant 0 : index
    %c0_65 = arith.constant 0 : index
    %112 = vector.load %arg3[%c2_63, %c0_64, %c0_65] : memref<16x16x32xf32, #tpu.memory_space<vmem>>, vector<1x16x32xf32>
    %113 = vector.shape_cast %112 : vector<1x16x32xf32> to vector<16x32xf32>
    %cst_66 = arith.constant dense<0.000000e+00> : vector<14x32xf32>
    %114 = tpu.matmul %111, %113, %cst_66 {dimension_numbers = #tpu.dot_dimension_numbers<[1], [0], [0], [1], [0, 0, 1, 1], [], []>} : vector<14x16xf32>, vector<16x32xf32>, vector<14x32xf32> -> vector<14x32xf32>
    %115 = arith.addf %110, %114 : vector<14x32xf32>
    %116 = vector.extract_strided_slice %100 {offsets = [3, 0], sizes = [14, 16], strides = [1, 1]} : vector<18x16xf32> to vector<14x16xf32>
    %c3_67 = arith.constant 3 : index
    %c0_68 = arith.constant 0 : index
    %c0_69 = arith.constant 0 : index
    %117 = vector.load %arg3[%c3_67, %c0_68, %c0_69] : memref<16x16x32xf32, #tpu.memory_space<vmem>>, vector<1x16x32xf32>
    %118 = vector.shape_cast %117 : vector<1x16x32xf32> to vector<16x32xf32>
    %cst_70 = arith.constant dense<0.000000e+00> : vector<14x32xf32>
    %119 = tpu.matmul %116, %118, %cst_70 {dimension_numbers = #tpu.dot_dimension_numbers<[1], [0], [0], [1], [0, 0, 1, 1], [], []>} : vector<14x16xf32>, vector<16x32xf32>, vector<14x32xf32> -> vector<14x32xf32>
    %120 = arith.addf %115, %119 : vector<14x32xf32>
    %121 = vector.extract_strided_slice %3 {offsets = [2, 0, 0], sizes = [1, 18, 16], strides = [1, 1, 1]} : vector<5x18x16xf32> to vector<1x18x16xf32>
    %122 = vector.shape_cast %121 : vector<1x18x16xf32> to vector<18x16xf32>
    %123 = vector.extract_strided_slice %122 {offsets = [0, 0], sizes = [14, 16], strides = [1, 1]} : vector<18x16xf32> to vector<14x16xf32>
    %c4_71 = arith.constant 4 : index
    %c0_72 = arith.constant 0 : index
    %c0_73 = arith.constant 0 : index
    %124 = vector.load %arg3[%c4_71, %c0_72, %c0_73] : memref<16x16x32xf32, #tpu.memory_space<vmem>>, vector<1x16x32xf32>
    %125 = vector.shape_cast %124 : vector<1x16x32xf32> to vector<16x32xf32>
    %cst_74 = arith.constant dense<0.000000e+00> : vector<14x32xf32>
    %126 = tpu.matmul %123, %125, %cst_74 {dimension_numbers = #tpu.dot_dimension_numbers<[1], [0], [0], [1], [0, 0, 1, 1], [], []>} : vector<14x16xf32>, vector<16x32xf32>, vector<14x32xf32> -> vector<14x32xf32>
    %127 = arith.addf %120, %126 : vector<14x32xf32>
    %128 = vector.extract_strided_slice %122 {offsets = [1, 0], sizes = [14, 16], strides = [1, 1]} : vector<18x16xf32> to vector<14x16xf32>
    %c5_75 = arith.constant 5 : index
    %c0_76 = arith.constant 0 : index
    %c0_77 = arith.constant 0 : index
    %129 = vector.load %arg3[%c5_75, %c0_76, %c0_77] : memref<16x16x32xf32, #tpu.memory_space<vmem>>, vector<1x16x32xf32>
    %130 = vector.shape_cast %129 : vector<1x16x32xf32> to vector<16x32xf32>
    %cst_78 = arith.constant dense<0.000000e+00> : vector<14x32xf32>
    %131 = tpu.matmul %128, %130, %cst_78 {dimension_numbers = #tpu.dot_dimension_numbers<[1], [0], [0], [1], [0, 0, 1, 1], [], []>} : vector<14x16xf32>, vector<16x32xf32>, vector<14x32xf32> -> vector<14x32xf32>
    %132 = arith.addf %127, %131 : vector<14x32xf32>
    %133 = vector.extract_strided_slice %122 {offsets = [2, 0], sizes = [14, 16], strides = [1, 1]} : vector<18x16xf32> to vector<14x16xf32>
    %c6_79 = arith.constant 6 : index
    %c0_80 = arith.constant 0 : index
    %c0_81 = arith.constant 0 : index
    %134 = vector.load %arg3[%c6_79, %c0_80, %c0_81] : memref<16x16x32xf32, #tpu.memory_space<vmem>>, vector<1x16x32xf32>
    %135 = vector.shape_cast %134 : vector<1x16x32xf32> to vector<16x32xf32>
    %cst_82 = arith.constant dense<0.000000e+00> : vector<14x32xf32>
    %136 = tpu.matmul %133, %135, %cst_82 {dimension_numbers = #tpu.dot_dimension_numbers<[1], [0], [0], [1], [0, 0, 1, 1], [], []>} : vector<14x16xf32>, vector<16x32xf32>, vector<14x32xf32> -> vector<14x32xf32>
    %137 = arith.addf %132, %136 : vector<14x32xf32>
    %138 = vector.extract_strided_slice %122 {offsets = [3, 0], sizes = [14, 16], strides = [1, 1]} : vector<18x16xf32> to vector<14x16xf32>
    %c7_83 = arith.constant 7 : index
    %c0_84 = arith.constant 0 : index
    %c0_85 = arith.constant 0 : index
    %139 = vector.load %arg3[%c7_83, %c0_84, %c0_85] : memref<16x16x32xf32, #tpu.memory_space<vmem>>, vector<1x16x32xf32>
    %140 = vector.shape_cast %139 : vector<1x16x32xf32> to vector<16x32xf32>
    %cst_86 = arith.constant dense<0.000000e+00> : vector<14x32xf32>
    %141 = tpu.matmul %138, %140, %cst_86 {dimension_numbers = #tpu.dot_dimension_numbers<[1], [0], [0], [1], [0, 0, 1, 1], [], []>} : vector<14x16xf32>, vector<16x32xf32>, vector<14x32xf32> -> vector<14x32xf32>
    %142 = arith.addf %137, %141 : vector<14x32xf32>
    %143 = vector.extract_strided_slice %3 {offsets = [3, 0, 0], sizes = [1, 18, 16], strides = [1, 1, 1]} : vector<5x18x16xf32> to vector<1x18x16xf32>
    %144 = vector.shape_cast %143 : vector<1x18x16xf32> to vector<18x16xf32>
    %145 = vector.extract_strided_slice %144 {offsets = [0, 0], sizes = [14, 16], strides = [1, 1]} : vector<18x16xf32> to vector<14x16xf32>
    %c8_87 = arith.constant 8 : index
    %c0_88 = arith.constant 0 : index
    %c0_89 = arith.constant 0 : index
    %146 = vector.load %arg3[%c8_87, %c0_88, %c0_89] : memref<16x16x32xf32, #tpu.memory_space<vmem>>, vector<1x16x32xf32>
    %147 = vector.shape_cast %146 : vector<1x16x32xf32> to vector<16x32xf32>
    %cst_90 = arith.constant dense<0.000000e+00> : vector<14x32xf32>
    %148 = tpu.matmul %145, %147, %cst_90 {dimension_numbers = #tpu.dot_dimension_numbers<[1], [0], [0], [1], [0, 0, 1, 1], [], []>} : vector<14x16xf32>, vector<16x32xf32>, vector<14x32xf32> -> vector<14x32xf32>
    %149 = arith.addf %142, %148 : vector<14x32xf32>
    %150 = vector.extract_strided_slice %144 {offsets = [1, 0], sizes = [14, 16], strides = [1, 1]} : vector<18x16xf32> to vector<14x16xf32>
    %c9_91 = arith.constant 9 : index
    %c0_92 = arith.constant 0 : index
    %c0_93 = arith.constant 0 : index
    %151 = vector.load %arg3[%c9_91, %c0_92, %c0_93] : memref<16x16x32xf32, #tpu.memory_space<vmem>>, vector<1x16x32xf32>
    %152 = vector.shape_cast %151 : vector<1x16x32xf32> to vector<16x32xf32>
    %cst_94 = arith.constant dense<0.000000e+00> : vector<14x32xf32>
    %153 = tpu.matmul %150, %152, %cst_94 {dimension_numbers = #tpu.dot_dimension_numbers<[1], [0], [0], [1], [0, 0, 1, 1], [], []>} : vector<14x16xf32>, vector<16x32xf32>, vector<14x32xf32> -> vector<14x32xf32>
    %154 = arith.addf %149, %153 : vector<14x32xf32>
    %155 = vector.extract_strided_slice %144 {offsets = [2, 0], sizes = [14, 16], strides = [1, 1]} : vector<18x16xf32> to vector<14x16xf32>
    %c10_95 = arith.constant 10 : index
    %c0_96 = arith.constant 0 : index
    %c0_97 = arith.constant 0 : index
    %156 = vector.load %arg3[%c10_95, %c0_96, %c0_97] : memref<16x16x32xf32, #tpu.memory_space<vmem>>, vector<1x16x32xf32>
    %157 = vector.shape_cast %156 : vector<1x16x32xf32> to vector<16x32xf32>
    %cst_98 = arith.constant dense<0.000000e+00> : vector<14x32xf32>
    %158 = tpu.matmul %155, %157, %cst_98 {dimension_numbers = #tpu.dot_dimension_numbers<[1], [0], [0], [1], [0, 0, 1, 1], [], []>} : vector<14x16xf32>, vector<16x32xf32>, vector<14x32xf32> -> vector<14x32xf32>
    %159 = arith.addf %154, %158 : vector<14x32xf32>
    %160 = vector.extract_strided_slice %144 {offsets = [3, 0], sizes = [14, 16], strides = [1, 1]} : vector<18x16xf32> to vector<14x16xf32>
    %c11_99 = arith.constant 11 : index
    %c0_100 = arith.constant 0 : index
    %c0_101 = arith.constant 0 : index
    %161 = vector.load %arg3[%c11_99, %c0_100, %c0_101] : memref<16x16x32xf32, #tpu.memory_space<vmem>>, vector<1x16x32xf32>
    %162 = vector.shape_cast %161 : vector<1x16x32xf32> to vector<16x32xf32>
    %cst_102 = arith.constant dense<0.000000e+00> : vector<14x32xf32>
    %163 = tpu.matmul %160, %162, %cst_102 {dimension_numbers = #tpu.dot_dimension_numbers<[1], [0], [0], [1], [0, 0, 1, 1], [], []>} : vector<14x16xf32>, vector<16x32xf32>, vector<14x32xf32> -> vector<14x32xf32>
    %164 = arith.addf %159, %163 : vector<14x32xf32>
    %165 = vector.extract_strided_slice %3 {offsets = [4, 0, 0], sizes = [1, 18, 16], strides = [1, 1, 1]} : vector<5x18x16xf32> to vector<1x18x16xf32>
    %166 = vector.shape_cast %165 : vector<1x18x16xf32> to vector<18x16xf32>
    %167 = vector.extract_strided_slice %166 {offsets = [0, 0], sizes = [14, 16], strides = [1, 1]} : vector<18x16xf32> to vector<14x16xf32>
    %c12_103 = arith.constant 12 : index
    %c0_104 = arith.constant 0 : index
    %c0_105 = arith.constant 0 : index
    %168 = vector.load %arg3[%c12_103, %c0_104, %c0_105] : memref<16x16x32xf32, #tpu.memory_space<vmem>>, vector<1x16x32xf32>
    %169 = vector.shape_cast %168 : vector<1x16x32xf32> to vector<16x32xf32>
    %cst_106 = arith.constant dense<0.000000e+00> : vector<14x32xf32>
    %170 = tpu.matmul %167, %169, %cst_106 {dimension_numbers = #tpu.dot_dimension_numbers<[1], [0], [0], [1], [0, 0, 1, 1], [], []>} : vector<14x16xf32>, vector<16x32xf32>, vector<14x32xf32> -> vector<14x32xf32>
    %171 = arith.addf %164, %170 : vector<14x32xf32>
    %172 = vector.extract_strided_slice %166 {offsets = [1, 0], sizes = [14, 16], strides = [1, 1]} : vector<18x16xf32> to vector<14x16xf32>
    %c13_107 = arith.constant 13 : index
    %c0_108 = arith.constant 0 : index
    %c0_109 = arith.constant 0 : index
    %173 = vector.load %arg3[%c13_107, %c0_108, %c0_109] : memref<16x16x32xf32, #tpu.memory_space<vmem>>, vector<1x16x32xf32>
    %174 = vector.shape_cast %173 : vector<1x16x32xf32> to vector<16x32xf32>
    %cst_110 = arith.constant dense<0.000000e+00> : vector<14x32xf32>
    %175 = tpu.matmul %172, %174, %cst_110 {dimension_numbers = #tpu.dot_dimension_numbers<[1], [0], [0], [1], [0, 0, 1, 1], [], []>} : vector<14x16xf32>, vector<16x32xf32>, vector<14x32xf32> -> vector<14x32xf32>
    %176 = arith.addf %171, %175 : vector<14x32xf32>
    %177 = vector.extract_strided_slice %166 {offsets = [2, 0], sizes = [14, 16], strides = [1, 1]} : vector<18x16xf32> to vector<14x16xf32>
    %c14_111 = arith.constant 14 : index
    %c0_112 = arith.constant 0 : index
    %c0_113 = arith.constant 0 : index
    %178 = vector.load %arg3[%c14_111, %c0_112, %c0_113] : memref<16x16x32xf32, #tpu.memory_space<vmem>>, vector<1x16x32xf32>
    %179 = vector.shape_cast %178 : vector<1x16x32xf32> to vector<16x32xf32>
    %cst_114 = arith.constant dense<0.000000e+00> : vector<14x32xf32>
    %180 = tpu.matmul %177, %179, %cst_114 {dimension_numbers = #tpu.dot_dimension_numbers<[1], [0], [0], [1], [0, 0, 1, 1], [], []>} : vector<14x16xf32>, vector<16x32xf32>, vector<14x32xf32> -> vector<14x32xf32>
    %181 = arith.addf %176, %180 : vector<14x32xf32>
    %182 = vector.extract_strided_slice %166 {offsets = [3, 0], sizes = [14, 16], strides = [1, 1]} : vector<18x16xf32> to vector<14x16xf32>
    %c15_115 = arith.constant 15 : index
    %c0_116 = arith.constant 0 : index
    %c0_117 = arith.constant 0 : index
    %183 = vector.load %arg3[%c15_115, %c0_116, %c0_117] : memref<16x16x32xf32, #tpu.memory_space<vmem>>, vector<1x16x32xf32>
    %184 = vector.shape_cast %183 : vector<1x16x32xf32> to vector<16x32xf32>
    %cst_118 = arith.constant dense<0.000000e+00> : vector<14x32xf32>
    %185 = tpu.matmul %182, %184, %cst_118 {dimension_numbers = #tpu.dot_dimension_numbers<[1], [0], [0], [1], [0, 0, 1, 1], [], []>} : vector<14x16xf32>, vector<16x32xf32>, vector<14x32xf32> -> vector<14x32xf32>
    %186 = arith.addf %181, %185 : vector<14x32xf32>
    %187 = vector.broadcast %4 : vector<1x32xf32> to vector<14x32xf32>
    %188 = arith.addf %186, %187 : vector<14x32xf32>
    %cst_119 = arith.constant 0.000000e+00 : f32
    %189 = vector.broadcast %cst_119 : f32 to vector<14x32xf32>
    %190 = arith.maximumf %188, %189 : vector<14x32xf32>
    %191 = arith.maximumf %97, %190 : vector<14x32xf32>
    %192 = vector.extract_strided_slice %191 {offsets = [0, 0], sizes = [2, 32], strides = [1, 1]} : vector<14x32xf32> to vector<2x32xf32>
    %cst_120 = arith.constant dense<0xFF800000> : vector<32xf32>
    %193 = vector.multi_reduction <maximumf>, %192, %cst_120 [0] : vector<2x32xf32> to vector<32xf32>
    %194 = vector.shape_cast %193 : vector<32xf32> to vector<1x32xf32>
    %195 = vector.extract_strided_slice %191 {offsets = [2, 0], sizes = [2, 32], strides = [1, 1]} : vector<14x32xf32> to vector<2x32xf32>
    %cst_121 = arith.constant dense<0xFF800000> : vector<32xf32>
    %196 = vector.multi_reduction <maximumf>, %195, %cst_121 [0] : vector<2x32xf32> to vector<32xf32>
    %197 = vector.shape_cast %196 : vector<32xf32> to vector<1x32xf32>
    %198 = vector.extract_strided_slice %191 {offsets = [4, 0], sizes = [2, 32], strides = [1, 1]} : vector<14x32xf32> to vector<2x32xf32>
    %cst_122 = arith.constant dense<0xFF800000> : vector<32xf32>
    %199 = vector.multi_reduction <maximumf>, %198, %cst_122 [0] : vector<2x32xf32> to vector<32xf32>
    %200 = vector.shape_cast %199 : vector<32xf32> to vector<1x32xf32>
    %201 = vector.extract_strided_slice %191 {offsets = [6, 0], sizes = [2, 32], strides = [1, 1]} : vector<14x32xf32> to vector<2x32xf32>
    %cst_123 = arith.constant dense<0xFF800000> : vector<32xf32>
    %202 = vector.multi_reduction <maximumf>, %201, %cst_123 [0] : vector<2x32xf32> to vector<32xf32>
    %203 = vector.shape_cast %202 : vector<32xf32> to vector<1x32xf32>
    %204 = vector.extract_strided_slice %191 {offsets = [8, 0], sizes = [2, 32], strides = [1, 1]} : vector<14x32xf32> to vector<2x32xf32>
    %cst_124 = arith.constant dense<0xFF800000> : vector<32xf32>
    %205 = vector.multi_reduction <maximumf>, %204, %cst_124 [0] : vector<2x32xf32> to vector<32xf32>
    %206 = vector.shape_cast %205 : vector<32xf32> to vector<1x32xf32>
    %207 = vector.extract_strided_slice %191 {offsets = [10, 0], sizes = [2, 32], strides = [1, 1]} : vector<14x32xf32> to vector<2x32xf32>
    %cst_125 = arith.constant dense<0xFF800000> : vector<32xf32>
    %208 = vector.multi_reduction <maximumf>, %207, %cst_125 [0] : vector<2x32xf32> to vector<32xf32>
    %209 = vector.shape_cast %208 : vector<32xf32> to vector<1x32xf32>
    %210 = vector.extract_strided_slice %191 {offsets = [12, 0], sizes = [2, 32], strides = [1, 1]} : vector<14x32xf32> to vector<2x32xf32>
    %cst_126 = arith.constant dense<0xFF800000> : vector<32xf32>
    %211 = vector.multi_reduction <maximumf>, %210, %cst_126 [0] : vector<2x32xf32> to vector<32xf32>
    %212 = vector.shape_cast %211 : vector<32xf32> to vector<1x32xf32>
    %213 = tpu.concatenate %194, %197, %200, %203, %206, %209, %212 in 0 : vector<1x32xf32>, vector<1x32xf32>, vector<1x32xf32>, vector<1x32xf32>, vector<1x32xf32>, vector<1x32xf32>, vector<1x32xf32> -> vector<7x32xf32>
    %c0_127 = arith.constant 0 : index
    %c0_128 = arith.constant 0 : index
    %c0_129 = arith.constant 0 : index
    %c0_130 = arith.constant 0 : index
    %214 = vector.load %arg5[%c0_127, %c0_128, %c0_129, %c0_130] : memref<1x1x7x32xf32, #tpu.memory_space<vmem>>, vector<1x1x7x32xf32>
    %215 = vector.shape_cast %214 : vector<1x1x7x32xf32> to vector<7x32xf32>
    %216 = vector.shape_cast %213 : vector<7x32xf32> to vector<1x1x7x32xf32>
    tpu.vector_store %arg5[%c0_127, %c0_128, %c0_129, %c0_130], %216 {strides = array<i32>} : memref<1x1x7x32xf32, #tpu.memory_space<vmem>>, vector<1x1x7x32xf32>,
    return
  }
  func.func @transform_0(%arg0: i32, %arg1: i32) -> (i32, i32, i32, i32) {
    %c0_i32 = arith.constant 0 : i32
    %c0_i32_0 = arith.constant 0 : i32
    %c0_i32_1 = arith.constant 0 : i32
    %c0_i32_2 = arith.constant 0 : i32
    return %arg0, %c0_i32, %c0_i32_0, %c0_i32_1 : i32, i32, i32, i32
  }
  func.func @transform_1(%arg0: i32, %arg1: i32) -> (i32, i32, i32) {
    %c0_i32 = arith.constant 0 : i32
    %c0_i32_0 = arith.constant 0 : i32
    %c0_i32_1 = arith.constant 0 : i32
    %c0_i32_2 = arith.constant 0 : i32
    return %c0_i32, %c0_i32_0, %c0_i32_1 : i32, i32, i32
  }
  func.func @transform_2(%arg0: i32, %arg1: i32) -> (i32, i32) {
    %c0_i32 = arith.constant 0 : i32
    %c0_i32_0 = arith.constant 0 : i32
    %c0_i32_1 = arith.constant 0 : i32
    return %c0_i32, %c0_i32_0 : i32, i32
  }
  func.func @transform_3(%arg0: i32, %arg1: i32) -> (i32, i32, i32, i32) {
    %c0_i32 = arith.constant 0 : i32
    %c0_i32_0 = arith.constant 0 : i32
    %c0_i32_1 = arith.constant 0 : i32
    return %arg0, %arg1, %c0_i32, %c0_i32_0 : i32, i32, i32, i32
  }
}

module attributes {stable_mosaic.version = 11 : i64} {
  func.func @_conv_relu_pool_kernel(%arg0: i32, %arg1: i32, %arg2: memref<1x11x11x32xf32, #tpu.memory_space<vmem>>, %arg3: memref<16x32x64xf32, #tpu.memory_space<vmem>>, %arg4: memref<1x64xf32, #tpu.memory_space<vmem>>, %arg5: memref<1x1x4x64xf32, #tpu.memory_space<vmem>>) attributes {dimension_semantics = [#tpu.dimension_semantics<parallel>, #tpu.dimension_semantics<arbitrary>], iteration_bounds = array<i64: 2, 4>, scalar_prefetch = 0 : i64, scratch_operands = 0 : i64, tpu.core_type = #tpu.core_type<tc>, window_params = [{transform_indices = @transform_0, window_bounds = array<i64: 1, 11, 11, 32>}, {pipeline_mode = #tpu.pipeline_mode<synchronous>, transform_indices = @transform_1, window_bounds = array<i64: 16, 32, 64>}, {pipeline_mode = #tpu.pipeline_mode<synchronous>, transform_indices = @transform_2, window_bounds = array<i64: 1, 64>}, {transform_indices = @transform_3, window_bounds = array<i64: 1, 1, 4, 64>}]} {
    %c2_i32 = arith.constant 2 : i32
    %0 = arith.muli %c2_i32, %arg1 : i32
    %c0 = arith.constant 0 : index
    %1 = arith.index_cast %0 : i32 to index
    %c0_0 = arith.constant 0 : index
    %c0_1 = arith.constant 0 : index
    %2 = vector.load %arg2[%c0, %1, %c0_0, %c0_1] : memref<1x11x11x32xf32, #tpu.memory_space<vmem>>, vector<1x5x11x32xf32>
    %3 = vector.shape_cast %2 : vector<1x5x11x32xf32> to vector<5x11x32xf32>
    %c0_2 = arith.constant 0 : index
    %c0_3 = arith.constant 0 : index
    %4 = vector.load %arg4[%c0_2, %c0_3] : memref<1x64xf32, #tpu.memory_space<vmem>>, vector<1x64xf32>
    %cst = arith.constant 0.000000e+00 : f32
    %5 = vector.broadcast %cst : f32 to vector<8x64xf32>
    %6 = vector.extract_strided_slice %3 {offsets = [0, 0, 0], sizes = [1, 11, 32], strides = [1, 1, 1]} : vector<5x11x32xf32> to vector<1x11x32xf32>
    %7 = vector.shape_cast %6 : vector<1x11x32xf32> to vector<11x32xf32>
    %8 = vector.extract_strided_slice %7 {offsets = [0, 0], sizes = [8, 32], strides = [1, 1]} : vector<11x32xf32> to vector<8x32xf32>
    %c0_4 = arith.constant 0 : index
    %c0_5 = arith.constant 0 : index
    %c0_6 = arith.constant 0 : index
    %9 = vector.load %arg3[%c0_4, %c0_5, %c0_6] : memref<16x32x64xf32, #tpu.memory_space<vmem>>, vector<1x32x64xf32>
    %10 = vector.shape_cast %9 : vector<1x32x64xf32> to vector<32x64xf32>
    %cst_7 = arith.constant dense<0.000000e+00> : vector<8x64xf32>
    %11 = tpu.matmul %8, %10, %cst_7 {dimension_numbers = #tpu.dot_dimension_numbers<[1], [0], [0], [1], [0, 0, 1, 1], [], []>} : vector<8x32xf32>, vector<32x64xf32>, vector<8x64xf32> -> vector<8x64xf32>
    %12 = arith.addf %5, %11 : vector<8x64xf32>
    %13 = vector.extract_strided_slice %7 {offsets = [1, 0], sizes = [8, 32], strides = [1, 1]} : vector<11x32xf32> to vector<8x32xf32>
    %c1 = arith.constant 1 : index
    %c0_8 = arith.constant 0 : index
    %c0_9 = arith.constant 0 : index
    %14 = vector.load %arg3[%c1, %c0_8, %c0_9] : memref<16x32x64xf32, #tpu.memory_space<vmem>>, vector<1x32x64xf32>
    %15 = vector.shape_cast %14 : vector<1x32x64xf32> to vector<32x64xf32>
    %cst_10 = arith.constant dense<0.000000e+00> : vector<8x64xf32>
    %16 = tpu.matmul %13, %15, %cst_10 {dimension_numbers = #tpu.dot_dimension_numbers<[1], [0], [0], [1], [0, 0, 1, 1], [], []>} : vector<8x32xf32>, vector<32x64xf32>, vector<8x64xf32> -> vector<8x64xf32>
    %17 = arith.addf %12, %16 : vector<8x64xf32>
    %18 = vector.extract_strided_slice %7 {offsets = [2, 0], sizes = [8, 32], strides = [1, 1]} : vector<11x32xf32> to vector<8x32xf32>
    %c2 = arith.constant 2 : index
    %c0_11 = arith.constant 0 : index
    %c0_12 = arith.constant 0 : index
    %19 = vector.load %arg3[%c2, %c0_11, %c0_12] : memref<16x32x64xf32, #tpu.memory_space<vmem>>, vector<1x32x64xf32>
    %20 = vector.shape_cast %19 : vector<1x32x64xf32> to vector<32x64xf32>
    %cst_13 = arith.constant dense<0.000000e+00> : vector<8x64xf32>
    %21 = tpu.matmul %18, %20, %cst_13 {dimension_numbers = #tpu.dot_dimension_numbers<[1], [0], [0], [1], [0, 0, 1, 1], [], []>} : vector<8x32xf32>, vector<32x64xf32>, vector<8x64xf32> -> vector<8x64xf32>
    %22 = arith.addf %17, %21 : vector<8x64xf32>
    %23 = vector.extract_strided_slice %7 {offsets = [3, 0], sizes = [8, 32], strides = [1, 1]} : vector<11x32xf32> to vector<8x32xf32>
    %c3 = arith.constant 3 : index
    %c0_14 = arith.constant 0 : index
    %c0_15 = arith.constant 0 : index
    %24 = vector.load %arg3[%c3, %c0_14, %c0_15] : memref<16x32x64xf32, #tpu.memory_space<vmem>>, vector<1x32x64xf32>
    %25 = vector.shape_cast %24 : vector<1x32x64xf32> to vector<32x64xf32>
    %cst_16 = arith.constant dense<0.000000e+00> : vector<8x64xf32>
    %26 = tpu.matmul %23, %25, %cst_16 {dimension_numbers = #tpu.dot_dimension_numbers<[1], [0], [0], [1], [0, 0, 1, 1], [], []>} : vector<8x32xf32>, vector<32x64xf32>, vector<8x64xf32> -> vector<8x64xf32>
    %27 = arith.addf %22, %26 : vector<8x64xf32>
    %28 = vector.extract_strided_slice %3 {offsets = [1, 0, 0], sizes = [1, 11, 32], strides = [1, 1, 1]} : vector<5x11x32xf32> to vector<1x11x32xf32>
    %29 = vector.shape_cast %28 : vector<1x11x32xf32> to vector<11x32xf32>
    %30 = vector.extract_strided_slice %29 {offsets = [0, 0], sizes = [8, 32], strides = [1, 1]} : vector<11x32xf32> to vector<8x32xf32>
    %c4 = arith.constant 4 : index
    %c0_17 = arith.constant 0 : index
    %c0_18 = arith.constant 0 : index
    %31 = vector.load %arg3[%c4, %c0_17, %c0_18] : memref<16x32x64xf32, #tpu.memory_space<vmem>>, vector<1x32x64xf32>
    %32 = vector.shape_cast %31 : vector<1x32x64xf32> to vector<32x64xf32>
    %cst_19 = arith.constant dense<0.000000e+00> : vector<8x64xf32>
    %33 = tpu.matmul %30, %32, %cst_19 {dimension_numbers = #tpu.dot_dimension_numbers<[1], [0], [0], [1], [0, 0, 1, 1], [], []>} : vector<8x32xf32>, vector<32x64xf32>, vector<8x64xf32> -> vector<8x64xf32>
    %34 = arith.addf %27, %33 : vector<8x64xf32>
    %35 = vector.extract_strided_slice %29 {offsets = [1, 0], sizes = [8, 32], strides = [1, 1]} : vector<11x32xf32> to vector<8x32xf32>
    %c5 = arith.constant 5 : index
    %c0_20 = arith.constant 0 : index
    %c0_21 = arith.constant 0 : index
    %36 = vector.load %arg3[%c5, %c0_20, %c0_21] : memref<16x32x64xf32, #tpu.memory_space<vmem>>, vector<1x32x64xf32>
    %37 = vector.shape_cast %36 : vector<1x32x64xf32> to vector<32x64xf32>
    %cst_22 = arith.constant dense<0.000000e+00> : vector<8x64xf32>
    %38 = tpu.matmul %35, %37, %cst_22 {dimension_numbers = #tpu.dot_dimension_numbers<[1], [0], [0], [1], [0, 0, 1, 1], [], []>} : vector<8x32xf32>, vector<32x64xf32>, vector<8x64xf32> -> vector<8x64xf32>
    %39 = arith.addf %34, %38 : vector<8x64xf32>
    %40 = vector.extract_strided_slice %29 {offsets = [2, 0], sizes = [8, 32], strides = [1, 1]} : vector<11x32xf32> to vector<8x32xf32>
    %c6 = arith.constant 6 : index
    %c0_23 = arith.constant 0 : index
    %c0_24 = arith.constant 0 : index
    %41 = vector.load %arg3[%c6, %c0_23, %c0_24] : memref<16x32x64xf32, #tpu.memory_space<vmem>>, vector<1x32x64xf32>
    %42 = vector.shape_cast %41 : vector<1x32x64xf32> to vector<32x64xf32>
    %cst_25 = arith.constant dense<0.000000e+00> : vector<8x64xf32>
    %43 = tpu.matmul %40, %42, %cst_25 {dimension_numbers = #tpu.dot_dimension_numbers<[1], [0], [0], [1], [0, 0, 1, 1], [], []>} : vector<8x32xf32>, vector<32x64xf32>, vector<8x64xf32> -> vector<8x64xf32>
    %44 = arith.addf %39, %43 : vector<8x64xf32>
    %45 = vector.extract_strided_slice %29 {offsets = [3, 0], sizes = [8, 32], strides = [1, 1]} : vector<11x32xf32> to vector<8x32xf32>
    %c7 = arith.constant 7 : index
    %c0_26 = arith.constant 0 : index
    %c0_27 = arith.constant 0 : index
    %46 = vector.load %arg3[%c7, %c0_26, %c0_27] : memref<16x32x64xf32, #tpu.memory_space<vmem>>, vector<1x32x64xf32>
    %47 = vector.shape_cast %46 : vector<1x32x64xf32> to vector<32x64xf32>
    %cst_28 = arith.constant dense<0.000000e+00> : vector<8x64xf32>
    %48 = tpu.matmul %45, %47, %cst_28 {dimension_numbers = #tpu.dot_dimension_numbers<[1], [0], [0], [1], [0, 0, 1, 1], [], []>} : vector<8x32xf32>, vector<32x64xf32>, vector<8x64xf32> -> vector<8x64xf32>
    %49 = arith.addf %44, %48 : vector<8x64xf32>
    %50 = vector.extract_strided_slice %3 {offsets = [2, 0, 0], sizes = [1, 11, 32], strides = [1, 1, 1]} : vector<5x11x32xf32> to vector<1x11x32xf32>
    %51 = vector.shape_cast %50 : vector<1x11x32xf32> to vector<11x32xf32>
    %52 = vector.extract_strided_slice %51 {offsets = [0, 0], sizes = [8, 32], strides = [1, 1]} : vector<11x32xf32> to vector<8x32xf32>
    %c8 = arith.constant 8 : index
    %c0_29 = arith.constant 0 : index
    %c0_30 = arith.constant 0 : index
    %53 = vector.load %arg3[%c8, %c0_29, %c0_30] : memref<16x32x64xf32, #tpu.memory_space<vmem>>, vector<1x32x64xf32>
    %54 = vector.shape_cast %53 : vector<1x32x64xf32> to vector<32x64xf32>
    %cst_31 = arith.constant dense<0.000000e+00> : vector<8x64xf32>
    %55 = tpu.matmul %52, %54, %cst_31 {dimension_numbers = #tpu.dot_dimension_numbers<[1], [0], [0], [1], [0, 0, 1, 1], [], []>} : vector<8x32xf32>, vector<32x64xf32>, vector<8x64xf32> -> vector<8x64xf32>
    %56 = arith.addf %49, %55 : vector<8x64xf32>
    %57 = vector.extract_strided_slice %51 {offsets = [1, 0], sizes = [8, 32], strides = [1, 1]} : vector<11x32xf32> to vector<8x32xf32>
    %c9 = arith.constant 9 : index
    %c0_32 = arith.constant 0 : index
    %c0_33 = arith.constant 0 : index
    %58 = vector.load %arg3[%c9, %c0_32, %c0_33] : memref<16x32x64xf32, #tpu.memory_space<vmem>>, vector<1x32x64xf32>
    %59 = vector.shape_cast %58 : vector<1x32x64xf32> to vector<32x64xf32>
    %cst_34 = arith.constant dense<0.000000e+00> : vector<8x64xf32>
    %60 = tpu.matmul %57, %59, %cst_34 {dimension_numbers = #tpu.dot_dimension_numbers<[1], [0], [0], [1], [0, 0, 1, 1], [], []>} : vector<8x32xf32>, vector<32x64xf32>, vector<8x64xf32> -> vector<8x64xf32>
    %61 = arith.addf %56, %60 : vector<8x64xf32>
    %62 = vector.extract_strided_slice %51 {offsets = [2, 0], sizes = [8, 32], strides = [1, 1]} : vector<11x32xf32> to vector<8x32xf32>
    %c10 = arith.constant 10 : index
    %c0_35 = arith.constant 0 : index
    %c0_36 = arith.constant 0 : index
    %63 = vector.load %arg3[%c10, %c0_35, %c0_36] : memref<16x32x64xf32, #tpu.memory_space<vmem>>, vector<1x32x64xf32>
    %64 = vector.shape_cast %63 : vector<1x32x64xf32> to vector<32x64xf32>
    %cst_37 = arith.constant dense<0.000000e+00> : vector<8x64xf32>
    %65 = tpu.matmul %62, %64, %cst_37 {dimension_numbers = #tpu.dot_dimension_numbers<[1], [0], [0], [1], [0, 0, 1, 1], [], []>} : vector<8x32xf32>, vector<32x64xf32>, vector<8x64xf32> -> vector<8x64xf32>
    %66 = arith.addf %61, %65 : vector<8x64xf32>
    %67 = vector.extract_strided_slice %51 {offsets = [3, 0], sizes = [8, 32], strides = [1, 1]} : vector<11x32xf32> to vector<8x32xf32>
    %c11 = arith.constant 11 : index
    %c0_38 = arith.constant 0 : index
    %c0_39 = arith.constant 0 : index
    %68 = vector.load %arg3[%c11, %c0_38, %c0_39] : memref<16x32x64xf32, #tpu.memory_space<vmem>>, vector<1x32x64xf32>
    %69 = vector.shape_cast %68 : vector<1x32x64xf32> to vector<32x64xf32>
    %cst_40 = arith.constant dense<0.000000e+00> : vector<8x64xf32>
    %70 = tpu.matmul %67, %69, %cst_40 {dimension_numbers = #tpu.dot_dimension_numbers<[1], [0], [0], [1], [0, 0, 1, 1], [], []>} : vector<8x32xf32>, vector<32x64xf32>, vector<8x64xf32> -> vector<8x64xf32>
    %71 = arith.addf %66, %70 : vector<8x64xf32>
    %72 = vector.extract_strided_slice %3 {offsets = [3, 0, 0], sizes = [1, 11, 32], strides = [1, 1, 1]} : vector<5x11x32xf32> to vector<1x11x32xf32>
    %73 = vector.shape_cast %72 : vector<1x11x32xf32> to vector<11x32xf32>
    %74 = vector.extract_strided_slice %73 {offsets = [0, 0], sizes = [8, 32], strides = [1, 1]} : vector<11x32xf32> to vector<8x32xf32>
    %c12 = arith.constant 12 : index
    %c0_41 = arith.constant 0 : index
    %c0_42 = arith.constant 0 : index
    %75 = vector.load %arg3[%c12, %c0_41, %c0_42] : memref<16x32x64xf32, #tpu.memory_space<vmem>>, vector<1x32x64xf32>
    %76 = vector.shape_cast %75 : vector<1x32x64xf32> to vector<32x64xf32>
    %cst_43 = arith.constant dense<0.000000e+00> : vector<8x64xf32>
    %77 = tpu.matmul %74, %76, %cst_43 {dimension_numbers = #tpu.dot_dimension_numbers<[1], [0], [0], [1], [0, 0, 1, 1], [], []>} : vector<8x32xf32>, vector<32x64xf32>, vector<8x64xf32> -> vector<8x64xf32>
    %78 = arith.addf %71, %77 : vector<8x64xf32>
    %79 = vector.extract_strided_slice %73 {offsets = [1, 0], sizes = [8, 32], strides = [1, 1]} : vector<11x32xf32> to vector<8x32xf32>
    %c13 = arith.constant 13 : index
    %c0_44 = arith.constant 0 : index
    %c0_45 = arith.constant 0 : index
    %80 = vector.load %arg3[%c13, %c0_44, %c0_45] : memref<16x32x64xf32, #tpu.memory_space<vmem>>, vector<1x32x64xf32>
    %81 = vector.shape_cast %80 : vector<1x32x64xf32> to vector<32x64xf32>
    %cst_46 = arith.constant dense<0.000000e+00> : vector<8x64xf32>
    %82 = tpu.matmul %79, %81, %cst_46 {dimension_numbers = #tpu.dot_dimension_numbers<[1], [0], [0], [1], [0, 0, 1, 1], [], []>} : vector<8x32xf32>, vector<32x64xf32>, vector<8x64xf32> -> vector<8x64xf32>
    %83 = arith.addf %78, %82 : vector<8x64xf32>
    %84 = vector.extract_strided_slice %73 {offsets = [2, 0], sizes = [8, 32], strides = [1, 1]} : vector<11x32xf32> to vector<8x32xf32>
    %c14 = arith.constant 14 : index
    %c0_47 = arith.constant 0 : index
    %c0_48 = arith.constant 0 : index
    %85 = vector.load %arg3[%c14, %c0_47, %c0_48] : memref<16x32x64xf32, #tpu.memory_space<vmem>>, vector<1x32x64xf32>
    %86 = vector.shape_cast %85 : vector<1x32x64xf32> to vector<32x64xf32>
    %cst_49 = arith.constant dense<0.000000e+00> : vector<8x64xf32>
    %87 = tpu.matmul %84, %86, %cst_49 {dimension_numbers = #tpu.dot_dimension_numbers<[1], [0], [0], [1], [0, 0, 1, 1], [], []>} : vector<8x32xf32>, vector<32x64xf32>, vector<8x64xf32> -> vector<8x64xf32>
    %88 = arith.addf %83, %87 : vector<8x64xf32>
    %89 = vector.extract_strided_slice %73 {offsets = [3, 0], sizes = [8, 32], strides = [1, 1]} : vector<11x32xf32> to vector<8x32xf32>
    %c15 = arith.constant 15 : index
    %c0_50 = arith.constant 0 : index
    %c0_51 = arith.constant 0 : index
    %90 = vector.load %arg3[%c15, %c0_50, %c0_51] : memref<16x32x64xf32, #tpu.memory_space<vmem>>, vector<1x32x64xf32>
    %91 = vector.shape_cast %90 : vector<1x32x64xf32> to vector<32x64xf32>
    %cst_52 = arith.constant dense<0.000000e+00> : vector<8x64xf32>
    %92 = tpu.matmul %89, %91, %cst_52 {dimension_numbers = #tpu.dot_dimension_numbers<[1], [0], [0], [1], [0, 0, 1, 1], [], []>} : vector<8x32xf32>, vector<32x64xf32>, vector<8x64xf32> -> vector<8x64xf32>
    %93 = arith.addf %88, %92 : vector<8x64xf32>
    %94 = vector.broadcast %4 : vector<1x64xf32> to vector<8x64xf32>
    %95 = arith.addf %93, %94 : vector<8x64xf32>
    %cst_53 = arith.constant 0.000000e+00 : f32
    %96 = vector.broadcast %cst_53 : f32 to vector<8x64xf32>
    %97 = arith.maximumf %95, %96 : vector<8x64xf32>
    %cst_54 = arith.constant 0.000000e+00 : f32
    %98 = vector.broadcast %cst_54 : f32 to vector<8x64xf32>
    %99 = vector.extract_strided_slice %3 {offsets = [1, 0, 0], sizes = [1, 11, 32], strides = [1, 1, 1]} : vector<5x11x32xf32> to vector<1x11x32xf32>
    %100 = vector.shape_cast %99 : vector<1x11x32xf32> to vector<11x32xf32>
    %101 = vector.extract_strided_slice %100 {offsets = [0, 0], sizes = [8, 32], strides = [1, 1]} : vector<11x32xf32> to vector<8x32xf32>
    %c0_55 = arith.constant 0 : index
    %c0_56 = arith.constant 0 : index
    %c0_57 = arith.constant 0 : index
    %102 = vector.load %arg3[%c0_55, %c0_56, %c0_57] : memref<16x32x64xf32, #tpu.memory_space<vmem>>, vector<1x32x64xf32>
    %103 = vector.shape_cast %102 : vector<1x32x64xf32> to vector<32x64xf32>
    %cst_58 = arith.constant dense<0.000000e+00> : vector<8x64xf32>
    %104 = tpu.matmul %101, %103, %cst_58 {dimension_numbers = #tpu.dot_dimension_numbers<[1], [0], [0], [1], [0, 0, 1, 1], [], []>} : vector<8x32xf32>, vector<32x64xf32>, vector<8x64xf32> -> vector<8x64xf32>
    %105 = arith.addf %98, %104 : vector<8x64xf32>
    %106 = vector.extract_strided_slice %100 {offsets = [1, 0], sizes = [8, 32], strides = [1, 1]} : vector<11x32xf32> to vector<8x32xf32>
    %c1_59 = arith.constant 1 : index
    %c0_60 = arith.constant 0 : index
    %c0_61 = arith.constant 0 : index
    %107 = vector.load %arg3[%c1_59, %c0_60, %c0_61] : memref<16x32x64xf32, #tpu.memory_space<vmem>>, vector<1x32x64xf32>
    %108 = vector.shape_cast %107 : vector<1x32x64xf32> to vector<32x64xf32>
    %cst_62 = arith.constant dense<0.000000e+00> : vector<8x64xf32>
    %109 = tpu.matmul %106, %108, %cst_62 {dimension_numbers = #tpu.dot_dimension_numbers<[1], [0], [0], [1], [0, 0, 1, 1], [], []>} : vector<8x32xf32>, vector<32x64xf32>, vector<8x64xf32> -> vector<8x64xf32>
    %110 = arith.addf %105, %109 : vector<8x64xf32>
    %111 = vector.extract_strided_slice %100 {offsets = [2, 0], sizes = [8, 32], strides = [1, 1]} : vector<11x32xf32> to vector<8x32xf32>
    %c2_63 = arith.constant 2 : index
    %c0_64 = arith.constant 0 : index
    %c0_65 = arith.constant 0 : index
    %112 = vector.load %arg3[%c2_63, %c0_64, %c0_65] : memref<16x32x64xf32, #tpu.memory_space<vmem>>, vector<1x32x64xf32>
    %113 = vector.shape_cast %112 : vector<1x32x64xf32> to vector<32x64xf32>
    %cst_66 = arith.constant dense<0.000000e+00> : vector<8x64xf32>
    %114 = tpu.matmul %111, %113, %cst_66 {dimension_numbers = #tpu.dot_dimension_numbers<[1], [0], [0], [1], [0, 0, 1, 1], [], []>} : vector<8x32xf32>, vector<32x64xf32>, vector<8x64xf32> -> vector<8x64xf32>
    %115 = arith.addf %110, %114 : vector<8x64xf32>
    %116 = vector.extract_strided_slice %100 {offsets = [3, 0], sizes = [8, 32], strides = [1, 1]} : vector<11x32xf32> to vector<8x32xf32>
    %c3_67 = arith.constant 3 : index
    %c0_68 = arith.constant 0 : index
    %c0_69 = arith.constant 0 : index
    %117 = vector.load %arg3[%c3_67, %c0_68, %c0_69] : memref<16x32x64xf32, #tpu.memory_space<vmem>>, vector<1x32x64xf32>
    %118 = vector.shape_cast %117 : vector<1x32x64xf32> to vector<32x64xf32>
    %cst_70 = arith.constant dense<0.000000e+00> : vector<8x64xf32>
    %119 = tpu.matmul %116, %118, %cst_70 {dimension_numbers = #tpu.dot_dimension_numbers<[1], [0], [0], [1], [0, 0, 1, 1], [], []>} : vector<8x32xf32>, vector<32x64xf32>, vector<8x64xf32> -> vector<8x64xf32>
    %120 = arith.addf %115, %119 : vector<8x64xf32>
    %121 = vector.extract_strided_slice %3 {offsets = [2, 0, 0], sizes = [1, 11, 32], strides = [1, 1, 1]} : vector<5x11x32xf32> to vector<1x11x32xf32>
    %122 = vector.shape_cast %121 : vector<1x11x32xf32> to vector<11x32xf32>
    %123 = vector.extract_strided_slice %122 {offsets = [0, 0], sizes = [8, 32], strides = [1, 1]} : vector<11x32xf32> to vector<8x32xf32>
    %c4_71 = arith.constant 4 : index
    %c0_72 = arith.constant 0 : index
    %c0_73 = arith.constant 0 : index
    %124 = vector.load %arg3[%c4_71, %c0_72, %c0_73] : memref<16x32x64xf32, #tpu.memory_space<vmem>>, vector<1x32x64xf32>
    %125 = vector.shape_cast %124 : vector<1x32x64xf32> to vector<32x64xf32>
    %cst_74 = arith.constant dense<0.000000e+00> : vector<8x64xf32>
    %126 = tpu.matmul %123, %125, %cst_74 {dimension_numbers = #tpu.dot_dimension_numbers<[1], [0], [0], [1], [0, 0, 1, 1], [], []>} : vector<8x32xf32>, vector<32x64xf32>, vector<8x64xf32> -> vector<8x64xf32>
    %127 = arith.addf %120, %126 : vector<8x64xf32>
    %128 = vector.extract_strided_slice %122 {offsets = [1, 0], sizes = [8, 32], strides = [1, 1]} : vector<11x32xf32> to vector<8x32xf32>
    %c5_75 = arith.constant 5 : index
    %c0_76 = arith.constant 0 : index
    %c0_77 = arith.constant 0 : index
    %129 = vector.load %arg3[%c5_75, %c0_76, %c0_77] : memref<16x32x64xf32, #tpu.memory_space<vmem>>, vector<1x32x64xf32>
    %130 = vector.shape_cast %129 : vector<1x32x64xf32> to vector<32x64xf32>
    %cst_78 = arith.constant dense<0.000000e+00> : vector<8x64xf32>
    %131 = tpu.matmul %128, %130, %cst_78 {dimension_numbers = #tpu.dot_dimension_numbers<[1], [0], [0], [1], [0, 0, 1, 1], [], []>} : vector<8x32xf32>, vector<32x64xf32>, vector<8x64xf32> -> vector<8x64xf32>
    %132 = arith.addf %127, %131 : vector<8x64xf32>
    %133 = vector.extract_strided_slice %122 {offsets = [2, 0], sizes = [8, 32], strides = [1, 1]} : vector<11x32xf32> to vector<8x32xf32>
    %c6_79 = arith.constant 6 : index
    %c0_80 = arith.constant 0 : index
    %c0_81 = arith.constant 0 : index
    %134 = vector.load %arg3[%c6_79, %c0_80, %c0_81] : memref<16x32x64xf32, #tpu.memory_space<vmem>>, vector<1x32x64xf32>
    %135 = vector.shape_cast %134 : vector<1x32x64xf32> to vector<32x64xf32>
    %cst_82 = arith.constant dense<0.000000e+00> : vector<8x64xf32>
    %136 = tpu.matmul %133, %135, %cst_82 {dimension_numbers = #tpu.dot_dimension_numbers<[1], [0], [0], [1], [0, 0, 1, 1], [], []>} : vector<8x32xf32>, vector<32x64xf32>, vector<8x64xf32> -> vector<8x64xf32>
    %137 = arith.addf %132, %136 : vector<8x64xf32>
    %138 = vector.extract_strided_slice %122 {offsets = [3, 0], sizes = [8, 32], strides = [1, 1]} : vector<11x32xf32> to vector<8x32xf32>
    %c7_83 = arith.constant 7 : index
    %c0_84 = arith.constant 0 : index
    %c0_85 = arith.constant 0 : index
    %139 = vector.load %arg3[%c7_83, %c0_84, %c0_85] : memref<16x32x64xf32, #tpu.memory_space<vmem>>, vector<1x32x64xf32>
    %140 = vector.shape_cast %139 : vector<1x32x64xf32> to vector<32x64xf32>
    %cst_86 = arith.constant dense<0.000000e+00> : vector<8x64xf32>
    %141 = tpu.matmul %138, %140, %cst_86 {dimension_numbers = #tpu.dot_dimension_numbers<[1], [0], [0], [1], [0, 0, 1, 1], [], []>} : vector<8x32xf32>, vector<32x64xf32>, vector<8x64xf32> -> vector<8x64xf32>
    %142 = arith.addf %137, %141 : vector<8x64xf32>
    %143 = vector.extract_strided_slice %3 {offsets = [3, 0, 0], sizes = [1, 11, 32], strides = [1, 1, 1]} : vector<5x11x32xf32> to vector<1x11x32xf32>
    %144 = vector.shape_cast %143 : vector<1x11x32xf32> to vector<11x32xf32>
    %145 = vector.extract_strided_slice %144 {offsets = [0, 0], sizes = [8, 32], strides = [1, 1]} : vector<11x32xf32> to vector<8x32xf32>
    %c8_87 = arith.constant 8 : index
    %c0_88 = arith.constant 0 : index
    %c0_89 = arith.constant 0 : index
    %146 = vector.load %arg3[%c8_87, %c0_88, %c0_89] : memref<16x32x64xf32, #tpu.memory_space<vmem>>, vector<1x32x64xf32>
    %147 = vector.shape_cast %146 : vector<1x32x64xf32> to vector<32x64xf32>
    %cst_90 = arith.constant dense<0.000000e+00> : vector<8x64xf32>
    %148 = tpu.matmul %145, %147, %cst_90 {dimension_numbers = #tpu.dot_dimension_numbers<[1], [0], [0], [1], [0, 0, 1, 1], [], []>} : vector<8x32xf32>, vector<32x64xf32>, vector<8x64xf32> -> vector<8x64xf32>
    %149 = arith.addf %142, %148 : vector<8x64xf32>
    %150 = vector.extract_strided_slice %144 {offsets = [1, 0], sizes = [8, 32], strides = [1, 1]} : vector<11x32xf32> to vector<8x32xf32>
    %c9_91 = arith.constant 9 : index
    %c0_92 = arith.constant 0 : index
    %c0_93 = arith.constant 0 : index
    %151 = vector.load %arg3[%c9_91, %c0_92, %c0_93] : memref<16x32x64xf32, #tpu.memory_space<vmem>>, vector<1x32x64xf32>
    %152 = vector.shape_cast %151 : vector<1x32x64xf32> to vector<32x64xf32>
    %cst_94 = arith.constant dense<0.000000e+00> : vector<8x64xf32>
    %153 = tpu.matmul %150, %152, %cst_94 {dimension_numbers = #tpu.dot_dimension_numbers<[1], [0], [0], [1], [0, 0, 1, 1], [], []>} : vector<8x32xf32>, vector<32x64xf32>, vector<8x64xf32> -> vector<8x64xf32>
    %154 = arith.addf %149, %153 : vector<8x64xf32>
    %155 = vector.extract_strided_slice %144 {offsets = [2, 0], sizes = [8, 32], strides = [1, 1]} : vector<11x32xf32> to vector<8x32xf32>
    %c10_95 = arith.constant 10 : index
    %c0_96 = arith.constant 0 : index
    %c0_97 = arith.constant 0 : index
    %156 = vector.load %arg3[%c10_95, %c0_96, %c0_97] : memref<16x32x64xf32, #tpu.memory_space<vmem>>, vector<1x32x64xf32>
    %157 = vector.shape_cast %156 : vector<1x32x64xf32> to vector<32x64xf32>
    %cst_98 = arith.constant dense<0.000000e+00> : vector<8x64xf32>
    %158 = tpu.matmul %155, %157, %cst_98 {dimension_numbers = #tpu.dot_dimension_numbers<[1], [0], [0], [1], [0, 0, 1, 1], [], []>} : vector<8x32xf32>, vector<32x64xf32>, vector<8x64xf32> -> vector<8x64xf32>
    %159 = arith.addf %154, %158 : vector<8x64xf32>
    %160 = vector.extract_strided_slice %144 {offsets = [3, 0], sizes = [8, 32], strides = [1, 1]} : vector<11x32xf32> to vector<8x32xf32>
    %c11_99 = arith.constant 11 : index
    %c0_100 = arith.constant 0 : index
    %c0_101 = arith.constant 0 : index
    %161 = vector.load %arg3[%c11_99, %c0_100, %c0_101] : memref<16x32x64xf32, #tpu.memory_space<vmem>>, vector<1x32x64xf32>
    %162 = vector.shape_cast %161 : vector<1x32x64xf32> to vector<32x64xf32>
    %cst_102 = arith.constant dense<0.000000e+00> : vector<8x64xf32>
    %163 = tpu.matmul %160, %162, %cst_102 {dimension_numbers = #tpu.dot_dimension_numbers<[1], [0], [0], [1], [0, 0, 1, 1], [], []>} : vector<8x32xf32>, vector<32x64xf32>, vector<8x64xf32> -> vector<8x64xf32>
    %164 = arith.addf %159, %163 : vector<8x64xf32>
    %165 = vector.extract_strided_slice %3 {offsets = [4, 0, 0], sizes = [1, 11, 32], strides = [1, 1, 1]} : vector<5x11x32xf32> to vector<1x11x32xf32>
    %166 = vector.shape_cast %165 : vector<1x11x32xf32> to vector<11x32xf32>
    %167 = vector.extract_strided_slice %166 {offsets = [0, 0], sizes = [8, 32], strides = [1, 1]} : vector<11x32xf32> to vector<8x32xf32>
    %c12_103 = arith.constant 12 : index
    %c0_104 = arith.constant 0 : index
    %c0_105 = arith.constant 0 : index
    %168 = vector.load %arg3[%c12_103, %c0_104, %c0_105] : memref<16x32x64xf32, #tpu.memory_space<vmem>>, vector<1x32x64xf32>
    %169 = vector.shape_cast %168 : vector<1x32x64xf32> to vector<32x64xf32>
    %cst_106 = arith.constant dense<0.000000e+00> : vector<8x64xf32>
    %170 = tpu.matmul %167, %169, %cst_106 {dimension_numbers = #tpu.dot_dimension_numbers<[1], [0], [0], [1], [0, 0, 1, 1], [], []>} : vector<8x32xf32>, vector<32x64xf32>, vector<8x64xf32> -> vector<8x64xf32>
    %171 = arith.addf %164, %170 : vector<8x64xf32>
    %172 = vector.extract_strided_slice %166 {offsets = [1, 0], sizes = [8, 32], strides = [1, 1]} : vector<11x32xf32> to vector<8x32xf32>
    %c13_107 = arith.constant 13 : index
    %c0_108 = arith.constant 0 : index
    %c0_109 = arith.constant 0 : index
    %173 = vector.load %arg3[%c13_107, %c0_108, %c0_109] : memref<16x32x64xf32, #tpu.memory_space<vmem>>, vector<1x32x64xf32>
    %174 = vector.shape_cast %173 : vector<1x32x64xf32> to vector<32x64xf32>
    %cst_110 = arith.constant dense<0.000000e+00> : vector<8x64xf32>
    %175 = tpu.matmul %172, %174, %cst_110 {dimension_numbers = #tpu.dot_dimension_numbers<[1], [0], [0], [1], [0, 0, 1, 1], [], []>} : vector<8x32xf32>, vector<32x64xf32>, vector<8x64xf32> -> vector<8x64xf32>
    %176 = arith.addf %171, %175 : vector<8x64xf32>
    %177 = vector.extract_strided_slice %166 {offsets = [2, 0], sizes = [8, 32], strides = [1, 1]} : vector<11x32xf32> to vector<8x32xf32>
    %c14_111 = arith.constant 14 : index
    %c0_112 = arith.constant 0 : index
    %c0_113 = arith.constant 0 : index
    %178 = vector.load %arg3[%c14_111, %c0_112, %c0_113] : memref<16x32x64xf32, #tpu.memory_space<vmem>>, vector<1x32x64xf32>
    %179 = vector.shape_cast %178 : vector<1x32x64xf32> to vector<32x64xf32>
    %cst_114 = arith.constant dense<0.000000e+00> : vector<8x64xf32>
    %180 = tpu.matmul %177, %179, %cst_114 {dimension_numbers = #tpu.dot_dimension_numbers<[1], [0], [0], [1], [0, 0, 1, 1], [], []>} : vector<8x32xf32>, vector<32x64xf32>, vector<8x64xf32> -> vector<8x64xf32>
    %181 = arith.addf %176, %180 : vector<8x64xf32>
    %182 = vector.extract_strided_slice %166 {offsets = [3, 0], sizes = [8, 32], strides = [1, 1]} : vector<11x32xf32> to vector<8x32xf32>
    %c15_115 = arith.constant 15 : index
    %c0_116 = arith.constant 0 : index
    %c0_117 = arith.constant 0 : index
    %183 = vector.load %arg3[%c15_115, %c0_116, %c0_117] : memref<16x32x64xf32, #tpu.memory_space<vmem>>, vector<1x32x64xf32>
    %184 = vector.shape_cast %183 : vector<1x32x64xf32> to vector<32x64xf32>
    %cst_118 = arith.constant dense<0.000000e+00> : vector<8x64xf32>
    %185 = tpu.matmul %182, %184, %cst_118 {dimension_numbers = #tpu.dot_dimension_numbers<[1], [0], [0], [1], [0, 0, 1, 1], [], []>} : vector<8x32xf32>, vector<32x64xf32>, vector<8x64xf32> -> vector<8x64xf32>
    %186 = arith.addf %181, %185 : vector<8x64xf32>
    %187 = vector.broadcast %4 : vector<1x64xf32> to vector<8x64xf32>
    %188 = arith.addf %186, %187 : vector<8x64xf32>
    %cst_119 = arith.constant 0.000000e+00 : f32
    %189 = vector.broadcast %cst_119 : f32 to vector<8x64xf32>
    %190 = arith.maximumf %188, %189 : vector<8x64xf32>
    %191 = arith.maximumf %97, %190 : vector<8x64xf32>
    %192 = vector.extract_strided_slice %191 {offsets = [0, 0], sizes = [2, 64], strides = [1, 1]} : vector<8x64xf32> to vector<2x64xf32>
    %cst_120 = arith.constant dense<0xFF800000> : vector<64xf32>
    %193 = vector.multi_reduction <maximumf>, %192, %cst_120 [0] : vector<2x64xf32> to vector<64xf32>
    %194 = vector.shape_cast %193 : vector<64xf32> to vector<1x64xf32>
    %195 = vector.extract_strided_slice %191 {offsets = [2, 0], sizes = [2, 64], strides = [1, 1]} : vector<8x64xf32> to vector<2x64xf32>
    %cst_121 = arith.constant dense<0xFF800000> : vector<64xf32>
    %196 = vector.multi_reduction <maximumf>, %195, %cst_121 [0] : vector<2x64xf32> to vector<64xf32>
    %197 = vector.shape_cast %196 : vector<64xf32> to vector<1x64xf32>
    %198 = vector.extract_strided_slice %191 {offsets = [4, 0], sizes = [2, 64], strides = [1, 1]} : vector<8x64xf32> to vector<2x64xf32>
    %cst_122 = arith.constant dense<0xFF800000> : vector<64xf32>
    %199 = vector.multi_reduction <maximumf>, %198, %cst_122 [0] : vector<2x64xf32> to vector<64xf32>
    %200 = vector.shape_cast %199 : vector<64xf32> to vector<1x64xf32>
    %201 = vector.extract_strided_slice %191 {offsets = [6, 0], sizes = [2, 64], strides = [1, 1]} : vector<8x64xf32> to vector<2x64xf32>
    %cst_123 = arith.constant dense<0xFF800000> : vector<64xf32>
    %202 = vector.multi_reduction <maximumf>, %201, %cst_123 [0] : vector<2x64xf32> to vector<64xf32>
    %203 = vector.shape_cast %202 : vector<64xf32> to vector<1x64xf32>
    %204 = tpu.concatenate %194, %197, %200, %203 in 0 : vector<1x64xf32>, vector<1x64xf32>, vector<1x64xf32>, vector<1x64xf32> -> vector<4x64xf32>
    %c0_124 = arith.constant 0 : index
    %c0_125 = arith.constant 0 : index
    %c0_126 = arith.constant 0 : index
    %c0_127 = arith.constant 0 : index
    %205 = vector.load %arg5[%c0_124, %c0_125, %c0_126, %c0_127] : memref<1x1x4x64xf32, #tpu.memory_space<vmem>>, vector<1x1x4x64xf32>
    %206 = vector.shape_cast %205 : vector<1x1x4x64xf32> to vector<4x64xf32>
    %207 = vector.shape_cast %204 : vector<4x64xf32> to vector<1x1x4x64xf32>
    tpu.vector_store %arg5[%c0_124, %c0_125, %c0_126, %c0_127], %207 {strides = array<i32>} : memref<1x1x4x64xf32, #tpu.memory_space<vmem>>, vector<1x1x4x64xf32>,
    return
  }
  func.func @transform_0(%arg0: i32, %arg1: i32) -> (i32, i32, i32, i32) {
    %c0_i32 = arith.constant 0 : i32
    %c0_i32_0 = arith.constant 0 : i32
    %c0_i32_1 = arith.constant 0 : i32
    %c0_i32_2 = arith.constant 0 : i32
    return %arg0, %c0_i32, %c0_i32_0, %c0_i32_1 : i32, i32, i32, i32
  }
  func.func @transform_1(%arg0: i32, %arg1: i32) -> (i32, i32, i32) {
    %c0_i32 = arith.constant 0 : i32
    %c0_i32_0 = arith.constant 0 : i32
    %c0_i32_1 = arith.constant 0 : i32
    %c0_i32_2 = arith.constant 0 : i32
    return %c0_i32, %c0_i32_0, %c0_i32_1 : i32, i32, i32
  }
  func.func @transform_2(%arg0: i32, %arg1: i32) -> (i32, i32) {
    %c0_i32 = arith.constant 0 : i32
    %c0_i32_0 = arith.constant 0 : i32
    %c0_i32_1 = arith.constant 0 : i32
    return %c0_i32, %c0_i32_0 : i32, i32
  }
  func.func @transform_3(%arg0: i32, %arg1: i32) -> (i32, i32, i32, i32) {
    %c0_i32 = arith.constant 0 : i32
    %c0_i32_0 = arith.constant 0 : i32
    %c0_i32_1 = arith.constant 0 : i32
    return %arg0, %arg1, %c0_i32, %c0_i32_0 : i32, i32, i32, i32
  }
}

module attributes {stable_mosaic.version = 11 : i64} {
  func.func @_mlp_softsign_kernel(%arg0: i32, %arg1: memref<8x1024xf32, #tpu.memory_space<vmem>>, %arg2: memref<1024x256xf32, #tpu.memory_space<vmem>>, %arg3: memref<1x256xf32, #tpu.memory_space<vmem>>, %arg4: memref<256x128xf32, #tpu.memory_space<vmem>>, %arg5: memref<1x128xf32, #tpu.memory_space<vmem>>, %arg6: memref<128x16xf32, #tpu.memory_space<vmem>>, %arg7: memref<1x16xf32, #tpu.memory_space<vmem>>, %arg8: memref<16x1xf32, #tpu.memory_space<vmem>>, %arg9: memref<1x1xf32, #tpu.memory_space<vmem>>, %arg10: memref<8x1xf32, #tpu.memory_space<vmem>>) attributes {dimension_semantics = [#tpu.dimension_semantics<parallel>], iteration_bounds = array<i64: 1>, scalar_prefetch = 0 : i64, scratch_operands = 0 : i64, tpu.core_type = #tpu.core_type<tc>, window_params = [{transform_indices = @transform_0, window_bounds = array<i64: 8, 1024>}, {pipeline_mode = #tpu.pipeline_mode<synchronous>, transform_indices = @transform_1, window_bounds = array<i64: 1024, 256>}, {pipeline_mode = #tpu.pipeline_mode<synchronous>, transform_indices = @transform_2, window_bounds = array<i64: 1, 256>}, {pipeline_mode = #tpu.pipeline_mode<synchronous>, transform_indices = @transform_3, window_bounds = array<i64: 256, 128>}, {pipeline_mode = #tpu.pipeline_mode<synchronous>, transform_indices = @transform_4, window_bounds = array<i64: 1, 128>}, {pipeline_mode = #tpu.pipeline_mode<synchronous>, transform_indices = @transform_5, window_bounds = array<i64: 128, 16>}, {pipeline_mode = #tpu.pipeline_mode<synchronous>, transform_indices = @transform_6, window_bounds = array<i64: 1, 16>}, {pipeline_mode = #tpu.pipeline_mode<synchronous>, transform_indices = @transform_7, window_bounds = array<i64: 16, 1>}, {pipeline_mode = #tpu.pipeline_mode<synchronous>, transform_indices = @transform_8, window_bounds = array<i64: 1, 1>}, {transform_indices = @transform_9, window_bounds = array<i64: 8, 1>}]} {
    %c0 = arith.constant 0 : index
    %c0_0 = arith.constant 0 : index
    %0 = vector.load %arg1[%c0, %c0_0] : memref<8x1024xf32, #tpu.memory_space<vmem>>, vector<8x1024xf32>
    %c0_1 = arith.constant 0 : index
    %c0_2 = arith.constant 0 : index
    %1 = vector.load %arg2[%c0_1, %c0_2] : memref<1024x256xf32, #tpu.memory_space<vmem>>, vector<1024x256xf32>
    %cst = arith.constant dense<0.000000e+00> : vector<8x256xf32>
    %2 = tpu.matmul %0, %1, %cst {dimension_numbers = #tpu.dot_dimension_numbers<[1], [0], [0], [1], [0, 0, 1, 1], [], []>} : vector<8x1024xf32>, vector<1024x256xf32>, vector<8x256xf32> -> vector<8x256xf32>
    %c0_3 = arith.constant 0 : index
    %c0_4 = arith.constant 0 : index
    %3 = vector.load %arg3[%c0_3, %c0_4] : memref<1x256xf32, #tpu.memory_space<vmem>>, vector<1x256xf32>
    %4 = vector.broadcast %3 : vector<1x256xf32> to vector<8x256xf32>
    %5 = arith.addf %2, %4 : vector<8x256xf32>
    %c0_5 = arith.constant 0 : index
    %c0_6 = arith.constant 0 : index
    %6 = vector.load %arg4[%c0_5, %c0_6] : memref<256x128xf32, #tpu.memory_space<vmem>>, vector<256x128xf32>
    %cst_7 = arith.constant dense<0.000000e+00> : vector<8x128xf32>
    %7 = tpu.matmul %5, %6, %cst_7 {dimension_numbers = #tpu.dot_dimension_numbers<[1], [0], [0], [1], [0, 0, 1, 1], [], []>} : vector<8x256xf32>, vector<256x128xf32>, vector<8x128xf32> -> vector<8x128xf32>
    %c0_8 = arith.constant 0 : index
    %c0_9 = arith.constant 0 : index
    %8 = vector.load %arg5[%c0_8, %c0_9] : memref<1x128xf32, #tpu.memory_space<vmem>>, vector<1x128xf32>
    %9 = vector.broadcast %8 : vector<1x128xf32> to vector<8x128xf32>
    %10 = arith.addf %7, %9 : vector<8x128xf32>
    %c0_10 = arith.constant 0 : index
    %c0_11 = arith.constant 0 : index
    %11 = vector.load %arg6[%c0_10, %c0_11] : memref<128x16xf32, #tpu.memory_space<vmem>>, vector<128x16xf32>
    %cst_12 = arith.constant dense<0.000000e+00> : vector<8x16xf32>
    %12 = tpu.matmul %10, %11, %cst_12 {dimension_numbers = #tpu.dot_dimension_numbers<[1], [0], [0], [1], [0, 0, 1, 1], [], []>} : vector<8x128xf32>, vector<128x16xf32>, vector<8x16xf32> -> vector<8x16xf32>
    %c0_13 = arith.constant 0 : index
    %c0_14 = arith.constant 0 : index
    %13 = vector.load %arg7[%c0_13, %c0_14] : memref<1x16xf32, #tpu.memory_space<vmem>>, vector<1x16xf32>
    %14 = vector.broadcast %13 : vector<1x16xf32> to vector<8x16xf32>
    %15 = arith.addf %12, %14 : vector<8x16xf32>
    %c0_15 = arith.constant 0 : index
    %c0_16 = arith.constant 0 : index
    %16 = vector.load %arg8[%c0_15, %c0_16] : memref<16x1xf32, #tpu.memory_space<vmem>>, vector<16x1xf32>
    %cst_17 = arith.constant dense<0.000000e+00> : vector<8x1xf32>
    %17 = tpu.matmul %15, %16, %cst_17 {dimension_numbers = #tpu.dot_dimension_numbers<[1], [0], [0], [1], [0, 0, 1, 1], [], []>} : vector<8x16xf32>, vector<16x1xf32>, vector<8x1xf32> -> vector<8x1xf32>
    %c0_18 = arith.constant 0 : index
    %c0_19 = arith.constant 0 : index
    %18 = vector.load %arg9[%c0_18, %c0_19] : memref<1x1xf32, #tpu.memory_space<vmem>>, vector<1x1xf32>
    %19 = vector.broadcast %18 : vector<1x1xf32> to vector<8x1xf32>
    %20 = arith.addf %17, %19 : vector<8x1xf32>
    %21 = math.absf %20 : vector<8x1xf32>
    %cst_20 = arith.constant 1.000000e+00 : f32
    %22 = vector.broadcast %cst_20 : f32 to vector<8x1xf32>
    %23 = arith.addf %22, %21 : vector<8x1xf32>
    %24 = arith.divf %20, %23 : vector<8x1xf32>
    %c0_21 = arith.constant 0 : index
    %c0_22 = arith.constant 0 : index
    %25 = vector.load %arg10[%c0_21, %c0_22] : memref<8x1xf32, #tpu.memory_space<vmem>>, vector<8x1xf32>
    tpu.vector_store %arg10[%c0_21, %c0_22], %24 {strides = array<i32>} : memref<8x1xf32, #tpu.memory_space<vmem>>, vector<8x1xf32>,
    return
  }
  func.func @transform_0(%arg0: i32) -> (i32, i32) {
    %c0_i32 = arith.constant 0 : i32
    %c0_i32_0 = arith.constant 0 : i32
    return %arg0, %c0_i32 : i32, i32
  }
  func.func @transform_1(%arg0: i32) -> (i32, i32) {
    %c0_i32 = arith.constant 0 : i32
    %c0_i32_0 = arith.constant 0 : i32
    %c0_i32_1 = arith.constant 0 : i32
    return %c0_i32, %c0_i32_0 : i32, i32
  }
  func.func @transform_2(%arg0: i32) -> (i32, i32) {
    %c0_i32 = arith.constant 0 : i32
    %c0_i32_0 = arith.constant 0 : i32
    %c0_i32_1 = arith.constant 0 : i32
    return %c0_i32, %c0_i32_0 : i32, i32
  }
  func.func @transform_3(%arg0: i32) -> (i32, i32) {
    %c0_i32 = arith.constant 0 : i32
    %c0_i32_0 = arith.constant 0 : i32
    %c0_i32_1 = arith.constant 0 : i32
    return %c0_i32, %c0_i32_0 : i32, i32
  }
  func.func @transform_4(%arg0: i32) -> (i32, i32) {
    %c0_i32 = arith.constant 0 : i32
    %c0_i32_0 = arith.constant 0 : i32
    %c0_i32_1 = arith.constant 0 : i32
    return %c0_i32, %c0_i32_0 : i32, i32
  }
  func.func @transform_5(%arg0: i32) -> (i32, i32) {
    %c0_i32 = arith.constant 0 : i32
    %c0_i32_0 = arith.constant 0 : i32
    %c0_i32_1 = arith.constant 0 : i32
    return %c0_i32, %c0_i32_0 : i32, i32
  }
  func.func @transform_6(%arg0: i32) -> (i32, i32) {
    %c0_i32 = arith.constant 0 : i32
    %c0_i32_0 = arith.constant 0 : i32
    %c0_i32_1 = arith.constant 0 : i32
    return %c0_i32, %c0_i32_0 : i32, i32
  }
  func.func @transform_7(%arg0: i32) -> (i32, i32) {
    %c0_i32 = arith.constant 0 : i32
    %c0_i32_0 = arith.constant 0 : i32
    %c0_i32_1 = arith.constant 0 : i32
    return %c0_i32, %c0_i32_0 : i32, i32
  }
  func.func @transform_8(%arg0: i32) -> (i32, i32) {
    %c0_i32 = arith.constant 0 : i32
    %c0_i32_0 = arith.constant 0 : i32
    %c0_i32_1 = arith.constant 0 : i32
    return %c0_i32, %c0_i32_0 : i32, i32
  }
  func.func @transform_9(%arg0: i32) -> (i32, i32) {
    %c0_i32 = arith.constant 0 : i32
    %c0_i32_0 = arith.constant 0 : i32
    return %arg0, %c0_i32 : i32, i32
  }
}

</mosaic_0001>

<llo_original>
// kernel: cnn_forward.4
$region0: #{cnn_forward.4}
  #allocation0 [shape = 'u32[]', space=smem, size = 0x4, offset = 0x4, fixed_abs, tag = 'smem constant byte address 0x4 - core index']
  #allocation1 [shape = 'u32[72,128]{1,0:T(1,128)}', space=vmem, size = 0x9000, scoped, tag = 'internal scratch']
  %s0 = inlined_call_operand.vmem [shape: f32[2,32,32,1], index: 0, kind: input, shape index: {}]
  %s1 = inlined_call_operand.vmem [shape: f32[16,1,16], index: 1, kind: input, shape index: {}]
  %s2 = inlined_call_operand.vmem [shape: f32[1,16], index: 2, kind: input, shape index: {}]
  %s3 = inlined_call_operand.vmem [shape: f32[2,14,14,16], index: 3, kind: output, shape index: {}]
  %s4 = sld [smem:[#allocation0]]
  $region45: #{cnn_forward.4} parent=0
    _
  %s6 = ssub.s32 1, %s4
  %s7 = scalar_select 0, %s6, %s4
  loop: start=0, step=1, limit=30
  $region2: #{cnn_forward.4} parent=0 // loop_pre_header
    _
  $region3: #{cnn_forward.4} parent=0 // loop_header
    %s9 = sphi 0, %s13
    %p10 = scmp.ge.s32.totalorder %s9, 30
    %s16 = sphi 0, %s28
    %s17 = sphi 0, %s24
    %s18 = sphi 0, %s16
    %s19 = sphi 0, %s17
    %s20 = sphi 0, %s18
    %s21 = sphi 0, %s19
    %s31 = sphi 0, %s33
    %s34 = sphi 0, %s31
    %s35 = sphi 0, %s34
    %s51 = sphi 0, %s35
    %s55 = sphi 0, %s55
    %s57 = sphi 0, %s55
    %s58 = sphi 0, %s57
    %s72 = sphi 0, %s58
    %s76 = sphi 0, %s76
    %s78 = sphi 0, %s76
    %s79 = sphi 0, %s78
    %s93 = sphi 0, %s79
    %s101 = sphi 0, %s103
    %s104 = sphi 0, %s101
    %s105 = sphi 0, %s104
    %s121 = sphi 0, %s105
  $region4: #{cnn_forward.4} parent=0 // loop_header_branch
    %12 = sbr.rel (%p10) target = $region8
  $region5: #{cnn_forward.4} parent=0 // loop_body
    %s14 = ssub.s32 %s9, 1
    %s15 = ssub.s32 %s9, 2
    %s22 = sadd.s32 1, %s17
    %p23 = scmp.ge.s32.totalorder %s22, 14
    %s24 = scalar_select %p23, 0, %s22
    %s25 = sadd.s32 1, %s16
    %s26 = scalar_select %p23, %s25, %s16
    %p27 = scmp.ge.s32.totalorder %s26, 2
    %s28 = scalar_select %p27, 0, %s26
    %s29 = ssub.s32 %s16, %s28
    %p30 = scmp.eq.s32.totalorder %s29, 0
    %s32 = sadd.s32 %s31, 1
    %s33 = scalar_select %p30, %s31, %s32
    %p36 = pneg %p30
    %p37 = scmp.eq.s32.totalorder %s9, 27
    %p38 = por %p36, %p37
    %p39 = scmp.ne.s32.totalorder %s31, %s34
    %p40 = scmp.eq.s32.totalorder %s9, 0
    %p41 = por %p39, %p40
    %p42 = scmp.ne.s32.totalorder %s31, %s34
    %p43 = scmp.eq.s32.totalorder %s14, 27
    %p44 = por %p42, %p43
    %p45 = scmp.ne.s32.totalorder %s34, %s35
    %p46 = scmp.eq.s32.totalorder %s14, 0
    %p47 = por %p45, %p46
    %p48 = scmp.ne.s32.totalorder %s34, %s35
    %p49 = scmp.eq.s32.totalorder %s15, 27
    %p50 = por %p48, %p49
    %p52 = scmp.ne.s32.totalorder %s35, %s51
    %p53 = scmp.eq.s32.totalorder %s15, 0
    %p54 = por %p52, %p53
    %s56 = sadd.s32 %s55, 1
    %p59 = scmp.eq.s32.totalorder %s9, 27
    %p60 = scmp.ne.s32.totalorder %s55, %s57
    %p61 = scmp.eq.s32.totalorder %s9, 0
    %p62 = por %p60, %p61
    %p63 = scmp.ne.s32.totalorder %s55, %s57
    %p64 = scmp.eq.s32.totalorder %s14, 27
    %p65 = por %p63, %p64
    %p66 = scmp.ne.s32.totalorder %s57, %s58
    %p67 = scmp.eq.s32.totalorder %s14, 0
    %p68 = por %p66, %p67
    %p69 = scmp.ne.s32.totalorder %s57, %s58
    %p70 = scmp.eq.s32.totalorder %s15, 27
    %p71 = por %p69, %p70
    %p73 = scmp.ne.s32.totalorder %s58, %s72
    %p74 = scmp.eq.s32.totalorder %s15, 0
    %p75 = por %p73, %p74
    %s77 = sadd.s32 %s76, 1
    %p80 = scmp.eq.s32.totalorder %s9, 27
    %p81 = scmp.ne.s32.totalorder %s76, %s78
    %p82 = scmp.eq.s32.totalorder %s9, 0
    %p83 = por %p81, %p82
    %p84 = scmp.ne.s32.totalorder %s76, %s78
    %p85 = scmp.eq.s32.totalorder %s14, 27
    %p86 = por %p84, %p85
    %p87 = scmp.ne.s32.totalorder %s78, %s79
    %p88 = scmp.eq.s32.totalorder %s14, 0
    %p89 = por %p87, %p88
    %p90 = scmp.ne.s32.totalorder %s78, %s79
    %p91 = scmp.eq.s32.totalorder %s15, 27
    %p92 = por %p90, %p91
    %p94 = scmp.ne.s32.totalorder %s79, %s93
    %p95 = scmp.eq.s32.totalorder %s15, 0
    %p96 = por %p94, %p95
    %s97 = ssub.s32 %s16, %s28
    %s98 = ssub.s32 %s17, %s24
    %s99 = sor.u32 %s97, %s98
    %p100 = scmp.eq.s32.totalorder %s99, 0
    %s102 = sadd.s32 %s101, 1
    %s103 = scalar_select %p100, %s101, %s102
    %p106 = pneg %p100
    %p107 = scmp.eq.s32.totalorder %s9, 27
    %p108 = por %p106, %p107
    %p109 = scmp.ne.s32.totalorder %s101, %s104
    %p110 = scmp.eq.s32.totalorder %s9, 0
    %p111 = por %p109, %p110
    %p112 = scmp.ne.s32.totalorder %s101, %s104
    %p113 = scmp.eq.s32.totalorder %s14, 27
    %p114 = por %p112, %p113
    %p115 = scmp.ne.s32.totalorder %s104, %s105
    %p116 = scmp.eq.s32.totalorder %s14, 0
    %p117 = por %p115, %p116
    %p118 = scmp.ne.s32.totalorder %s104, %s105
    %p119 = scmp.eq.s32.totalorder %s15, 27
    %p120 = por %p118, %p119
    %p122 = scmp.ne.s32.totalorder %s105, %s121
    %p123 = scmp.eq.s32.totalorder %s15, 0
    %p124 = por %p122, %p123
    %p125 = scmp.le.s32.totalorder 1, %s9
    %p126 = scmp.lt.s32.totalorder %s9, 29
    %p127 = pnand %p125, %p126
    %p128 = pneg %p127
    // Predicated region
    $region9: #{cnn_forward.4} parent=5 // pred_check
      _
    $region10: #{cnn_forward.4} parent=5 // pred_check_branch
      %130 = sbr.rel (%p127) target = $region12
    $region11: #{cnn_forward.4} parent=5 // pred_region
      %s131 = ssub.s32 %s9, 1
      // Predicated region
      $region13: #{cnn_forward.4} parent=11 // pred_check
        %p132 = pneg %p68
      $region14: #{cnn_forward.4} parent=11 // pred_check_branch
        %134 = sbr.rel (%p132) target = $region16
      $region15: #{cnn_forward.4} parent=11 // pred_region
        _
      $region16: #{cnn_forward.4} parent=11 // pred_fallthru
        _
      // Predicated region
      $region17: #{cnn_forward.4} parent=11 // pred_check
        %p135 = pneg %p89
      $region18: #{cnn_forward.4} parent=11 // pred_check_branch
        %137 = sbr.rel (%p135) target = $region20
      $region19: #{cnn_forward.4} parent=11 // pred_region
        _
      $region20: #{cnn_forward.4} parent=11 // pred_fallthru
        _
    $region12: #{cnn_forward.4} parent=5 // pred_fallthru
      _
    %p138 = scmp.lt.s32.totalorder %s9, 28
    // Predicated region
    $region21: #{cnn_forward.4} parent=5 // pred_check
      %p139 = pneg %p138
    $region22: #{cnn_forward.4} parent=5 // pred_check_branch
      %141 = sbr.rel (%p139) target = $region24
    $region23: #{cnn_forward.4} parent=5 // pred_region
      // Predicated region
      $region25: #{cnn_forward.4} parent=23 // pred_check
        %p142 = pneg %p41
      $region26: #{cnn_forward.4} parent=23 // pred_check_branch
        %144 = sbr.rel (%p142) target = $region28
      $region27: #{cnn_forward.4} parent=23 // pred_region
        %p145 = scmp.lt.s32.totalorder %s16, 1
        %s146 = scalar_select %p145, %s16, 1
        %s147 = smul.addr %s146, 128
        %s148 = smul.addr %s147, 8
        %s149 = scalar_lea.vmem %s0, %s148
      $region28: #{cnn_forward.4} parent=23 // pred_fallthru
        _
    $region24: #{cnn_forward.4} parent=5 // pred_fallthru
      _
    %p150 = scmp.le.s32.totalorder 1, %s9
    %p151 = scmp.lt.s32.totalorder %s9, 29
    %p152 = pnand %p150, %p151
    %p153 = pneg %p152
    // Predicated region
    $region29: #{cnn_forward.4} parent=5 // pred_check
      _
    $region30: #{cnn_forward.4} parent=5 // pred_check_branch
      %155 = sbr.rel (%p152) target = $region32
    $region31: #{cnn_forward.4} parent=5 // pred_region
      %s156 = ssub.s32 %s9, 1
      %p157 = scmp.lt.s32.totalorder %s18, 1
      %s158 = scalar_select %p157, %s18, 1
      %s159 = smul.addr %s158, 128
      %s160 = smul.addr %s159, 8
      %s161 = scalar_lea.vmem %s0, %s160
      %p162 = pneg %p47
      %p163 = pneg %p44
      %p164 = pneg %p68
      %p165 = pneg %p65
      %p166 = pneg %p89
      %p167 = pneg %p86
      %p168 = pneg %p117
      %p169 = pneg %p114
      %p170 = scmp.lt.s32.totalorder %s18, 1
      %s171 = scalar_select %p170, %s18, 1
      %p172 = scmp.lt.s32.totalorder %s19, 13
      %s173 = scalar_select %p172, %s19, 13
      %s174 = smul.addr %s173, 2
      %s175 = smul.addr %s171, 28
      %s176 = sadd.s32 %s174, %s175
      %s177 = smul.addr %s176, 8
      %s178 = scalar_lea.vmem %s3, %s177
      %p179 = scmp.lt.s32.totalorder %s18, 1
      %s180 = scalar_select %p179, %s18, 1
      %s181 = smul.addr %s180, 128
      %s182 = smul.addr %s181, 8
      %s183 = scalar_lea.vmem %s0, %s182
      %p184 = scmp.lt.s32.totalorder %s18, 1
      %s185 = scalar_select %p184, %s18, 1
      %p186 = scmp.lt.s32.totalorder %s19, 13
      %s187 = scalar_select %p186, %s19, 13
      %s188 = smul.addr %s187, 2
      %s189 = smul.addr %s185, 28
      %s190 = sadd.s32 %s188, %s189
      %s191 = smul.addr %s190, 8
      %s192 = scalar_lea.vmem %s3, %s191
      %s193 = smul.u32 %s19, 2
      %s194 = smul.u32 %s193, 32
      %s195 = scalar_lea.vmem %s183, %s194
      %v196 = vld [vmem:[%s195] sm:$0xff]
      %v197 = vld [vmem:[%s195 + $0x8] sm:$0xff]
      %v198 = vld [vmem:[%s195 + $0x10] sm:$0xff]
      %v199 = vld [vmem:[%s195 + $0x18] sm:$0xff]
      %v200 = vld [vmem:[%s195 + $0x20] sm:$0xff]
      %v201 = vld [vmem:[%s195 + $0x28] sm:$0xff]
      %v202 = vld [vmem:[%s195 + $0x30] sm:$0xff]
      %v203 = vld [vmem:[%s195 + $0x38] sm:$0xff]
      %v204 = vld [vmem:[%s195 + $0x40] sm:$0xff]
      %v205 = vld [vmem:[%s195 + $0x48] sm:$0xff]
      %v206 = vld [vmem:[%s195 + $0x50] sm:$0xff]
      %v207 = vld [vmem:[%s195 + $0x58] sm:$0xff]
      %v208 = vld [vmem:[%s195 + $0x60] sm:$0xff]
      %v209 = vld [vmem:[%s195 + $0x68] sm:$0xff]
      %v210 = vld [vmem:[%s195 + $0x70] sm:$0xff]
      %v211 = vld [vmem:[%s195 + $0x78] sm:$0xff]
      %v212 = vld [vmem:[%s195 + $0x80] sm:$0xff]
      %v213 = vld [vmem:[%s195 + $0x88] sm:$0xff]
      %v214 = vld [vmem:[%s195 + $0x90] sm:$0xff]
      %v215 = vld [vmem:[%s195 + $0x98] sm:$0xff]
      %v216 = vld [vmem:[%s2] sm:$0x1]
      %v217 = vld [vmem:[%s1] sm:$0x1]
      %219 = vset.pattern.permute.xlu0 0
      %220 = vperm.xlu0 %219, %v196
      %v221 = vpop.permute.xlu0 %220
      %224 = vset.pattern.permute.xlu0 0
      %225 = vperm.xlu0 %224, %v197
      %v226 = vpop.permute.xlu0 %225
      %229 = vset.pattern.permute.xlu0 0
      %230 = vperm.xlu0 %229, %v198
      %v231 = vpop.permute.xlu0 %230
      %234 = vset.pattern.permute.xlu0 0
      %235 = vperm.xlu0 %234, %v199
      %v236 = vpop.permute.xlu0 %235
      %v239 = vperm.slane %v217, 0
      %v241 = vmul.f32 %v221, %v239
      %v242 = vmul.f32 %v226, %v239
      %v243 = vmul.f32 %v231, %v239
      %v244 = vmul.f32 %v236, %v239
      %v245 = vadd.f32 %v241, 0.0
      %v246 = vadd.f32 %v242, 0.0
      %v247 = vadd.f32 %v243, 0.0
      %v248 = vadd.f32 %v244, 0.0
      %s249 = scalar_lea.vmem %s1, 1
      %v250 = vld [vmem:[%s249] sm:$0x1]
      %v252 = vperm.slane %v250, 0
      %v254 = vmul.f32 %v221, %v252
      %v255 = vmul.f32 %v226, %v252
      %v256 = vmul.f32 %v231, %v252
      %v257 = vmul.f32 %v236, %v252
      %vm262 = vcmask 1046528
      %v263 = vrot.slane %v254, 1
      %v264 = vrot.slane %v255, 1
      %v265 = vsel %vm262, %v263, %v264
      %v266 = vrot.slane %v256, 1
      %v267 = vsel %vm262, %v264, %v266
      %v268 = vrot.slane %v257, 1
      %v269 = vsel %vm262, %v266, %v268
      %v274 = vadd.f32 %v245, %v265
      %v275 = vadd.f32 %v246, %v267
      %v276 = vadd.f32 %v247, %v269
      %v277 = vadd.f32 %v248, %v268
      %s278 = scalar_lea.vmem %s1, 2
      %v279 = vld [vmem:[%s278] sm:$0x1]
      %v281 = vperm.slane %v279, 0
      %v283 = vmul.f32 %v221, %v281
      %v284 = vmul.f32 %v226, %v281
      %v285 = vmul.f32 %v231, %v281
      %v286 = vmul.f32 %v236, %v281
      %vm291 = vcmask 1045504
      %v292 = vrot.slane %v283, 2
      %v293 = vrot.slane %v284, 2
      %v294 = vsel %vm291, %v292, %v293
      %v295 = vrot.slane %v285, 2
      %v296 = vsel %vm291, %v293, %v295
      %v297 = vrot.slane %v286, 2
      %v298 = vsel %vm291, %v295, %v297
      %v303 = vadd.f32 %v274, %v294
      %v304 = vadd.f32 %v275, %v296
      %v305 = vadd.f32 %v276, %v298
      %v306 = vadd.f32 %v277, %v297
      %s307 = scalar_lea.vmem %s1, 3
      %v308 = vld [vmem:[%s307] sm:$0x1]
      %v310 = vperm.slane %v308, 0
      %v312 = vmul.f32 %v221, %v310
      %v313 = vmul.f32 %v226, %v310
      %v314 = vmul.f32 %v231, %v310
      %v315 = vmul.f32 %v236, %v310
      %vm320 = vcmask 1044480
      %v321 = vrot.slane %v312, 3
      %v322 = vrot.slane %v313, 3
      %v323 = vsel %vm320, %v321, %v322
      %v324 = vrot.slane %v314, 3
      %v325 = vsel %vm320, %v322, %v324
      %v326 = vrot.slane %v315, 3
      %v327 = vsel %vm320, %v324, %v326
      %v332 = vadd.f32 %v303, %v323
      %v333 = vadd.f32 %v304, %v325
      %v334 = vadd.f32 %v305, %v327
      %v335 = vadd.f32 %v306, %v326
      %s336 = scalar_lea.vmem %s1, 4
      %v337 = vld [vmem:[%s336] sm:$0x1]
      %339 = vset.pattern.permute.xlu0 0
      %340 = vperm.xlu0 %339, %v200
      %v341 = vpop.permute.xlu0 %340
      %344 = vset.pattern.permute.xlu0 0
      %345 = vperm.xlu0 %344, %v201
      %v346 = vpop.permute.xlu0 %345
      %349 = vset.pattern.permute.xlu0 0
      %350 = vperm.xlu0 %349, %v202
      %v351 = vpop.permute.xlu0 %350
      %354 = vset.pattern.permute.xlu0 0
      %355 = vperm.xlu0 %354, %v203
      %v356 = vpop.permute.xlu0 %355
      %v359 = vperm.slane %v337, 0
      %v361 = vmul.f32 %v341, %v359
      %v362 = vmul.f32 %v346, %v359
      %v363 = vmul.f32 %v351, %v359
      %v364 = vmul.f32 %v356, %v359
      %v365 = vadd.f32 %v332, %v361
      %v366 = vadd.f32 %v333, %v362
      %v367 = vadd.f32 %v334, %v363
      %v368 = vadd.f32 %v335, %v364
      %s369 = scalar_lea.vmem %s1, 5
      %v370 = vld [vmem:[%s369] sm:$0x1]
      %v372 = vperm.slane %v370, 0
      %v374 = vmul.f32 %v341, %v372
      %v375 = vmul.f32 %v346, %v372
      %v376 = vmul.f32 %v351, %v372
      %v377 = vmul.f32 %v356, %v372
      %v382 = vrot.slane %v374, 1
      %v383 = vrot.slane %v375, 1
      %v384 = vsel %vm262, %v382, %v383
      %v385 = vrot.slane %v376, 1
      %v386 = vsel %vm262, %v383, %v385
      %v387 = vrot.slane %v377, 1
      %v388 = vsel %vm262, %v385, %v387
      %v393 = vadd.f32 %v365, %v384
      %v394 = vadd.f32 %v366, %v386
      %v395 = vadd.f32 %v367, %v388
      %v396 = vadd.f32 %v368, %v387
      %s397 = scalar_lea.vmem %s1, 6
      %v398 = vld [vmem:[%s397] sm:$0x1]
      %v400 = vperm.slane %v398, 0
      %v402 = vmul.f32 %v341, %v400
      %v403 = vmul.f32 %v346, %v400
      %v404 = vmul.f32 %v351, %v400
      %v405 = vmul.f32 %v356, %v400
      %v410 = vrot.slane %v402, 2
      %v411 = vrot.slane %v403, 2
      %v412 = vsel %vm291, %v410, %v411
      %v413 = vrot.slane %v404, 2
      %v414 = vsel %vm291, %v411, %v413
      %v415 = vrot.slane %v405, 2
      %v416 = vsel %vm291, %v413, %v415
      %v421 = vadd.f32 %v393, %v412
      %v422 = vadd.f32 %v394, %v414
      %v423 = vadd.f32 %v395, %v416
      %v424 = vadd.f32 %v396, %v415
      %s425 = scalar_lea.vmem %s1, 7
      %v426 = vld [vmem:[%s425] sm:$0x1]
      %v428 = vperm.slane %v426, 0
      %v430 = vmul.f32 %v341, %v428
      %v431 = vmul.f32 %v346, %v428
      %v432 = vmul.f32 %v351, %v428
      %v433 = vmul.f32 %v356, %v428
      %v438 = vrot.slane %v430, 3
      %v439 = vrot.slane %v431, 3
      %v440 = vsel %vm320, %v438, %v439
      %v441 = vrot.slane %v432, 3
      %v442 = vsel %vm320, %v439, %v441
      %v443 = vrot.slane %v433, 3
      %v444 = vsel %vm320, %v441, %v443
      %v449 = vadd.f32 %v421, %v440
      %v450 = vadd.f32 %v422, %v442
      %v451 = vadd.f32 %v423, %v444
      %v452 = vadd.f32 %v424, %v443
      %s453 = scalar_lea.vmem %s1, 8
      %v454 = vld [vmem:[%s453] sm:$0x1]
      %456 = vset.pattern.permute.xlu0 0
      %457 = vperm.xlu0 %456, %v204
      %v458 = vpop.permute.xlu0 %457
      %461 = vset.pattern.permute.xlu0 0
      %462 = vperm.xlu0 %461, %v205
      %v463 = vpop.permute.xlu0 %462
      %466 = vset.pattern.permute.xlu0 0
      %467 = vperm.xlu0 %466, %v206
      %v468 = vpop.permute.xlu0 %467
      %471 = vset.pattern.permute.xlu0 0
      %472 = vperm.xlu0 %471, %v207
      %v473 = vpop.permute.xlu0 %472
      %v476 = vperm.slane %v454, 0
      %v478 = vmul.f32 %v458, %v476
      %v479 = vmul.f32 %v463, %v476
      %v480 = vmul.f32 %v468, %v476
      %v481 = vmul.f32 %v473, %v476
      %v482 = vadd.f32 %v449, %v478
      %v483 = vadd.f32 %v450, %v479
      %v484 = vadd.f32 %v451, %v480
      %v485 = vadd.f32 %v452, %v481
      %s486 = scalar_lea.vmem %s1, 9
      %v487 = vld [vmem:[%s486] sm:$0x1]
      %v489 = vperm.slane %v487, 0
      %v491 = vmul.f32 %v458, %v489
      %v492 = vmul.f32 %v463, %v489
      %v493 = vmul.f32 %v468, %v489
      %v494 = vmul.f32 %v473, %v489
      %v499 = vrot.slane %v491, 1
      %v500 = vrot.slane %v492, 1
      %v501 = vsel %vm262, %v499, %v500
      %v502 = vrot.slane %v493, 1
      %v503 = vsel %vm262, %v500, %v502
      %v504 = vrot.slane %v494, 1
      %v505 = vsel %vm262, %v502, %v504
      %v510 = vadd.f32 %v482, %v501
      %v511 = vadd.f32 %v483, %v503
      %v512 = vadd.f32 %v484, %v505
      %v513 = vadd.f32 %v485, %v504
      %s514 = scalar_lea.vmem %s1, 10
      %v515 = vld [vmem:[%s514] sm:$0x1]
      %v517 = vperm.slane %v515, 0
      %v519 = vmul.f32 %v458, %v517
      %v520 = vmul.f32 %v463, %v517
      %v521 = vmul.f32 %v468, %v517
      %v522 = vmul.f32 %v473, %v517
      %v527 = vrot.slane %v519, 2
      %v528 = vrot.slane %v520, 2
      %v529 = vsel %vm291, %v527, %v528
      %v530 = vrot.slane %v521, 2
      %v531 = vsel %vm291, %v528, %v530
      %v532 = vrot.slane %v522, 2
      %v533 = vsel %vm291, %v530, %v532
      %v538 = vadd.f32 %v510, %v529
      %v539 = vadd.f32 %v511, %v531
      %v540 = vadd.f32 %v512, %v533
      %v541 = vadd.f32 %v513, %v532
      %s542 = scalar_lea.vmem %s1, 11
      %v543 = vld [vmem:[%s542] sm:$0x1]
      %v545 = vperm.slane %v543, 0
      %v547 = vmul.f32 %v458, %v545
      %v548 = vmul.f32 %v463, %v545
      %v549 = vmul.f32 %v468, %v545
      %v550 = vmul.f32 %v473, %v545
      %v555 = vrot.slane %v547, 3
      %v556 = vrot.slane %v548, 3
      %v557 = vsel %vm320, %v555, %v556
      %v558 = vrot.slane %v549, 3
      %v559 = vsel %vm320, %v556, %v558
      %v560 = vrot.slane %v550, 3
      %v561 = vsel %vm320, %v558, %v560
      %v566 = vadd.f32 %v538, %v557
      %v567 = vadd.f32 %v539, %v559
      %v568 = vadd.f32 %v540, %v561
      %v569 = vadd.f32 %v541, %v560
      %s570 = scalar_lea.vmem %s1, 12
      %v571 = vld [vmem:[%s570] sm:$0x1]
      %573 = vset.pattern.permute.xlu0 0
      %574 = vperm.xlu0 %573, %v208
      %v575 = vpop.permute.xlu0 %574
      %578 = vset.pattern.permute.xlu0 0
      %579 = vperm.xlu0 %578, %v209
      %v580 = vpop.permute.xlu0 %579
      %583 = vset.pattern.permute.xlu0 0
      %584 = vperm.xlu0 %583, %v210
      %v585 = vpop.permute.xlu0 %584
      %588 = vset.pattern.permute.xlu0 0
      %589 = vperm.xlu0 %588, %v211
      %v590 = vpop.permute.xlu0 %589
      %v593 = vperm.slane %v571, 0
      %v595 = vmul.f32 %v575, %v593
      %v596 = vmul.f32 %v580, %v593
      %v597 = vmul.f32 %v585, %v593
      %v598 = vmul.f32 %v590, %v593
      %v599 = vadd.f32 %v566, %v595
      %v600 = vadd.f32 %v567, %v596
      %v601 = vadd.f32 %v568, %v597
      %v602 = vadd.f32 %v569, %v598
      %s603 = scalar_lea.vmem %s1, 13
      %v604 = vld [vmem:[%s603] sm:$0x1]
      %v606 = vperm.slane %v604, 0
      %v608 = vmul.f32 %v575, %v606
      %v609 = vmul.f32 %v580, %v606
      %v610 = vmul.f32 %v585, %v606
      %v611 = vmul.f32 %v590, %v606
      %v616 = vrot.slane %v608, 1
      %v617 = vrot.slane %v609, 1
      %v618 = vsel %vm262, %v616, %v617
      %v619 = vrot.slane %v610, 1
      %v620 = vsel %vm262, %v617, %v619
      %v621 = vrot.slane %v611, 1
      %v622 = vsel %vm262, %v619, %v621
      %v627 = vadd.f32 %v599, %v618
      %v628 = vadd.f32 %v600, %v620
      %v629 = vadd.f32 %v601, %v622
      %v630 = vadd.f32 %v602, %v621
      %s631 = scalar_lea.vmem %s1, 14
      %v632 = vld [vmem:[%s631] sm:$0x1]
      %v634 = vperm.slane %v632, 0
      %v636 = vmul.f32 %v575, %v634
      %v637 = vmul.f32 %v580, %v634
      %v638 = vmul.f32 %v585, %v634
      %v639 = vmul.f32 %v590, %v634
      %v644 = vrot.slane %v636, 2
      %v645 = vrot.slane %v637, 2
      %v646 = vsel %vm291, %v644, %v645
      %v647 = vrot.slane %v638, 2
      %v648 = vsel %vm291, %v645, %v647
      %v649 = vrot.slane %v639, 2
      %v650 = vsel %vm291, %v647, %v649
      %v655 = vadd.f32 %v627, %v646
      %v656 = vadd.f32 %v628, %v648
      %v657 = vadd.f32 %v629, %v650
      %v658 = vadd.f32 %v630, %v649
      %s659 = scalar_lea.vmem %s1, 15
      %v660 = vld [vmem:[%s659] sm:$0x1]
      %v662 = vperm.slane %v660, 0
      %v664 = vmul.f32 %v575, %v662
      %v665 = vmul.f32 %v580, %v662
      %v666 = vmul.f32 %v585, %v662
      %v667 = vmul.f32 %v590, %v662
      %v672 = vrot.slane %v664, 3
      %v673 = vrot.slane %v665, 3
      %v674 = vsel %vm320, %v672, %v673
      %v675 = vrot.slane %v666, 3
      %v676 = vsel %vm320, %v673, %v675
      %v677 = vrot.slane %v667, 3
      %v678 = vsel %vm320, %v675, %v677
      %v683 = vadd.f32 %v655, %v674
      %v684 = vadd.f32 %v656, %v676
      %v685 = vadd.f32 %v657, %v678
      %v686 = vadd.f32 %v658, %v677
      %v688 = vperm.slane %v216, 0
      %v690 = vadd.f32 %v683, %v688
      %v691 = vadd.f32 %v684, %v688
      %v692 = vadd.f32 %v685, %v688
      %v693 = vadd.f32 %v686, %v688
      %v694 = vmax.f32 %v690, 0.0
      %v695 = vmax.f32 %v691, 0.0
      %v696 = vmax.f32 %v692, 0.0
      %v697 = vmax.f32 %v693, 0.0
      %v698 = vmul.f32 %v341, %v239
      %v699 = vmul.f32 %v346, %v239
      %v700 = vmul.f32 %v351, %v239
      %v701 = vmul.f32 %v356, %v239
      %v702 = vadd.f32 %v698, 0.0
      %v703 = vadd.f32 %v699, 0.0
      %v704 = vadd.f32 %v700, 0.0
      %v705 = vadd.f32 %v701, 0.0
      %v706 = vmul.f32 %v341, %v252
      %v707 = vmul.f32 %v346, %v252
      %v708 = vmul.f32 %v351, %v252
      %v709 = vmul.f32 %v356, %v252
      %v714 = vrot.slane %v706, 1
      %v715 = vrot.slane %v707, 1
      %v716 = vsel %vm262, %v714, %v715
      %v717 = vrot.slane %v708, 1
      %v718 = vsel %vm262, %v715, %v717
      %v719 = vrot.slane %v709, 1
      %v720 = vsel %vm262, %v717, %v719
      %v725 = vadd.f32 %v702, %v716
      %v726 = vadd.f32 %v703, %v718
      %v727 = vadd.f32 %v704, %v720
      %v728 = vadd.f32 %v705, %v719
      %v729 = vmul.f32 %v341, %v281
      %v730 = vmul.f32 %v346, %v281
      %v731 = vmul.f32 %v351, %v281
      %v732 = vmul.f32 %v356, %v281
      %v737 = vrot.slane %v729, 2
      %v738 = vrot.slane %v730, 2
      %v739 = vsel %vm291, %v737, %v738
      %v740 = vrot.slane %v731, 2
      %v741 = vsel %vm291, %v738, %v740
      %v742 = vrot.slane %v732, 2
      %v743 = vsel %vm291, %v740, %v742
      %v748 = vadd.f32 %v725, %v739
      %v749 = vadd.f32 %v726, %v741
      %v750 = vadd.f32 %v727, %v743
      %v751 = vadd.f32 %v728, %v742
      %v752 = vmul.f32 %v341, %v310
      %v753 = vmul.f32 %v346, %v310
      %v754 = vmul.f32 %v351, %v310
      %v755 = vmul.f32 %v356, %v310
      %v760 = vrot.slane %v752, 3
      %v761 = vrot.slane %v753, 3
      %v762 = vsel %vm320, %v760, %v761
      %v763 = vrot.slane %v754, 3
      %v764 = vsel %vm320, %v761, %v763
      %v765 = vrot.slane %v755, 3
      %v766 = vsel %vm320, %v763, %v765
      %v771 = vadd.f32 %v748, %v762
      %v772 = vadd.f32 %v749, %v764
      %v773 = vadd.f32 %v750, %v766
      %v774 = vadd.f32 %v751, %v765
      %v775 = vmul.f32 %v458, %v359
      %v776 = vmul.f32 %v463, %v359
      %v777 = vmul.f32 %v468, %v359
      %v778 = vmul.f32 %v473, %v359
      %v779 = vadd.f32 %v771, %v775
      %v780 = vadd.f32 %v772, %v776
      %v781 = vadd.f32 %v773, %v777
      %v782 = vadd.f32 %v774, %v778
      %v783 = vmul.f32 %v458, %v372
      %v784 = vmul.f32 %v463, %v372
      %v785 = vmul.f32 %v468, %v372
      %v786 = vmul.f32 %v473, %v372
      %v791 = vrot.slane %v783, 1
      %v792 = vrot.slane %v784, 1
      %v793 = vsel %vm262, %v791, %v792
      %v794 = vrot.slane %v785, 1
      %v795 = vsel %vm262, %v792, %v794
      %v796 = vrot.slane %v786, 1
      %v797 = vsel %vm262, %v794, %v796
      %v802 = vadd.f32 %v779, %v793
      %v803 = vadd.f32 %v780, %v795
      %v804 = vadd.f32 %v781, %v797
      %v805 = vadd.f32 %v782, %v796
      %v806 = vmul.f32 %v458, %v400
      %v807 = vmul.f32 %v463, %v400
      %v808 = vmul.f32 %v468, %v400
      %v809 = vmul.f32 %v473, %v400
      %v814 = vrot.slane %v806, 2
      %v815 = vrot.slane %v807, 2
      %v816 = vsel %vm291, %v814, %v815
      %v817 = vrot.slane %v808, 2
      %v818 = vsel %vm291, %v815, %v817
      %v819 = vrot.slane %v809, 2
      %v820 = vsel %vm291, %v817, %v819
      %v825 = vadd.f32 %v802, %v816
      %v826 = vadd.f32 %v803, %v818
      %v827 = vadd.f32 %v804, %v820
      %v828 = vadd.f32 %v805, %v819
      %v829 = vmul.f32 %v458, %v428
      %v830 = vmul.f32 %v463, %v428
      %v831 = vmul.f32 %v468, %v428
      %v832 = vmul.f32 %v473, %v428
      %v837 = vrot.slane %v829, 3
      %v838 = vrot.slane %v830, 3
      %v839 = vsel %vm320, %v837, %v838
      %v840 = vrot.slane %v831, 3
      %v841 = vsel %vm320, %v838, %v840
      %v842 = vrot.slane %v832, 3
      %v843 = vsel %vm320, %v840, %v842
      %v848 = vadd.f32 %v825, %v839
      %v849 = vadd.f32 %v826, %v841
      %v850 = vadd.f32 %v827, %v843
      %v851 = vadd.f32 %v828, %v842
      %v852 = vmul.f32 %v575, %v476
      %v853 = vmul.f32 %v580, %v476
      %v854 = vmul.f32 %v585, %v476
      %v855 = vmul.f32 %v590, %v476
      %v856 = vadd.f32 %v848, %v852
      %v857 = vadd.f32 %v849, %v853
      %v858 = vadd.f32 %v850, %v854
      %v859 = vadd.f32 %v851, %v855
      %v860 = vmul.f32 %v575, %v489
      %v861 = vmul.f32 %v580, %v489
      %v862 = vmul.f32 %v585, %v489
      %v863 = vmul.f32 %v590, %v489
      %v868 = vrot.slane %v860, 1
      %v869 = vrot.slane %v861, 1
      %v870 = vsel %vm262, %v868, %v869
      %v871 = vrot.slane %v862, 1
      %v872 = vsel %vm262, %v869, %v871
      %v873 = vrot.slane %v863, 1
      %v874 = vsel %vm262, %v871, %v873
      %v879 = vadd.f32 %v856, %v870
      %v880 = vadd.f32 %v857, %v872
      %v881 = vadd.f32 %v858, %v874
      %v882 = vadd.f32 %v859, %v873
      %v883 = vmul.f32 %v575, %v517
      %v884 = vmul.f32 %v580, %v517
      %v885 = vmul.f32 %v585, %v517
      %v886 = vmul.f32 %v590, %v517
      %v891 = vrot.slane %v883, 2
      %v892 = vrot.slane %v884, 2
      %v893 = vsel %vm291, %v891, %v892
      %v894 = vrot.slane %v885, 2
      %v895 = vsel %vm291, %v892, %v894
      %v896 = vrot.slane %v886, 2
      %v897 = vsel %vm291, %v894, %v896
      %v902 = vadd.f32 %v879, %v893
      %v903 = vadd.f32 %v880, %v895
      %v904 = vadd.f32 %v881, %v897
      %v905 = vadd.f32 %v882, %v896
      %v906 = vmul.f32 %v575, %v545
      %v907 = vmul.f32 %v580, %v545
      %v908 = vmul.f32 %v585, %v545
      %v909 = vmul.f32 %v590, %v545
      %v914 = vrot.slane %v906, 3
      %v915 = vrot.slane %v907, 3
      %v916 = vsel %vm320, %v914, %v915
      %v917 = vrot.slane %v908, 3
      %v918 = vsel %vm320, %v915, %v917
      %v919 = vrot.slane %v909, 3
      %v920 = vsel %vm320, %v917, %v919
      %v925 = vadd.f32 %v902, %v916
      %v926 = vadd.f32 %v903, %v918
      %v927 = vadd.f32 %v904, %v920
      %v928 = vadd.f32 %v905, %v919
      %930 = vset.pattern.permute.xlu0 0
      %931 = vperm.xlu0 %930, %v212
      %v932 = vpop.permute.xlu0 %931
      %935 = vset.pattern.permute.xlu0 0
      %936 = vperm.xlu0 %935, %v213
      %v937 = vpop.permute.xlu0 %936
      %940 = vset.pattern.permute.xlu0 0
      %941 = vperm.xlu0 %940, %v214
      %v942 = vpop.permute.xlu0 %941
      %945 = vset.pattern.permute.xlu0 0
      %946 = vperm.xlu0 %945, %v215
      %v947 = vpop.permute.xlu0 %946
      %v949 = vmul.f32 %v932, %v593
      %v950 = vmul.f32 %v937, %v593
      %v951 = vmul.f32 %v942, %v593
      %v952 = vmul.f32 %v947, %v593
      %v953 = vadd.f32 %v925, %v949
      %v954 = vadd.f32 %v926, %v950
      %v955 = vadd.f32 %v927, %v951
      %v956 = vadd.f32 %v928, %v952
      %v957 = vmul.f32 %v932, %v606
      %v958 = vmul.f32 %v937, %v606
      %v959 = vmul.f32 %v942, %v606
      %v960 = vmul.f32 %v947, %v606
      %v965 = vrot.slane %v957, 1
      %v966 = vrot.slane %v958, 1
      %v967 = vsel %vm262, %v965, %v966
      %v968 = vrot.slane %v959, 1
      %v969 = vsel %vm262, %v966, %v968
      %v970 = vrot.slane %v960, 1
      %v971 = vsel %vm262, %v968, %v970
      %v976 = vadd.f32 %v953, %v967
      %v977 = vadd.f32 %v954, %v969
      %v978 = vadd.f32 %v955, %v971
      %v979 = vadd.f32 %v956, %v970
      %v980 = vmul.f32 %v932, %v634
      %v981 = vmul.f32 %v937, %v634
      %v982 = vmul.f32 %v942, %v634
      %v983 = vmul.f32 %v947, %v634
      %v988 = vrot.slane %v980, 2
      %v989 = vrot.slane %v981, 2
      %v990 = vsel %vm291, %v988, %v989
      %v991 = vrot.slane %v982, 2
      %v992 = vsel %vm291, %v989, %v991
      %v993 = vrot.slane %v983, 2
      %v994 = vsel %vm291, %v991, %v993
      %v999 = vadd.f32 %v976, %v990
      %v1000 = vadd.f32 %v977, %v992
      %v1001 = vadd.f32 %v978, %v994
      %v1002 = vadd.f32 %v979, %v993
      %v1003 = vmul.f32 %v932, %v662
      %v1004 = vmul.f32 %v937, %v662
      %v1005 = vmul.f32 %v942, %v662
      %v1006 = vmul.f32 %v947, %v662
      %v1011 = vrot.slane %v1003, 3
      %v1012 = vrot.slane %v1004, 3
      %v1013 = vsel %vm320, %v1011, %v1012
      %v1014 = vrot.slane %v1005, 3
      %v1015 = vsel %vm320, %v1012, %v1014
      %v1016 = vrot.slane %v1006, 3
      %v1017 = vsel %vm320, %v1014, %v1016
      %v1022 = vadd.f32 %v999, %v1013
      %v1023 = vadd.f32 %v1000, %v1015
      %v1024 = vadd.f32 %v1001, %v1017
      %v1025 = vadd.f32 %v1002, %v1016
      %v1026 = vadd.f32 %v1022, %v688
      %v1027 = vadd.f32 %v1023, %v688
      %v1028 = vadd.f32 %v1024, %v688
      %v1029 = vadd.f32 %v1025, %v688
      %v1030 = vmax.f32 %v1026, 0.0
      %v1031 = vmax.f32 %v1027, 0.0
      %v1032 = vmax.f32 %v1028, 0.0
      %v1033 = vmax.f32 %v1029, 0.0
      %v1034 = vmax.f32 %v694, %v1030
      %v1035 = vmax.f32 %v695, %v1031
      %v1036 = vmax.f32 %v696, %v1032
      %v1037 = vmax.f32 %v697, %v1033
      %vm1038 = vcmask 123904
      %v1039 = vsel %vm1038, %v1034, -inf
      %v1040 = vrot.slane %v1039, 4
      %v1041 = vmax.f32 %v1039, %v1040
      %v1042 = vrot.slane %v1041, 2
      %v1043 = vmax.f32 %v1041, %v1042
      %v1044 = vrot.slane %v1043, 1
      %v1045 = vmax.f32 %v1043, %v1044
      %vm1046 = vcmask 125954
      %v1047 = vsel %vm1046, %v1034, -inf
      %v1048 = vrot.slane %v1047, 4
      %v1049 = vmax.f32 %v1047, %v1048
      %v1050 = vrot.slane %v1049, 2
      %v1051 = vmax.f32 %v1049, %v1050
      %v1052 = vrot.slane %v1051, 1
      %v1053 = vmax.f32 %v1051, %v1052
      %vm1054 = vcmask 128004
      %v1055 = vsel %vm1054, %v1034, -inf
      %v1056 = vrot.slane %v1055, 4
      %v1057 = vmax.f32 %v1055, %v1056
      %v1058 = vrot.slane %v1057, 2
      %v1059 = vmax.f32 %v1057, %v1058
      %v1060 = vrot.slane %v1059, 1
      %v1061 = vmax.f32 %v1059, %v1060
      %vm1062 = vcmask 130054
      %v1063 = vsel %vm1062, %v1034, -inf
      %v1064 = vrot.slane %v1063, 4
      %v1065 = vmax.f32 %v1063, %v1064
      %v1066 = vrot.slane %v1065, 2
      %v1067 = vmax.f32 %v1065, %v1066
      %v1068 = vrot.slane %v1067, 1
      %v1069 = vmax.f32 %v1067, %v1068
      %v1070 = vsel %vm1038, %v1035, -inf
      %v1071 = vrot.slane %v1070, 4
      %v1072 = vmax.f32 %v1070, %v1071
      %v1073 = vrot.slane %v1072, 2
      %v1074 = vmax.f32 %v1072, %v1073
      %v1075 = vrot.slane %v1074, 1
      %v1076 = vmax.f32 %v1074, %v1075
      %v1077 = vsel %vm1046, %v1035, -inf
      %v1078 = vrot.slane %v1077, 4
      %v1079 = vmax.f32 %v1077, %v1078
      %v1080 = vrot.slane %v1079, 2
      %v1081 = vmax.f32 %v1079, %v1080
      %v1082 = vrot.slane %v1081, 1
      %v1083 = vmax.f32 %v1081, %v1082
      %v1084 = vsel %vm1054, %v1035, -inf
      %v1085 = vrot.slane %v1084, 4
      %v1086 = vmax.f32 %v1084, %v1085
      %v1087 = vrot.slane %v1086, 2
      %v1088 = vmax.f32 %v1086, %v1087
      %v1089 = vrot.slane %v1088, 1
      %v1090 = vmax.f32 %v1088, %v1089
      %v1091 = vsel %vm1062, %v1035, -inf
      %v1092 = vrot.slane %v1091, 4
      %v1093 = vmax.f32 %v1091, %v1092
      %v1094 = vrot.slane %v1093, 2
      %v1095 = vmax.f32 %v1093, %v1094
      %v1096 = vrot.slane %v1095, 1
      %v1097 = vmax.f32 %v1095, %v1096
      %v1098 = vsel %vm1038, %v1036, -inf
      %v1099 = vrot.slane %v1098, 4
      %v1100 = vmax.f32 %v1098, %v1099
      %v1101 = vrot.slane %v1100, 2
      %v1102 = vmax.f32 %v1100, %v1101
      %v1103 = vrot.slane %v1102, 1
      %v1104 = vmax.f32 %v1102, %v1103
      %v1105 = vsel %vm1046, %v1036, -inf
      %v1106 = vrot.slane %v1105, 4
      %v1107 = vmax.f32 %v1105, %v1106
      %v1108 = vrot.slane %v1107, 2
      %v1109 = vmax.f32 %v1107, %v1108
      %v1110 = vrot.slane %v1109, 1
      %v1111 = vmax.f32 %v1109, %v1110
      %v1112 = vsel %vm1054, %v1036, -inf
      %v1113 = vrot.slane %v1112, 4
      %v1114 = vmax.f32 %v1112, %v1113
      %v1115 = vrot.slane %v1114, 2
      %v1116 = vmax.f32 %v1114, %v1115
      %v1117 = vrot.slane %v1116, 1
      %v1118 = vmax.f32 %v1116, %v1117
      %v1119 = vsel %vm1062, %v1036, -inf
      %v1120 = vrot.slane %v1119, 4
      %v1121 = vmax.f32 %v1119, %v1120
      %v1122 = vrot.slane %v1121, 2
      %v1123 = vmax.f32 %v1121, %v1122
      %v1124 = vrot.slane %v1123, 1
      %v1125 = vmax.f32 %v1123, %v1124
      %v1126 = vsel %vm1038, %v1037, -inf
      %v1127 = vrot.slane %v1126, 4
      %v1128 = vmax.f32 %v1126, %v1127
      %v1129 = vrot.slane %v1128, 2
      %v1130 = vmax.f32 %v1128, %v1129
      %v1131 = vrot.slane %v1130, 1
      %v1132 = vmax.f32 %v1130, %v1131
      %v1133 = vsel %vm1046, %v1037, -inf
      %v1134 = vrot.slane %v1133, 4
      %v1135 = vmax.f32 %v1133, %v1134
      %v1136 = vrot.slane %v1135, 2
      %v1137 = vmax.f32 %v1135, %v1136
      %v1138 = vrot.slane %v1137, 1
      %v1139 = vmax.f32 %v1137, %v1138
      %vm1140 = vcmask 1040384
      %v1141 = vsel %vm1140, %v1045, %v1053
      %vm1142 = vcmask 1041408
      %v1143 = vsel %vm1142, %v1141, %v1061
      %vm1144 = vcmask 1042432
      %v1145 = vsel %vm1144, %v1143, %v1069
      %vm1146 = vcmask 1043456
      %v1147 = vsel %vm1146, %v1145, %v1076
      %v1148 = vsel %vm320, %v1147, %v1083
      %v1149 = vsel %vm291, %v1148, %v1090
      %v1150 = vsel %vm262, %v1149, %v1097
      %v1151 = vsel %vm1140, %v1104, %v1111
      %v1152 = vsel %vm1142, %v1151, %v1118
      %v1153 = vsel %vm1144, %v1152, %v1125
      %v1154 = vsel %vm1146, %v1153, %v1132
      %v1155 = vsel %vm320, %v1154, %v1139
      %vm1156 = vcmask 130048
      %1157 = vst.msk [vmem:[%s192] sm:$0xff] %vm1156, %v1150
      %vm1158 = vcmask 128000
      %1159 = vst.msk [vmem:[%s192 + $0x8] sm:$0x3f] %vm1158, %v1155
      %p1160 = scmp.lt.s32.totalorder %s18, 1
      %s1161 = scalar_select %p1160, %s18, 1
      %p1162 = scmp.lt.s32.totalorder %s19, 13
      %s1163 = scalar_select %p1162, %s19, 13
      %s1164 = smul.addr %s1163, 2
      %s1165 = smul.addr %s1161, 28
      %s1166 = sadd.s32 %s1164, %s1165
      %s1167 = smul.addr %s1166, 8
      %s1168 = scalar_lea.vmem %s3, %s1167
      // Predicated region
      $region33: #{cnn_forward.4} parent=31 // pred_check
        %p1169 = pneg %p114
      $region34: #{cnn_forward.4} parent=31 // pred_check_branch
        %1171 = sbr.rel (%p1169) target = $region36
      $region35: #{cnn_forward.4} parent=31 // pred_region
        _
      $region36: #{cnn_forward.4} parent=31 // pred_fallthru
        _
    $region32: #{cnn_forward.4} parent=5 // pred_fallthru
      _
    %p1172 = scmp.le.s32.totalorder 2, %s9
    // Predicated region
    $region37: #{cnn_forward.4} parent=5 // pred_check
      %p1173 = pneg %p1172
    $region38: #{cnn_forward.4} parent=5 // pred_check_branch
      %1175 = sbr.rel (%p1173) target = $region40
    $region39: #{cnn_forward.4} parent=5 // pred_region
      %s1176 = ssub.s32 %s9, 2
      // Predicated region
      $region41: #{cnn_forward.4} parent=39 // pred_check
        %p1177 = pneg %p120
      $region42: #{cnn_forward.4} parent=39 // pred_check_branch
        %1179 = sbr.rel (%p1177) target = $region44
      $region43: #{cnn_forward.4} parent=39 // pred_region
        %p1180 = scmp.lt.s32.totalorder %s20, 1
        %s1181 = scalar_select %p1180, %s20, 1
        %p1182 = scmp.lt.s32.totalorder %s21, 13
        %s1183 = scalar_select %p1182, %s21, 13
        %s1184 = smul.addr %s1183, 2
        %s1185 = smul.addr %s1181, 28
        %s1186 = sadd.s32 %s1184, %s1185
        %s1187 = smul.addr %s1186, 8
        %s1188 = scalar_lea.vmem %s3, %s1187
      $region44: #{cnn_forward.4} parent=39 // pred_fallthru
        _
    $region40: #{cnn_forward.4} parent=5 // pred_fallthru
      _
  $region6: #{cnn_forward.4} parent=0 // loop_footer
    %s13 = sadd.s32 1, %s9
  $region7: #{cnn_forward.4} parent=0 // loop_footer_branch
    %8 = sbr.rel target = $region3
  $region8: #{cnn_forward.4} parent=0 // loop_exit
    _

// kernel: cnn_forward.5
$region0: #{cnn_forward.5}
  #allocation0 [shape = 'u32[]', space=smem, size = 0x4, offset = 0x4, fixed_abs, tag = 'smem constant byte address 0x4 - core index']
  #allocation1 [shape = 'u32[72,128]{1,0:T(1,128)}', space=vmem, size = 0x9000, scoped, tag = 'internal scratch']
  %s0 = inlined_call_operand.vmem [shape: f32[2,18,18,16], index: 0, kind: input, shape index: {}]
  %s1 = inlined_call_operand.vmem [shape: f32[16,16,32], index: 1, kind: input, shape index: {}]
  %s2 = inlined_call_operand.vmem [shape: f32[1,32], index: 2, kind: input, shape index: {}]
  %s3 = inlined_call_operand.vmem [shape: f32[2,7,7,32], index: 3, kind: output, shape index: {}]
  %s4 = sld [smem:[#allocation0]]
  $region45: #{cnn_forward.5} parent=0
    _
  %s6 = ssub.s32 1, %s4
  %s7 = scalar_select 0, %s6, %s4
  loop: start=0, step=1, limit=16
  $region2: #{cnn_forward.5} parent=0 // loop_pre_header
    _
  $region3: #{cnn_forward.5} parent=0 // loop_header
    %s9 = sphi 0, %s13
    %p10 = scmp.ge.s32.totalorder %s9, 16
    %s16 = sphi 0, %s28
    %s17 = sphi 0, %s24
    %s18 = sphi 0, %s16
    %s19 = sphi 0, %s17
    %s20 = sphi 0, %s18
    %s21 = sphi 0, %s19
    %s31 = sphi 0, %s33
    %s34 = sphi 0, %s31
    %s35 = sphi 0, %s34
    %s51 = sphi 0, %s35
    %s55 = sphi 0, %s55
    %s57 = sphi 0, %s55
    %s58 = sphi 0, %s57
    %s72 = sphi 0, %s58
    %s76 = sphi 0, %s76
    %s78 = sphi 0, %s76
    %s79 = sphi 0, %s78
    %s93 = sphi 0, %s79
    %s101 = sphi 0, %s103
    %s104 = sphi 0, %s101
    %s105 = sphi 0, %s104
    %s121 = sphi 0, %s105
  $region4: #{cnn_forward.5} parent=0 // loop_header_branch
    %12 = sbr.rel (%p10) target = $region8
  $region5: #{cnn_forward.5} parent=0 // loop_body
    %s14 = ssub.s32 %s9, 1
    %s15 = ssub.s32 %s9, 2
    %s22 = sadd.s32 1, %s17
    %p23 = scmp.ge.s32.totalorder %s22, 7
    %s24 = scalar_select %p23, 0, %s22
    %s25 = sadd.s32 1, %s16
    %s26 = scalar_select %p23, %s25, %s16
    %p27 = scmp.ge.s32.totalorder %s26, 2
    %s28 = scalar_select %p27, 0, %s26
    %s29 = ssub.s32 %s16, %s28
    %p30 = scmp.eq.s32.totalorder %s29, 0
    %s32 = sadd.s32 %s31, 1
    %s33 = scalar_select %p30, %s31, %s32
    %p36 = pneg %p30
    %p37 = scmp.eq.s32.totalorder %s9, 13
    %p38 = por %p36, %p37
    %p39 = scmp.ne.s32.totalorder %s31, %s34
    %p40 = scmp.eq.s32.totalorder %s9, 0
    %p41 = por %p39, %p40
    %p42 = scmp.ne.s32.totalorder %s31, %s34
    %p43 = scmp.eq.s32.totalorder %s14, 13
    %p44 = por %p42, %p43
    %p45 = scmp.ne.s32.totalorder %s34, %s35
    %p46 = scmp.eq.s32.totalorder %s14, 0
    %p47 = por %p45, %p46
    %p48 = scmp.ne.s32.totalorder %s34, %s35
    %p49 = scmp.eq.s32.totalorder %s15, 13
    %p50 = por %p48, %p49
    %p52 = scmp.ne.s32.totalorder %s35, %s51
    %p53 = scmp.eq.s32.totalorder %s15, 0
    %p54 = por %p52, %p53
    %s56 = sadd.s32 %s55, 1
    %p59 = scmp.eq.s32.totalorder %s9, 13
    %p60 = scmp.ne.s32.totalorder %s55, %s57
    %p61 = scmp.eq.s32.totalorder %s9, 0
    %p62 = por %p60, %p61
    %p63 = scmp.ne.s32.totalorder %s55, %s57
    %p64 = scmp.eq.s32.totalorder %s14, 13
    %p65 = por %p63, %p64
    %p66 = scmp.ne.s32.totalorder %s57, %s58
    %p67 = scmp.eq.s32.totalorder %s14, 0
    %p68 = por %p66, %p67
    %p69 = scmp.ne.s32.totalorder %s57, %s58
    %p70 = scmp.eq.s32.totalorder %s15, 13
    %p71 = por %p69, %p70
    %p73 = scmp.ne.s32.totalorder %s58, %s72
    %p74 = scmp.eq.s32.totalorder %s15, 0
    %p75 = por %p73, %p74
    %s77 = sadd.s32 %s76, 1
    %p80 = scmp.eq.s32.totalorder %s9, 13
    %p81 = scmp.ne.s32.totalorder %s76, %s78
    %p82 = scmp.eq.s32.totalorder %s9, 0
    %p83 = por %p81, %p82
    %p84 = scmp.ne.s32.totalorder %s76, %s78
    %p85 = scmp.eq.s32.totalorder %s14, 13
    %p86 = por %p84, %p85
    %p87 = scmp.ne.s32.totalorder %s78, %s79
    %p88 = scmp.eq.s32.totalorder %s14, 0
    %p89 = por %p87, %p88
    %p90 = scmp.ne.s32.totalorder %s78, %s79
    %p91 = scmp.eq.s32.totalorder %s15, 13
    %p92 = por %p90, %p91
    %p94 = scmp.ne.s32.totalorder %s79, %s93
    %p95 = scmp.eq.s32.totalorder %s15, 0
    %p96 = por %p94, %p95
    %s97 = ssub.s32 %s16, %s28
    %s98 = ssub.s32 %s17, %s24
    %s99 = sor.u32 %s97, %s98
    %p100 = scmp.eq.s32.totalorder %s99, 0
    %s102 = sadd.s32 %s101, 1
    %s103 = scalar_select %p100, %s101, %s102
    %p106 = pneg %p100
    %p107 = scmp.eq.s32.totalorder %s9, 13
    %p108 = por %p106, %p107
    %p109 = scmp.ne.s32.totalorder %s101, %s104
    %p110 = scmp.eq.s32.totalorder %s9, 0
    %p111 = por %p109, %p110
    %p112 = scmp.ne.s32.totalorder %s101, %s104
    %p113 = scmp.eq.s32.totalorder %s14, 13
    %p114 = por %p112, %p113
    %p115 = scmp.ne.s32.totalorder %s104, %s105
    %p116 = scmp.eq.s32.totalorder %s14, 0
    %p117 = por %p115, %p116
    %p118 = scmp.ne.s32.totalorder %s104, %s105
    %p119 = scmp.eq.s32.totalorder %s15, 13
    %p120 = por %p118, %p119
    %p122 = scmp.ne.s32.totalorder %s105, %s121
    %p123 = scmp.eq.s32.totalorder %s15, 0
    %p124 = por %p122, %p123
    %p125 = scmp.le.s32.totalorder 1, %s9
    %p126 = scmp.lt.s32.totalorder %s9, 15
    %p127 = pnand %p125, %p126
    %p128 = pneg %p127
    // Predicated region
    $region9: #{cnn_forward.5} parent=5 // pred_check
      _
    $region10: #{cnn_forward.5} parent=5 // pred_check_branch
      %130 = sbr.rel (%p127) target = $region12
    $region11: #{cnn_forward.5} parent=5 // pred_region
      %s131 = ssub.s32 %s9, 1
      // Predicated region
      $region13: #{cnn_forward.5} parent=11 // pred_check
        %p132 = pneg %p68
      $region14: #{cnn_forward.5} parent=11 // pred_check_branch
        %134 = sbr.rel (%p132) target = $region16
      $region15: #{cnn_forward.5} parent=11 // pred_region
        _
      $region16: #{cnn_forward.5} parent=11 // pred_fallthru
        _
      // Predicated region
      $region17: #{cnn_forward.5} parent=11 // pred_check
        %p135 = pneg %p89
      $region18: #{cnn_forward.5} parent=11 // pred_check_branch
        %137 = sbr.rel (%p135) target = $region20
      $region19: #{cnn_forward.5} parent=11 // pred_region
        _
      $region20: #{cnn_forward.5} parent=11 // pred_fallthru
        _
    $region12: #{cnn_forward.5} parent=5 // pred_fallthru
      _
    %p138 = scmp.lt.s32.totalorder %s9, 14
    // Predicated region
    $region21: #{cnn_forward.5} parent=5 // pred_check
      %p139 = pneg %p138
    $region22: #{cnn_forward.5} parent=5 // pred_check_branch
      %141 = sbr.rel (%p139) target = $region24
    $region23: #{cnn_forward.5} parent=5 // pred_region
      // Predicated region
      $region25: #{cnn_forward.5} parent=23 // pred_check
        %p142 = pneg %p41
      $region26: #{cnn_forward.5} parent=23 // pred_check_branch
        %144 = sbr.rel (%p142) target = $region28
      $region27: #{cnn_forward.5} parent=23 // pred_region
        %p145 = scmp.lt.s32.totalorder %s16, 1
        %s146 = scalar_select %p145, %s16, 1
        %s147 = smul.addr %s146, 54
        %s148 = smul.addr %s147, 8
        %s149 = scalar_lea.vmem %s0, %s148
      $region28: #{cnn_forward.5} parent=23 // pred_fallthru
        _
    $region24: #{cnn_forward.5} parent=5 // pred_fallthru
      _
    %p150 = scmp.le.s32.totalorder 1, %s9
    %p151 = scmp.lt.s32.totalorder %s9, 15
    %p152 = pnand %p150, %p151
    %p153 = pneg %p152
    // Predicated region
    $region29: #{cnn_forward.5} parent=5 // pred_check
      _
    $region30: #{cnn_forward.5} parent=5 // pred_check_branch
      %155 = sbr.rel (%p152) target = $region32
    $region31: #{cnn_forward.5} parent=5 // pred_region
      %s156 = ssub.s32 %s9, 1
      %p157 = scmp.lt.s32.totalorder %s18, 1
      %s158 = scalar_select %p157, %s18, 1
      %s159 = smul.addr %s158, 54
      %s160 = smul.addr %s159, 8
      %s161 = scalar_lea.vmem %s0, %s160
      %p162 = pneg %p47
      %p163 = pneg %p44
      %p164 = pneg %p68
      %p165 = pneg %p65
      %p166 = pneg %p89
      %p167 = pneg %p86
      %p168 = pneg %p117
      %p169 = pneg %p114
      %p170 = scmp.lt.s32.totalorder %s18, 1
      %s171 = scalar_select %p170, %s18, 1
      %p172 = scmp.lt.s32.totalorder %s19, 6
      %s173 = scalar_select %p172, %s19, 6
      %s174 = smul.addr %s171, 7
      %s175 = sadd.s32 %s173, %s174
      %s176 = smul.addr %s175, 8
      %s177 = scalar_lea.vmem %s3, %s176
      %p178 = scmp.lt.s32.totalorder %s18, 1
      %s179 = scalar_select %p178, %s18, 1
      %s180 = smul.addr %s179, 54
      %s181 = smul.addr %s180, 8
      %s182 = scalar_lea.vmem %s0, %s181
      %p183 = scmp.lt.s32.totalorder %s18, 1
      %s184 = scalar_select %p183, %s18, 1
      %p185 = scmp.lt.s32.totalorder %s19, 6
      %s186 = scalar_select %p185, %s19, 6
      %s187 = smul.addr %s184, 7
      %s188 = sadd.s32 %s186, %s187
      %s189 = smul.addr %s188, 8
      %s190 = scalar_lea.vmem %s3, %s189
      %s191 = smul.u32 %s19, 2
      %s192 = smul.u32 %s191, 24
      %s193 = scalar_lea.vmem %s182, %s192
      %v194 = vld [vmem:[%s193] sm:$0xff]
      %v195 = vld [vmem:[%s193 + $0x8] sm:$0xff]
      %v196 = vld [vmem:[%s193 + $0x10] sm:$0x3]
      %v197 = vld [vmem:[%s193 + $0x18] sm:$0xff]
      %v198 = vld [vmem:[%s193 + $0x20] sm:$0xff]
      %v199 = vld [vmem:[%s193 + $0x28] sm:$0x3]
      %v200 = vld [vmem:[%s193 + $0x30] sm:$0xff]
      %v201 = vld [vmem:[%s193 + $0x38] sm:$0xff]
      %v202 = vld [vmem:[%s193 + $0x40] sm:$0x3]
      %v203 = vld [vmem:[%s193 + $0x48] sm:$0xff]
      %v204 = vld [vmem:[%s193 + $0x50] sm:$0xff]
      %v205 = vld [vmem:[%s193 + $0x58] sm:$0x3]
      %v206 = vld [vmem:[%s193 + $0x60] sm:$0xff]
      %v207 = vld [vmem:[%s193 + $0x68] sm:$0xff]
      %v208 = vld [vmem:[%s193 + $0x70] sm:$0x3]
      %v209 = vld [vmem:[%s2] sm:$0x1]
      %v210 = vld [vmem:[%s1] sm:$0xff]
      %v211 = vld [vmem:[%s1 + $0x8] sm:$0xff]
      %s212 = scalar_lea.vmem %s1, 16
      %v213 = vld [vmem:[%s212] sm:$0xff]
      %v214 = vld [vmem:[%s212 + $0x8] sm:$0xff]
      %vm217 = vcmask 1046528
      %v218 = vrot.slane %v194, 1
      %v219 = vrot.slane %v195, 1
      %v220 = vsel %vm217, %v218, %v219
      %vm221 = vcmask 130048
      %v222 = vsel %vm221, %v220, 0
      %v224 = vsel %vm221, %v219, 0
      %226 = vmatpush.msra.mxu0 0.0
      %227 = vmatpush.msra.mxu0 0.0
      %228 = vmatpush.msra.mxu0 0.0
      %229 = vmatpush.msra.mxu0 0.0
      %230 = vmatpush.msra.mxu0 0.0
      %231 = vmatpush.msra.mxu0 0.0
      %232 = vmatpush.msra.mxu0 0.0
      %233 = vmatpush.msra.mxu0 0.0
      %234 = vmatpush.msra.mxu0 0.0
      %235 = vmatpush.msra.mxu0 0.0
      %236 = vmatpush.msra.mxu0 0.0
      %237 = vmatpush.msra.mxu0 0.0
      %238 = vmatpush.msra.mxu0 0.0
      %239 = vmatpush.msra.mxu0 0.0
      %240 = vmatpush.msra.mxu0 %v214
      %241 = vmatpush.msra.mxu0 %v213
      %242 = vmatmul.f32.gmra.mxu0 %v222
      %v243 = vpop.f32.mrf.mxu0
      %v244 = vadd.f32 0.0, %v243
      %245 = vmatmul.f32.gmra.mxu0 %v224
      %v246 = vpop.f32.mrf.mxu0
      %v247 = vadd.f32 0.0, %v246
      %248 = vdwg.mxu0
      %v249 = vsel %vm221, %v194, 0
      %v251 = vsel %vm221, %v195, 0
      %253 = vmatpush.msra.mxu0 0.0
      %254 = vmatpush.msra.mxu0 0.0
      %255 = vmatpush.msra.mxu0 0.0
      %256 = vmatpush.msra.mxu0 0.0
      %257 = vmatpush.msra.mxu0 0.0
      %258 = vmatpush.msra.mxu0 0.0
      %259 = vmatpush.msra.mxu0 0.0
      %260 = vmatpush.msra.mxu0 0.0
      %261 = vmatpush.msra.mxu0 0.0
      %262 = vmatpush.msra.mxu0 0.0
      %263 = vmatpush.msra.mxu0 0.0
      %264 = vmatpush.msra.mxu0 0.0
      %265 = vmatpush.msra.mxu0 0.0
      %266 = vmatpush.msra.mxu0 0.0
      %267 = vmatpush.msra.mxu0 %v211
      %268 = vmatpush.msra.mxu0 %v210
      %269 = vmatmul.f32.gmra.mxu0 %v249
      %v270 = vpop.f32.mrf.mxu0
      %v271 = vadd.f32 %v244, %v270
      %272 = vmatmul.f32.gmra.mxu0 %v251
      %v273 = vpop.f32.mrf.mxu0
      %v274 = vadd.f32 %v247, %v273
      %275 = vdwg.mxu0
      %s276 = scalar_lea.vmem %s1, 32
      %v277 = vld [vmem:[%s276] sm:$0xff]
      %v278 = vld [vmem:[%s276 + $0x8] sm:$0xff]
      %vm279 = vcmask 1045504
      %v280 = vrot.slane %v194, 2
      %v281 = vrot.slane %v195, 2
      %v282 = vsel %vm279, %v280, %v281
      %v283 = vsel %vm221, %v282, 0
      %v285 = vsel %vm221, %v281, 0
      %287 = vmatpush.msra.mxu0 0.0
      %288 = vmatpush.msra.mxu0 0.0
      %289 = vmatpush.msra.mxu0 0.0
      %290 = vmatpush.msra.mxu0 0.0
      %291 = vmatpush.msra.mxu0 0.0
      %292 = vmatpush.msra.mxu0 0.0
      %293 = vmatpush.msra.mxu0 0.0
      %294 = vmatpush.msra.mxu0 0.0
      %295 = vmatpush.msra.mxu0 0.0
      %296 = vmatpush.msra.mxu0 0.0
      %297 = vmatpush.msra.mxu0 0.0
      %298 = vmatpush.msra.mxu0 0.0
      %299 = vmatpush.msra.mxu0 0.0
      %300 = vmatpush.msra.mxu0 0.0
      %301 = vmatpush.msra.mxu0 %v278
      %302 = vmatpush.msra.mxu0 %v277
      %303 = vmatmul.f32.gmra.mxu0 %v283
      %v304 = vpop.f32.mrf.mxu0
      %v305 = vadd.f32 0.0, %v304
      %306 = vmatmul.f32.gmra.mxu0 %v285
      %v307 = vpop.f32.mrf.mxu0
      %v308 = vadd.f32 0.0, %v307
      %309 = vdwg.mxu0
      %v310 = vadd.f32 %v271, %v305
      %v311 = vadd.f32 %v274, %v308
      %s312 = scalar_lea.vmem %s1, 48
      %v313 = vld [vmem:[%s312] sm:$0xff]
      %v314 = vld [vmem:[%s312 + $0x8] sm:$0xff]
      %vm316 = vcmask 1044480
      %v317 = vrot.slane %v194, 3
      %v318 = vrot.slane %v195, 3
      %v319 = vsel %vm316, %v317, %v318
      %v320 = vrot.slane %v196, 3
      %v321 = vsel %vm316, %v318, %v320
      %v322 = vsel %vm221, %v319, 0
      %v324 = vsel %vm221, %v321, 0
      %326 = vmatpush.msra.mxu0 0.0
      %327 = vmatpush.msra.mxu0 0.0
      %328 = vmatpush.msra.mxu0 0.0
      %329 = vmatpush.msra.mxu0 0.0
      %330 = vmatpush.msra.mxu0 0.0
      %331 = vmatpush.msra.mxu0 0.0
      %332 = vmatpush.msra.mxu0 0.0
      %333 = vmatpush.msra.mxu0 0.0
      %334 = vmatpush.msra.mxu0 0.0
      %335 = vmatpush.msra.mxu0 0.0
      %336 = vmatpush.msra.mxu0 0.0
      %337 = vmatpush.msra.mxu0 0.0
      %338 = vmatpush.msra.mxu0 0.0
      %339 = vmatpush.msra.mxu0 0.0
      %340 = vmatpush.msra.mxu0 %v314
      %341 = vmatpush.msra.mxu0 %v313
      %342 = vmatmul.f32.gmra.mxu0 %v322
      %v343 = vpop.f32.mrf.mxu0
      %v344 = vadd.f32 0.0, %v343
      %345 = vmatmul.f32.gmra.mxu0 %v324
      %v346 = vpop.f32.mrf.mxu0
      %v347 = vadd.f32 0.0, %v346
      %348 = vdwg.mxu0
      %v349 = vadd.f32 %v310, %v344
      %v350 = vadd.f32 %v311, %v347
      %s351 = scalar_lea.vmem %s1, 64
      %v352 = vld [vmem:[%s351] sm:$0xff]
      %v353 = vld [vmem:[%s351 + $0x8] sm:$0xff]
      %v355 = vsel %vm221, %v197, 0
      %v358 = vsel %vm221, %v198, 0
      %360 = vmatpush.msra.mxu0 0.0
      %361 = vmatpush.msra.mxu0 0.0
      %362 = vmatpush.msra.mxu0 0.0
      %363 = vmatpush.msra.mxu0 0.0
      %364 = vmatpush.msra.mxu0 0.0
      %365 = vmatpush.msra.mxu0 0.0
      %366 = vmatpush.msra.mxu0 0.0
      %367 = vmatpush.msra.mxu0 0.0
      %368 = vmatpush.msra.mxu0 0.0
      %369 = vmatpush.msra.mxu0 0.0
      %370 = vmatpush.msra.mxu0 0.0
      %371 = vmatpush.msra.mxu0 0.0
      %372 = vmatpush.msra.mxu0 0.0
      %373 = vmatpush.msra.mxu0 0.0
      %374 = vmatpush.msra.mxu0 %v353
      %375 = vmatpush.msra.mxu0 %v352
      %376 = vmatmul.f32.gmra.mxu0 %v355
      %v377 = vpop.f32.mrf.mxu0
      %v378 = vadd.f32 0.0, %v377
      %379 = vmatmul.f32.gmra.mxu0 %v358
      %v380 = vpop.f32.mrf.mxu0
      %v381 = vadd.f32 0.0, %v380
      %382 = vdwg.mxu0
      %v383 = vadd.f32 %v349, %v378
      %v384 = vadd.f32 %v350, %v381
      %s385 = scalar_lea.vmem %s1, 80
      %v386 = vld [vmem:[%s385] sm:$0xff]
      %v387 = vld [vmem:[%s385 + $0x8] sm:$0xff]
      %v388 = vrot.slane %v197, 1
      %v389 = vrot.slane %v198, 1
      %v390 = vsel %vm217, %v388, %v389
      %v391 = vsel %vm221, %v390, 0
      %v393 = vsel %vm221, %v389, 0
      %395 = vmatpush.msra.mxu0 0.0
      %396 = vmatpush.msra.mxu0 0.0
      %397 = vmatpush.msra.mxu0 0.0
      %398 = vmatpush.msra.mxu0 0.0
      %399 = vmatpush.msra.mxu0 0.0
      %400 = vmatpush.msra.mxu0 0.0
      %401 = vmatpush.msra.mxu0 0.0
      %402 = vmatpush.msra.mxu0 0.0
      %403 = vmatpush.msra.mxu0 0.0
      %404 = vmatpush.msra.mxu0 0.0
      %405 = vmatpush.msra.mxu0 0.0
      %406 = vmatpush.msra.mxu0 0.0
      %407 = vmatpush.msra.mxu0 0.0
      %408 = vmatpush.msra.mxu0 0.0
      %409 = vmatpush.msra.mxu0 %v387
      %410 = vmatpush.msra.mxu0 %v386
      %411 = vmatmul.f32.gmra.mxu0 %v391
      %v412 = vpop.f32.mrf.mxu0
      %v413 = vadd.f32 0.0, %v412
      %414 = vmatmul.f32.gmra.mxu0 %v393
      %v415 = vpop.f32.mrf.mxu0
      %v416 = vadd.f32 0.0, %v415
      %417 = vdwg.mxu0
      %v418 = vadd.f32 %v383, %v413
      %v419 = vadd.f32 %v384, %v416
      %s420 = scalar_lea.vmem %s1, 96
      %v421 = vld [vmem:[%s420] sm:$0xff]
      %v422 = vld [vmem:[%s420 + $0x8] sm:$0xff]
      %v423 = vrot.slane %v197, 2
      %v424 = vrot.slane %v198, 2
      %v425 = vsel %vm279, %v423, %v424
      %v426 = vsel %vm221, %v425, 0
      %v428 = vsel %vm221, %v424, 0
      %430 = vmatpush.msra.mxu0 0.0
      %431 = vmatpush.msra.mxu0 0.0
      %432 = vmatpush.msra.mxu0 0.0
      %433 = vmatpush.msra.mxu0 0.0
      %434 = vmatpush.msra.mxu0 0.0
      %435 = vmatpush.msra.mxu0 0.0
      %436 = vmatpush.msra.mxu0 0.0
      %437 = vmatpush.msra.mxu0 0.0
      %438 = vmatpush.msra.mxu0 0.0
      %439 = vmatpush.msra.mxu0 0.0
      %440 = vmatpush.msra.mxu0 0.0
      %441 = vmatpush.msra.mxu0 0.0
      %442 = vmatpush.msra.mxu0 0.0
      %443 = vmatpush.msra.mxu0 0.0
      %444 = vmatpush.msra.mxu0 %v422
      %445 = vmatpush.msra.mxu0 %v421
      %446 = vmatmul.f32.gmra.mxu0 %v426
      %v447 = vpop.f32.mrf.mxu0
      %v448 = vadd.f32 0.0, %v447
      %449 = vmatmul.f32.gmra.mxu0 %v428
      %v450 = vpop.f32.mrf.mxu0
      %v451 = vadd.f32 0.0, %v450
      %452 = vdwg.mxu0
      %v453 = vadd.f32 %v418, %v448
      %v454 = vadd.f32 %v419, %v451
      %s455 = scalar_lea.vmem %s1, 112
      %v456 = vld [vmem:[%s455] sm:$0xff]
      %v457 = vld [vmem:[%s455 + $0x8] sm:$0xff]
      %v459 = vrot.slane %v197, 3
      %v460 = vrot.slane %v198, 3
      %v461 = vsel %vm316, %v459, %v460
      %v462 = vrot.slane %v199, 3
      %v463 = vsel %vm316, %v460, %v462
      %v464 = vsel %vm221, %v461, 0
      %v466 = vsel %vm221, %v463, 0
      %468 = vmatpush.msra.mxu0 0.0
      %469 = vmatpush.msra.mxu0 0.0
      %470 = vmatpush.msra.mxu0 0.0
      %471 = vmatpush.msra.mxu0 0.0
      %472 = vmatpush.msra.mxu0 0.0
      %473 = vmatpush.msra.mxu0 0.0
      %474 = vmatpush.msra.mxu0 0.0
      %475 = vmatpush.msra.mxu0 0.0
      %476 = vmatpush.msra.mxu0 0.0
      %477 = vmatpush.msra.mxu0 0.0
      %478 = vmatpush.msra.mxu0 0.0
      %479 = vmatpush.msra.mxu0 0.0
      %480 = vmatpush.msra.mxu0 0.0
      %481 = vmatpush.msra.mxu0 0.0
      %482 = vmatpush.msra.mxu0 %v457
      %483 = vmatpush.msra.mxu0 %v456
      %484 = vmatmul.f32.gmra.mxu0 %v464
      %v485 = vpop.f32.mrf.mxu0
      %v486 = vadd.f32 0.0, %v485
      %487 = vmatmul.f32.gmra.mxu0 %v466
      %v488 = vpop.f32.mrf.mxu0
      %v489 = vadd.f32 0.0, %v488
      %490 = vdwg.mxu0
      %v491 = vadd.f32 %v453, %v486
      %v492 = vadd.f32 %v454, %v489
      %s493 = scalar_lea.vmem %s1, 128
      %v494 = vld [vmem:[%s493] sm:$0xff]
      %v495 = vld [vmem:[%s493 + $0x8] sm:$0xff]
      %v497 = vsel %vm221, %v200, 0
      %v500 = vsel %vm221, %v201, 0
      %502 = vmatpush.msra.mxu0 0.0
      %503 = vmatpush.msra.mxu0 0.0
      %504 = vmatpush.msra.mxu0 0.0
      %505 = vmatpush.msra.mxu0 0.0
      %506 = vmatpush.msra.mxu0 0.0
      %507 = vmatpush.msra.mxu0 0.0
      %508 = vmatpush.msra.mxu0 0.0
      %509 = vmatpush.msra.mxu0 0.0
      %510 = vmatpush.msra.mxu0 0.0
      %511 = vmatpush.msra.mxu0 0.0
      %512 = vmatpush.msra.mxu0 0.0
      %513 = vmatpush.msra.mxu0 0.0
      %514 = vmatpush.msra.mxu0 0.0
      %515 = vmatpush.msra.mxu0 0.0
      %516 = vmatpush.msra.mxu0 %v495
      %517 = vmatpush.msra.mxu0 %v494
      %518 = vmatmul.f32.gmra.mxu0 %v497
      %v519 = vpop.f32.mrf.mxu0
      %v520 = vadd.f32 0.0, %v519
      %521 = vmatmul.f32.gmra.mxu0 %v500
      %v522 = vpop.f32.mrf.mxu0
      %v523 = vadd.f32 0.0, %v522
      %524 = vdwg.mxu0
      %v525 = vadd.f32 %v491, %v520
      %v526 = vadd.f32 %v492, %v523
      %s527 = scalar_lea.vmem %s1, 144
      %v528 = vld [vmem:[%s527] sm:$0xff]
      %v529 = vld [vmem:[%s527 + $0x8] sm:$0xff]
      %v530 = vrot.slane %v200, 1
      %v531 = vrot.slane %v201, 1
      %v532 = vsel %vm217, %v530, %v531
      %v533 = vsel %vm221, %v532, 0
      %v535 = vsel %vm221, %v531, 0
      %537 = vmatpush.msra.mxu0 0.0
      %538 = vmatpush.msra.mxu0 0.0
      %539 = vmatpush.msra.mxu0 0.0
      %540 = vmatpush.msra.mxu0 0.0
      %541 = vmatpush.msra.mxu0 0.0
      %542 = vmatpush.msra.mxu0 0.0
      %543 = vmatpush.msra.mxu0 0.0
      %544 = vmatpush.msra.mxu0 0.0
      %545 = vmatpush.msra.mxu0 0.0
      %546 = vmatpush.msra.mxu0 0.0
      %547 = vmatpush.msra.mxu0 0.0
      %548 = vmatpush.msra.mxu0 0.0
      %549 = vmatpush.msra.mxu0 0.0
      %550 = vmatpush.msra.mxu0 0.0
      %551 = vmatpush.msra.mxu0 %v529
      %552 = vmatpush.msra.mxu0 %v528
      %553 = vmatmul.f32.gmra.mxu0 %v533
      %v554 = vpop.f32.mrf.mxu0
      %v555 = vadd.f32 0.0, %v554
      %556 = vmatmul.f32.gmra.mxu0 %v535
      %v557 = vpop.f32.mrf.mxu0
      %v558 = vadd.f32 0.0, %v557
      %559 = vdwg.mxu0
      %v560 = vadd.f32 %v525, %v555
      %v561 = vadd.f32 %v526, %v558
      %s562 = scalar_lea.vmem %s1, 160
      %v563 = vld [vmem:[%s562] sm:$0xff]
      %v564 = vld [vmem:[%s562 + $0x8] sm:$0xff]
      %v565 = vrot.slane %v200, 2
      %v566 = vrot.slane %v201, 2
      %v567 = vsel %vm279, %v565, %v566
      %v568 = vsel %vm221, %v567, 0
      %v570 = vsel %vm221, %v566, 0
      %572 = vmatpush.msra.mxu0 0.0
      %573 = vmatpush.msra.mxu0 0.0
      %574 = vmatpush.msra.mxu0 0.0
      %575 = vmatpush.msra.mxu0 0.0
      %576 = vmatpush.msra.mxu0 0.0
      %577 = vmatpush.msra.mxu0 0.0
      %578 = vmatpush.msra.mxu0 0.0
      %579 = vmatpush.msra.mxu0 0.0
      %580 = vmatpush.msra.mxu0 0.0
      %581 = vmatpush.msra.mxu0 0.0
      %582 = vmatpush.msra.mxu0 0.0
      %583 = vmatpush.msra.mxu0 0.0
      %584 = vmatpush.msra.mxu0 0.0
      %585 = vmatpush.msra.mxu0 0.0
      %586 = vmatpush.msra.mxu0 %v564
      %587 = vmatpush.msra.mxu0 %v563
      %588 = vmatmul.f32.gmra.mxu0 %v568
      %v589 = vpop.f32.mrf.mxu0
      %v590 = vadd.f32 0.0, %v589
      %591 = vmatmul.f32.gmra.mxu0 %v570
      %v592 = vpop.f32.mrf.mxu0
      %v593 = vadd.f32 0.0, %v592
      %594 = vdwg.mxu0
      %v595 = vadd.f32 %v560, %v590
      %v596 = vadd.f32 %v561, %v593
      %s597 = scalar_lea.vmem %s1, 176
      %v598 = vld [vmem:[%s597] sm:$0xff]
      %v599 = vld [vmem:[%s597 + $0x8] sm:$0xff]
      %v601 = vrot.slane %v200, 3
      %v602 = vrot.slane %v201, 3
      %v603 = vsel %vm316, %v601, %v602
      %v604 = vrot.slane %v202, 3
      %v605 = vsel %vm316, %v602, %v604
      %v606 = vsel %vm221, %v603, 0
      %v608 = vsel %vm221, %v605, 0
      %610 = vmatpush.msra.mxu0 0.0
      %611 = vmatpush.msra.mxu0 0.0
      %612 = vmatpush.msra.mxu0 0.0
      %613 = vmatpush.msra.mxu0 0.0
      %614 = vmatpush.msra.mxu0 0.0
      %615 = vmatpush.msra.mxu0 0.0
      %616 = vmatpush.msra.mxu0 0.0
      %617 = vmatpush.msra.mxu0 0.0
      %618 = vmatpush.msra.mxu0 0.0
      %619 = vmatpush.msra.mxu0 0.0
      %620 = vmatpush.msra.mxu0 0.0
      %621 = vmatpush.msra.mxu0 0.0
      %622 = vmatpush.msra.mxu0 0.0
      %623 = vmatpush.msra.mxu0 0.0
      %624 = vmatpush.msra.mxu0 %v599
      %625 = vmatpush.msra.mxu0 %v598
      %626 = vmatmul.f32.gmra.mxu0 %v606
      %v627 = vpop.f32.mrf.mxu0
      %v628 = vadd.f32 0.0, %v627
      %629 = vmatmul.f32.gmra.mxu0 %v608
      %v630 = vpop.f32.mrf.mxu0
      %v631 = vadd.f32 0.0, %v630
      %632 = vdwg.mxu0
      %v633 = vadd.f32 %v595, %v628
      %v634 = vadd.f32 %v596, %v631
      %s635 = scalar_lea.vmem %s1, 192
      %v636 = vld [vmem:[%s635] sm:$0xff]
      %v637 = vld [vmem:[%s635 + $0x8] sm:$0xff]
      %v639 = vsel %vm221, %v203, 0
      %v642 = vsel %vm221, %v204, 0
      %644 = vmatpush.msra.mxu0 0.0
      %645 = vmatpush.msra.mxu0 0.0
      %646 = vmatpush.msra.mxu0 0.0
      %647 = vmatpush.msra.mxu0 0.0
      %648 = vmatpush.msra.mxu0 0.0
      %649 = vmatpush.msra.mxu0 0.0
      %650 = vmatpush.msra.mxu0 0.0
      %651 = vmatpush.msra.mxu0 0.0
      %652 = vmatpush.msra.mxu0 0.0
      %653 = vmatpush.msra.mxu0 0.0
      %654 = vmatpush.msra.mxu0 0.0
      %655 = vmatpush.msra.mxu0 0.0
      %656 = vmatpush.msra.mxu0 0.0
      %657 = vmatpush.msra.mxu0 0.0
      %658 = vmatpush.msra.mxu0 %v637
      %659 = vmatpush.msra.mxu0 %v636
      %660 = vmatmul.f32.gmra.mxu0 %v639
      %v661 = vpop.f32.mrf.mxu0
      %v662 = vadd.f32 0.0, %v661
      %663 = vmatmul.f32.gmra.mxu0 %v642
      %v664 = vpop.f32.mrf.mxu0
      %v665 = vadd.f32 0.0, %v664
      %666 = vdwg.mxu0
      %v667 = vadd.f32 %v633, %v662
      %v668 = vadd.f32 %v634, %v665
      %s669 = scalar_lea.vmem %s1, 208
      %v670 = vld [vmem:[%s669] sm:$0xff]
      %v671 = vld [vmem:[%s669 + $0x8] sm:$0xff]
      %v672 = vrot.slane %v203, 1
      %v673 = vrot.slane %v204, 1
      %v674 = vsel %vm217, %v672, %v673
      %v675 = vsel %vm221, %v674, 0
      %v677 = vsel %vm221, %v673, 0
      %679 = vmatpush.msra.mxu0 0.0
      %680 = vmatpush.msra.mxu0 0.0
      %681 = vmatpush.msra.mxu0 0.0
      %682 = vmatpush.msra.mxu0 0.0
      %683 = vmatpush.msra.mxu0 0.0
      %684 = vmatpush.msra.mxu0 0.0
      %685 = vmatpush.msra.mxu0 0.0
      %686 = vmatpush.msra.mxu0 0.0
      %687 = vmatpush.msra.mxu0 0.0
      %688 = vmatpush.msra.mxu0 0.0
      %689 = vmatpush.msra.mxu0 0.0
      %690 = vmatpush.msra.mxu0 0.0
      %691 = vmatpush.msra.mxu0 0.0
      %692 = vmatpush.msra.mxu0 0.0
      %693 = vmatpush.msra.mxu0 %v671
      %694 = vmatpush.msra.mxu0 %v670
      %695 = vmatmul.f32.gmra.mxu0 %v675
      %v696 = vpop.f32.mrf.mxu0
      %v697 = vadd.f32 0.0, %v696
      %698 = vmatmul.f32.gmra.mxu0 %v677
      %v699 = vpop.f32.mrf.mxu0
      %v700 = vadd.f32 0.0, %v699
      %701 = vdwg.mxu0
      %v702 = vadd.f32 %v667, %v697
      %v703 = vadd.f32 %v668, %v700
      %s704 = scalar_lea.vmem %s1, 224
      %v705 = vld [vmem:[%s704] sm:$0xff]
      %v706 = vld [vmem:[%s704 + $0x8] sm:$0xff]
      %v707 = vrot.slane %v203, 2
      %v708 = vrot.slane %v204, 2
      %v709 = vsel %vm279, %v707, %v708
      %v710 = vsel %vm221, %v709, 0
      %v712 = vsel %vm221, %v708, 0
      %714 = vmatpush.msra.mxu0 0.0
      %715 = vmatpush.msra.mxu0 0.0
      %716 = vmatpush.msra.mxu0 0.0
      %717 = vmatpush.msra.mxu0 0.0
      %718 = vmatpush.msra.mxu0 0.0
      %719 = vmatpush.msra.mxu0 0.0
      %720 = vmatpush.msra.mxu0 0.0
      %721 = vmatpush.msra.mxu0 0.0
      %722 = vmatpush.msra.mxu0 0.0
      %723 = vmatpush.msra.mxu0 0.0
      %724 = vmatpush.msra.mxu0 0.0
      %725 = vmatpush.msra.mxu0 0.0
      %726 = vmatpush.msra.mxu0 0.0
      %727 = vmatpush.msra.mxu0 0.0
      %728 = vmatpush.msra.mxu0 %v706
      %729 = vmatpush.msra.mxu0 %v705
      %730 = vmatmul.f32.gmra.mxu0 %v710
      %v731 = vpop.f32.mrf.mxu0
      %v732 = vadd.f32 0.0, %v731
      %733 = vmatmul.f32.gmra.mxu0 %v712
      %v734 = vpop.f32.mrf.mxu0
      %v735 = vadd.f32 0.0, %v734
      %736 = vdwg.mxu0
      %v737 = vadd.f32 %v702, %v732
      %v738 = vadd.f32 %v703, %v735
      %s739 = scalar_lea.vmem %s1, 240
      %v740 = vld [vmem:[%s739] sm:$0xff]
      %v741 = vld [vmem:[%s739 + $0x8] sm:$0xff]
      %v743 = vrot.slane %v203, 3
      %v744 = vrot.slane %v204, 3
      %v745 = vsel %vm316, %v743, %v744
      %v746 = vrot.slane %v205, 3
      %v747 = vsel %vm316, %v744, %v746
      %v748 = vsel %vm221, %v745, 0
      %v750 = vsel %vm221, %v747, 0
      %752 = vmatpush.msra.mxu0 0.0
      %753 = vmatpush.msra.mxu0 0.0
      %754 = vmatpush.msra.mxu0 0.0
      %755 = vmatpush.msra.mxu0 0.0
      %756 = vmatpush.msra.mxu0 0.0
      %757 = vmatpush.msra.mxu0 0.0
      %758 = vmatpush.msra.mxu0 0.0
      %759 = vmatpush.msra.mxu0 0.0
      %760 = vmatpush.msra.mxu0 0.0
      %761 = vmatpush.msra.mxu0 0.0
      %762 = vmatpush.msra.mxu0 0.0
      %763 = vmatpush.msra.mxu0 0.0
      %764 = vmatpush.msra.mxu0 0.0
      %765 = vmatpush.msra.mxu0 0.0
      %766 = vmatpush.msra.mxu0 %v741
      %767 = vmatpush.msra.mxu0 %v740
      %768 = vmatmul.f32.gmra.mxu0 %v748
      %v769 = vpop.f32.mrf.mxu0
      %v770 = vadd.f32 0.0, %v769
      %771 = vmatmul.f32.gmra.mxu0 %v750
      %v772 = vpop.f32.mrf.mxu0
      %v773 = vadd.f32 0.0, %v772
      %774 = vdwg.mxu0
      %v775 = vadd.f32 %v737, %v770
      %v776 = vadd.f32 %v738, %v773
      %v778 = vperm.slane %v209, 0
      %v780 = vadd.f32 %v775, %v778
      %v781 = vadd.f32 %v776, %v778
      %v782 = vmax.f32 %v780, 0.0
      %v783 = vmax.f32 %v781, 0.0
      %784 = vmatpush.msra.mxu0 0.0
      %785 = vmatpush.msra.mxu0 0.0
      %786 = vmatpush.msra.mxu0 0.0
      %787 = vmatpush.msra.mxu0 0.0
      %788 = vmatpush.msra.mxu0 0.0
      %789 = vmatpush.msra.mxu0 0.0
      %790 = vmatpush.msra.mxu0 0.0
      %791 = vmatpush.msra.mxu0 0.0
      %792 = vmatpush.msra.mxu0 0.0
      %793 = vmatpush.msra.mxu0 0.0
      %794 = vmatpush.msra.mxu0 0.0
      %795 = vmatpush.msra.mxu0 0.0
      %796 = vmatpush.msra.mxu0 0.0
      %797 = vmatpush.msra.mxu0 0.0
      %798 = vmatpush.msra.mxu0 %v214
      %799 = vmatpush.msra.mxu0 %v213
      %800 = vmatmul.f32.gmra.mxu0 %v391
      %v801 = vpop.f32.mrf.mxu0
      %v802 = vadd.f32 0.0, %v801
      %803 = vmatmul.f32.gmra.mxu0 %v393
      %v804 = vpop.f32.mrf.mxu0
      %v805 = vadd.f32 0.0, %v804
      %806 = vdwg.mxu0
      %807 = vmatpush.msra.mxu0 0.0
      %808 = vmatpush.msra.mxu0 0.0
      %809 = vmatpush.msra.mxu0 0.0
      %810 = vmatpush.msra.mxu0 0.0
      %811 = vmatpush.msra.mxu0 0.0
      %812 = vmatpush.msra.mxu0 0.0
      %813 = vmatpush.msra.mxu0 0.0
      %814 = vmatpush.msra.mxu0 0.0
      %815 = vmatpush.msra.mxu0 0.0
      %816 = vmatpush.msra.mxu0 0.0
      %817 = vmatpush.msra.mxu0 0.0
      %818 = vmatpush.msra.mxu0 0.0
      %819 = vmatpush.msra.mxu0 0.0
      %820 = vmatpush.msra.mxu0 0.0
      %821 = vmatpush.msra.mxu0 %v211
      %822 = vmatpush.msra.mxu0 %v210
      %823 = vmatmul.f32.gmra.mxu0 %v355
      %v824 = vpop.f32.mrf.mxu0
      %v825 = vadd.f32 %v802, %v824
      %826 = vmatmul.f32.gmra.mxu0 %v358
      %v827 = vpop.f32.mrf.mxu0
      %v828 = vadd.f32 %v805, %v827
      %829 = vdwg.mxu0
      %830 = vmatpush.msra.mxu0 0.0
      %831 = vmatpush.msra.mxu0 0.0
      %832 = vmatpush.msra.mxu0 0.0
      %833 = vmatpush.msra.mxu0 0.0
      %834 = vmatpush.msra.mxu0 0.0
      %835 = vmatpush.msra.mxu0 0.0
      %836 = vmatpush.msra.mxu0 0.0
      %837 = vmatpush.msra.mxu0 0.0
      %838 = vmatpush.msra.mxu0 0.0
      %839 = vmatpush.msra.mxu0 0.0
      %840 = vmatpush.msra.mxu0 0.0
      %841 = vmatpush.msra.mxu0 0.0
      %842 = vmatpush.msra.mxu0 0.0
      %843 = vmatpush.msra.mxu0 0.0
      %844 = vmatpush.msra.mxu0 %v278
      %845 = vmatpush.msra.mxu0 %v277
      %846 = vmatmul.f32.gmra.mxu0 %v426
      %v847 = vpop.f32.mrf.mxu0
      %v848 = vadd.f32 0.0, %v847
      %849 = vmatmul.f32.gmra.mxu0 %v428
      %v850 = vpop.f32.mrf.mxu0
      %v851 = vadd.f32 0.0, %v850
      %852 = vdwg.mxu0
      %v853 = vadd.f32 %v825, %v848
      %v854 = vadd.f32 %v828, %v851
      %855 = vmatpush.msra.mxu0 0.0
      %856 = vmatpush.msra.mxu0 0.0
      %857 = vmatpush.msra.mxu0 0.0
      %858 = vmatpush.msra.mxu0 0.0
      %859 = vmatpush.msra.mxu0 0.0
      %860 = vmatpush.msra.mxu0 0.0
      %861 = vmatpush.msra.mxu0 0.0
      %862 = vmatpush.msra.mxu0 0.0
      %863 = vmatpush.msra.mxu0 0.0
      %864 = vmatpush.msra.mxu0 0.0
      %865 = vmatpush.msra.mxu0 0.0
      %866 = vmatpush.msra.mxu0 0.0
      %867 = vmatpush.msra.mxu0 0.0
      %868 = vmatpush.msra.mxu0 0.0
      %869 = vmatpush.msra.mxu0 %v314
      %870 = vmatpush.msra.mxu0 %v313
      %871 = vmatmul.f32.gmra.mxu0 %v464
      %v872 = vpop.f32.mrf.mxu0
      %v873 = vadd.f32 0.0, %v872
      %874 = vmatmul.f32.gmra.mxu0 %v466
      %v875 = vpop.f32.mrf.mxu0
      %v876 = vadd.f32 0.0, %v875
      %877 = vdwg.mxu0
      %v878 = vadd.f32 %v853, %v873
      %v879 = vadd.f32 %v854, %v876
      %880 = vmatpush.msra.mxu0 0.0
      %881 = vmatpush.msra.mxu0 0.0
      %882 = vmatpush.msra.mxu0 0.0
      %883 = vmatpush.msra.mxu0 0.0
      %884 = vmatpush.msra.mxu0 0.0
      %885 = vmatpush.msra.mxu0 0.0
      %886 = vmatpush.msra.mxu0 0.0
      %887 = vmatpush.msra.mxu0 0.0
      %888 = vmatpush.msra.mxu0 0.0
      %889 = vmatpush.msra.mxu0 0.0
      %890 = vmatpush.msra.mxu0 0.0
      %891 = vmatpush.msra.mxu0 0.0
      %892 = vmatpush.msra.mxu0 0.0
      %893 = vmatpush.msra.mxu0 0.0
      %894 = vmatpush.msra.mxu0 %v353
      %895 = vmatpush.msra.mxu0 %v352
      %896 = vmatmul.f32.gmra.mxu0 %v497
      %v897 = vpop.f32.mrf.mxu0
      %v898 = vadd.f32 0.0, %v897
      %899 = vmatmul.f32.gmra.mxu0 %v500
      %v900 = vpop.f32.mrf.mxu0
      %v901 = vadd.f32 0.0, %v900
      %902 = vdwg.mxu0
      %v903 = vadd.f32 %v878, %v898
      %v904 = vadd.f32 %v879, %v901
      %905 = vmatpush.msra.mxu0 0.0
      %906 = vmatpush.msra.mxu0 0.0
      %907 = vmatpush.msra.mxu0 0.0
      %908 = vmatpush.msra.mxu0 0.0
      %909 = vmatpush.msra.mxu0 0.0
      %910 = vmatpush.msra.mxu0 0.0
      %911 = vmatpush.msra.mxu0 0.0
      %912 = vmatpush.msra.mxu0 0.0
      %913 = vmatpush.msra.mxu0 0.0
      %914 = vmatpush.msra.mxu0 0.0
      %915 = vmatpush.msra.mxu0 0.0
      %916 = vmatpush.msra.mxu0 0.0
      %917 = vmatpush.msra.mxu0 0.0
      %918 = vmatpush.msra.mxu0 0.0
      %919 = vmatpush.msra.mxu0 %v387
      %920 = vmatpush.msra.mxu0 %v386
      %921 = vmatmul.f32.gmra.mxu0 %v533
      %v922 = vpop.f32.mrf.mxu0
      %v923 = vadd.f32 0.0, %v922
      %924 = vmatmul.f32.gmra.mxu0 %v535
      %v925 = vpop.f32.mrf.mxu0
      %v926 = vadd.f32 0.0, %v925
      %927 = vdwg.mxu0
      %v928 = vadd.f32 %v903, %v923
      %v929 = vadd.f32 %v904, %v926
      %930 = vmatpush.msra.mxu0 0.0
      %931 = vmatpush.msra.mxu0 0.0
      %932 = vmatpush.msra.mxu0 0.0
      %933 = vmatpush.msra.mxu0 0.0
      %934 = vmatpush.msra.mxu0 0.0
      %935 = vmatpush.msra.mxu0 0.0
      %936 = vmatpush.msra.mxu0 0.0
      %937 = vmatpush.msra.mxu0 0.0
      %938 = vmatpush.msra.mxu0 0.0
      %939 = vmatpush.msra.mxu0 0.0
      %940 = vmatpush.msra.mxu0 0.0
      %941 = vmatpush.msra.mxu0 0.0
      %942 = vmatpush.msra.mxu0 0.0
      %943 = vmatpush.msra.mxu0 0.0
      %944 = vmatpush.msra.mxu0 %v422
      %945 = vmatpush.msra.mxu0 %v421
      %946 = vmatmul.f32.gmra.mxu0 %v568
      %v947 = vpop.f32.mrf.mxu0
      %v948 = vadd.f32 0.0, %v947
      %949 = vmatmul.f32.gmra.mxu0 %v570
      %v950 = vpop.f32.mrf.mxu0
      %v951 = vadd.f32 0.0, %v950
      %952 = vdwg.mxu0
      %v953 = vadd.f32 %v928, %v948
      %v954 = vadd.f32 %v929, %v951
      %955 = vmatpush.msra.mxu0 0.0
      %956 = vmatpush.msra.mxu0 0.0
      %957 = vmatpush.msra.mxu0 0.0
      %958 = vmatpush.msra.mxu0 0.0
      %959 = vmatpush.msra.mxu0 0.0
      %960 = vmatpush.msra.mxu0 0.0
      %961 = vmatpush.msra.mxu0 0.0
      %962 = vmatpush.msra.mxu0 0.0
      %963 = vmatpush.msra.mxu0 0.0
      %964 = vmatpush.msra.mxu0 0.0
      %965 = vmatpush.msra.mxu0 0.0
      %966 = vmatpush.msra.mxu0 0.0
      %967 = vmatpush.msra.mxu0 0.0
      %968 = vmatpush.msra.mxu0 0.0
      %969 = vmatpush.msra.mxu0 %v457
      %970 = vmatpush.msra.mxu0 %v456
      %971 = vmatmul.f32.gmra.mxu0 %v606
      %v972 = vpop.f32.mrf.mxu0
      %v973 = vadd.f32 0.0, %v972
      %974 = vmatmul.f32.gmra.mxu0 %v608
      %v975 = vpop.f32.mrf.mxu0
      %v976 = vadd.f32 0.0, %v975
      %977 = vdwg.mxu0
      %v978 = vadd.f32 %v953, %v973
      %v979 = vadd.f32 %v954, %v976
      %980 = vmatpush.msra.mxu0 0.0
      %981 = vmatpush.msra.mxu0 0.0
      %982 = vmatpush.msra.mxu0 0.0
      %983 = vmatpush.msra.mxu0 0.0
      %984 = vmatpush.msra.mxu0 0.0
      %985 = vmatpush.msra.mxu0 0.0
      %986 = vmatpush.msra.mxu0 0.0
      %987 = vmatpush.msra.mxu0 0.0
      %988 = vmatpush.msra.mxu0 0.0
      %989 = vmatpush.msra.mxu0 0.0
      %990 = vmatpush.msra.mxu0 0.0
      %991 = vmatpush.msra.mxu0 0.0
      %992 = vmatpush.msra.mxu0 0.0
      %993 = vmatpush.msra.mxu0 0.0
      %994 = vmatpush.msra.mxu0 %v495
      %995 = vmatpush.msra.mxu0 %v494
      %996 = vmatmul.f32.gmra.mxu0 %v639
      %v997 = vpop.f32.mrf.mxu0
      %v998 = vadd.f32 0.0, %v997
      %999 = vmatmul.f32.gmra.mxu0 %v642
      %v1000 = vpop.f32.mrf.mxu0
      %v1001 = vadd.f32 0.0, %v1000
      %1002 = vdwg.mxu0
      %v1003 = vadd.f32 %v978, %v998
      %v1004 = vadd.f32 %v979, %v1001
      %1005 = vmatpush.msra.mxu0 0.0
      %1006 = vmatpush.msra.mxu0 0.0
      %1007 = vmatpush.msra.mxu0 0.0
      %1008 = vmatpush.msra.mxu0 0.0
      %1009 = vmatpush.msra.mxu0 0.0
      %1010 = vmatpush.msra.mxu0 0.0
      %1011 = vmatpush.msra.mxu0 0.0
      %1012 = vmatpush.msra.mxu0 0.0
      %1013 = vmatpush.msra.mxu0 0.0
      %1014 = vmatpush.msra.mxu0 0.0
      %1015 = vmatpush.msra.mxu0 0.0
      %1016 = vmatpush.msra.mxu0 0.0
      %1017 = vmatpush.msra.mxu0 0.0
      %1018 = vmatpush.msra.mxu0 0.0
      %1019 = vmatpush.msra.mxu0 %v529
      %1020 = vmatpush.msra.mxu0 %v528
      %1021 = vmatmul.f32.gmra.mxu0 %v675
      %v1022 = vpop.f32.mrf.mxu0
      %v1023 = vadd.f32 0.0, %v1022
      %1024 = vmatmul.f32.gmra.mxu0 %v677
      %v1025 = vpop.f32.mrf.mxu0
      %v1026 = vadd.f32 0.0, %v1025
      %1027 = vdwg.mxu0
      %v1028 = vadd.f32 %v1003, %v1023
      %v1029 = vadd.f32 %v1004, %v1026
      %1030 = vmatpush.msra.mxu0 0.0
      %1031 = vmatpush.msra.mxu0 0.0
      %1032 = vmatpush.msra.mxu0 0.0
      %1033 = vmatpush.msra.mxu0 0.0
      %1034 = vmatpush.msra.mxu0 0.0
      %1035 = vmatpush.msra.mxu0 0.0
      %1036 = vmatpush.msra.mxu0 0.0
      %1037 = vmatpush.msra.mxu0 0.0
      %1038 = vmatpush.msra.mxu0 0.0
      %1039 = vmatpush.msra.mxu0 0.0
      %1040 = vmatpush.msra.mxu0 0.0
      %1041 = vmatpush.msra.mxu0 0.0
      %1042 = vmatpush.msra.mxu0 0.0
      %1043 = vmatpush.msra.mxu0 0.0
      %1044 = vmatpush.msra.mxu0 %v564
      %1045 = vmatpush.msra.mxu0 %v563
      %1046 = vmatmul.f32.gmra.mxu0 %v710
      %v1047 = vpop.f32.mrf.mxu0
      %v1048 = vadd.f32 0.0, %v1047
      %1049 = vmatmul.f32.gmra.mxu0 %v712
      %v1050 = vpop.f32.mrf.mxu0
      %v1051 = vadd.f32 0.0, %v1050
      %1052 = vdwg.mxu0
      %v1053 = vadd.f32 %v1028, %v1048
      %v1054 = vadd.f32 %v1029, %v1051
      %1055 = vmatpush.msra.mxu0 0.0
      %1056 = vmatpush.msra.mxu0 0.0
      %1057 = vmatpush.msra.mxu0 0.0
      %1058 = vmatpush.msra.mxu0 0.0
      %1059 = vmatpush.msra.mxu0 0.0
      %1060 = vmatpush.msra.mxu0 0.0
      %1061 = vmatpush.msra.mxu0 0.0
      %1062 = vmatpush.msra.mxu0 0.0
      %1063 = vmatpush.msra.mxu0 0.0
      %1064 = vmatpush.msra.mxu0 0.0
      %1065 = vmatpush.msra.mxu0 0.0
      %1066 = vmatpush.msra.mxu0 0.0
      %1067 = vmatpush.msra.mxu0 0.0
      %1068 = vmatpush.msra.mxu0 0.0
      %1069 = vmatpush.msra.mxu0 %v599
      %1070 = vmatpush.msra.mxu0 %v598
      %1071 = vmatmul.f32.gmra.mxu0 %v748
      %v1072 = vpop.f32.mrf.mxu0
      %v1073 = vadd.f32 0.0, %v1072
      %1074 = vmatmul.f32.gmra.mxu0 %v750
      %v1075 = vpop.f32.mrf.mxu0
      %v1076 = vadd.f32 0.0, %v1075
      %1077 = vdwg.mxu0
      %v1078 = vadd.f32 %v1053, %v1073
      %v1079 = vadd.f32 %v1054, %v1076
      %v1081 = vsel %vm221, %v206, 0
      %v1084 = vsel %vm221, %v207, 0
      %1086 = vmatpush.msra.mxu0 0.0
      %1087 = vmatpush.msra.mxu0 0.0
      %1088 = vmatpush.msra.mxu0 0.0
      %1089 = vmatpush.msra.mxu0 0.0
      %1090 = vmatpush.msra.mxu0 0.0
      %1091 = vmatpush.msra.mxu0 0.0
      %1092 = vmatpush.msra.mxu0 0.0
      %1093 = vmatpush.msra.mxu0 0.0
      %1094 = vmatpush.msra.mxu0 0.0
      %1095 = vmatpush.msra.mxu0 0.0
      %1096 = vmatpush.msra.mxu0 0.0
      %1097 = vmatpush.msra.mxu0 0.0
      %1098 = vmatpush.msra.mxu0 0.0
      %1099 = vmatpush.msra.mxu0 0.0
      %1100 = vmatpush.msra.mxu0 %v637
      %1101 = vmatpush.msra.mxu0 %v636
      %1102 = vmatmul.f32.gmra.mxu0 %v1081
      %v1103 = vpop.f32.mrf.mxu0
      %v1104 = vadd.f32 0.0, %v1103
      %1105 = vmatmul.f32.gmra.mxu0 %v1084
      %v1106 = vpop.f32.mrf.mxu0
      %v1107 = vadd.f32 0.0, %v1106
      %1108 = vdwg.mxu0
      %v1109 = vadd.f32 %v1078, %v1104
      %v1110 = vadd.f32 %v1079, %v1107
      %v1111 = vrot.slane %v206, 1
      %v1112 = vrot.slane %v207, 1
      %v1113 = vsel %vm217, %v1111, %v1112
      %v1114 = vsel %vm221, %v1113, 0
      %v1116 = vsel %vm221, %v1112, 0
      %1118 = vmatpush.msra.mxu0 0.0
      %1119 = vmatpush.msra.mxu0 0.0
      %1120 = vmatpush.msra.mxu0 0.0
      %1121 = vmatpush.msra.mxu0 0.0
      %1122 = vmatpush.msra.mxu0 0.0
      %1123 = vmatpush.msra.mxu0 0.0
      %1124 = vmatpush.msra.mxu0 0.0
      %1125 = vmatpush.msra.mxu0 0.0
      %1126 = vmatpush.msra.mxu0 0.0
      %1127 = vmatpush.msra.mxu0 0.0
      %1128 = vmatpush.msra.mxu0 0.0
      %1129 = vmatpush.msra.mxu0 0.0
      %1130 = vmatpush.msra.mxu0 0.0
      %1131 = vmatpush.msra.mxu0 0.0
      %1132 = vmatpush.msra.mxu0 %v671
      %1133 = vmatpush.msra.mxu0 %v670
      %1134 = vmatmul.f32.gmra.mxu0 %v1114
      %v1135 = vpop.f32.mrf.mxu0
      %v1136 = vadd.f32 0.0, %v1135
      %1137 = vmatmul.f32.gmra.mxu0 %v1116
      %v1138 = vpop.f32.mrf.mxu0
      %v1139 = vadd.f32 0.0, %v1138
      %1140 = vdwg.mxu0
      %v1141 = vadd.f32 %v1109, %v1136
      %v1142 = vadd.f32 %v1110, %v1139
      %v1143 = vrot.slane %v206, 2
      %v1144 = vrot.slane %v207, 2
      %v1145 = vsel %vm279, %v1143, %v1144
      %v1146 = vsel %vm221, %v1145, 0
      %v1148 = vsel %vm221, %v1144, 0
      %1150 = vmatpush.msra.mxu0 0.0
      %1151 = vmatpush.msra.mxu0 0.0
      %1152 = vmatpush.msra.mxu0 0.0
      %1153 = vmatpush.msra.mxu0 0.0
      %1154 = vmatpush.msra.mxu0 0.0
      %1155 = vmatpush.msra.mxu0 0.0
      %1156 = vmatpush.msra.mxu0 0.0
      %1157 = vmatpush.msra.mxu0 0.0
      %1158 = vmatpush.msra.mxu0 0.0
      %1159 = vmatpush.msra.mxu0 0.0
      %1160 = vmatpush.msra.mxu0 0.0
      %1161 = vmatpush.msra.mxu0 0.0
      %1162 = vmatpush.msra.mxu0 0.0
      %1163 = vmatpush.msra.mxu0 0.0
      %1164 = vmatpush.msra.mxu0 %v706
      %1165 = vmatpush.msra.mxu0 %v705
      %1166 = vmatmul.f32.gmra.mxu0 %v1146
      %v1167 = vpop.f32.mrf.mxu0
      %v1168 = vadd.f32 0.0, %v1167
      %1169 = vmatmul.f32.gmra.mxu0 %v1148
      %v1170 = vpop.f32.mrf.mxu0
      %v1171 = vadd.f32 0.0, %v1170
      %1172 = vdwg.mxu0
      %v1173 = vadd.f32 %v1141, %v1168
      %v1174 = vadd.f32 %v1142, %v1171
      %v1176 = vrot.slane %v206, 3
      %v1177 = vrot.slane %v207, 3
      %v1178 = vsel %vm316, %v1176, %v1177
      %v1179 = vrot.slane %v208, 3
      %v1180 = vsel %vm316, %v1177, %v1179
      %v1181 = vsel %vm221, %v1178, 0
      %v1183 = vsel %vm221, %v1180, 0
      %1185 = vmatpush.msra.mxu0 0.0
      %1186 = vmatpush.msra.mxu0 0.0
      %1187 = vmatpush.msra.mxu0 0.0
      %1188 = vmatpush.msra.mxu0 0.0
      %1189 = vmatpush.msra.mxu0 0.0
      %1190 = vmatpush.msra.mxu0 0.0
      %1191 = vmatpush.msra.mxu0 0.0
      %1192 = vmatpush.msra.mxu0 0.0
      %1193 = vmatpush.msra.mxu0 0.0
      %1194 = vmatpush.msra.mxu0 0.0
      %1195 = vmatpush.msra.mxu0 0.0
      %1196 = vmatpush.msra.mxu0 0.0
      %1197 = vmatpush.msra.mxu0 0.0
      %1198 = vmatpush.msra.mxu0 0.0
      %1199 = vmatpush.msra.mxu0 %v741
      %1200 = vmatpush.msra.mxu0 %v740
      %1201 = vmatmul.f32.gmra.mxu0 %v1181
      %v1202 = vpop.f32.mrf.mxu0
      %v1203 = vadd.f32 0.0, %v1202
      %1204 = vmatmul.f32.gmra.mxu0 %v1183
      %v1205 = vpop.f32.mrf.mxu0
      %v1206 = vadd.f32 0.0, %v1205
      %1207 = vdwg.mxu0
      %v1208 = vadd.f32 %v1173, %v1203
      %v1209 = vadd.f32 %v1174, %v1206
      %v1210 = vadd.f32 %v1208, %v778
      %v1211 = vadd.f32 %v1209, %v778
      %v1212 = vmax.f32 %v1210, 0.0
      %v1213 = vmax.f32 %v1211, 0.0
      %v1214 = vmax.f32 %v782, %v1212
      %v1215 = vmax.f32 %v783, %v1213
      %vm1216 = vcmask 254976
      %v1217 = vsel %vm1216, %v1214, -inf
      %v1218 = vrot.slane %v1217, 4
      %v1219 = vmax.f32 %v1217, %v1218
      %v1220 = vrot.slane %v1219, 2
      %v1221 = vmax.f32 %v1219, %v1220
      %v1222 = vrot.slane %v1221, 1
      %v1223 = vmax.f32 %v1221, %v1222
      %vm1224 = vcmask 257026
      %v1225 = vsel %vm1224, %v1214, -inf
      %v1226 = vrot.slane %v1225, 4
      %v1227 = vmax.f32 %v1225, %v1226
      %v1228 = vrot.slane %v1227, 2
      %v1229 = vmax.f32 %v1227, %v1228
      %v1230 = vrot.slane %v1229, 1
      %v1231 = vmax.f32 %v1229, %v1230
      %vm1232 = vcmask 259076
      %v1233 = vsel %vm1232, %v1214, -inf
      %v1234 = vrot.slane %v1233, 4
      %v1235 = vmax.f32 %v1233, %v1234
      %v1236 = vrot.slane %v1235, 2
      %v1237 = vmax.f32 %v1235, %v1236
      %v1238 = vrot.slane %v1237, 1
      %v1239 = vmax.f32 %v1237, %v1238
      %vm1240 = vcmask 261126
      %v1241 = vsel %vm1240, %v1214, -inf
      %v1242 = vrot.slane %v1241, 4
      %v1243 = vmax.f32 %v1241, %v1242
      %v1244 = vrot.slane %v1243, 2
      %v1245 = vmax.f32 %v1243, %v1244
      %v1246 = vrot.slane %v1245, 1
      %v1247 = vmax.f32 %v1245, %v1246
      %v1248 = vsel %vm1216, %v1215, -inf
      %v1249 = vrot.slane %v1248, 4
      %v1250 = vmax.f32 %v1248, %v1249
      %v1251 = vrot.slane %v1250, 2
      %v1252 = vmax.f32 %v1250, %v1251
      %v1253 = vrot.slane %v1252, 1
      %v1254 = vmax.f32 %v1252, %v1253
      %v1255 = vsel %vm1224, %v1215, -inf
      %v1256 = vrot.slane %v1255, 4
      %v1257 = vmax.f32 %v1255, %v1256
      %v1258 = vrot.slane %v1257, 2
      %v1259 = vmax.f32 %v1257, %v1258
      %v1260 = vrot.slane %v1259, 1
      %v1261 = vmax.f32 %v1259, %v1260
      %v1262 = vsel %vm1232, %v1215, -inf
      %v1263 = vrot.slane %v1262, 4
      %v1264 = vmax.f32 %v1262, %v1263
      %v1265 = vrot.slane %v1264, 2
      %v1266 = vmax.f32 %v1264, %v1265
      %v1267 = vrot.slane %v1266, 1
      %v1268 = vmax.f32 %v1266, %v1267
      %vm1269 = vcmask 1040384
      %v1270 = vsel %vm1269, %v1223, %v1231
      %vm1271 = vcmask 1041408
      %v1272 = vsel %vm1271, %v1270, %v1239
      %vm1273 = vcmask 1042432
      %v1274 = vsel %vm1273, %v1272, %v1247
      %vm1275 = vcmask 1043456
      %v1276 = vsel %vm1275, %v1274, %v1254
      %v1277 = vsel %vm316, %v1276, %v1261
      %v1278 = vsel %vm279, %v1277, %v1268
      %vm1279 = vcmask 260096
      %1280 = vst.msk [vmem:[%s190] sm:$0x7f] %vm1279, %v1278
      %p1281 = scmp.lt.s32.totalorder %s18, 1
      %s1282 = scalar_select %p1281, %s18, 1
      %p1283 = scmp.lt.s32.totalorder %s19, 6
      %s1284 = scalar_select %p1283, %s19, 6
      %s1285 = smul.addr %s1282, 7
      %s1286 = sadd.s32 %s1284, %s1285
      %s1287 = smul.addr %s1286, 8
      %s1288 = scalar_lea.vmem %s3, %s1287
      // Predicated region
      $region33: #{cnn_forward.5} parent=31 // pred_check
        %p1289 = pneg %p114
      $region34: #{cnn_forward.5} parent=31 // pred_check_branch
        %1291 = sbr.rel (%p1289) target = $region36
      $region35: #{cnn_forward.5} parent=31 // pred_region
        _
      $region36: #{cnn_forward.5} parent=31 // pred_fallthru
        _
    $region32: #{cnn_forward.5} parent=5 // pred_fallthru
      _
    %p1292 = scmp.le.s32.totalorder 2, %s9
    // Predicated region
    $region37: #{cnn_forward.5} parent=5 // pred_check
      %p1293 = pneg %p1292
    $region38: #{cnn_forward.5} parent=5 // pred_check_branch
      %1295 = sbr.rel (%p1293) target = $region40
    $region39: #{cnn_forward.5} parent=5 // pred_region
      %s1296 = ssub.s32 %s9, 2
      // Predicated region
      $region41: #{cnn_forward.5} parent=39 // pred_check
        %p1297 = pneg %p120
      $region42: #{cnn_forward.5} parent=39 // pred_check_branch
        %1299 = sbr.rel (%p1297) target = $region44
      $region43: #{cnn_forward.5} parent=39 // pred_region
        %p1300 = scmp.lt.s32.totalorder %s20, 1
        %s1301 = scalar_select %p1300, %s20, 1
        %p1302 = scmp.lt.s32.totalorder %s21, 6
        %s1303 = scalar_select %p1302, %s21, 6
        %s1304 = smul.addr %s1301, 7
        %s1305 = sadd.s32 %s1303, %s1304
        %s1306 = smul.addr %s1305, 8
        %s1307 = scalar_lea.vmem %s3, %s1306
      $region44: #{cnn_forward.5} parent=39 // pred_fallthru
        _
    $region40: #{cnn_forward.5} parent=5 // pred_fallthru
      _
  $region6: #{cnn_forward.5} parent=0 // loop_footer
    %s13 = sadd.s32 1, %s9
  $region7: #{cnn_forward.5} parent=0 // loop_footer_branch
    %8 = sbr.rel target = $region3
  $region8: #{cnn_forward.5} parent=0 // loop_exit
    _

// kernel: cnn_forward.6
$region0: #{cnn_forward.6}
  #allocation0 [shape = 'u32[]', space=smem, size = 0x4, offset = 0x4, fixed_abs, tag = 'smem constant byte address 0x4 - core index']
  #allocation1 [shape = 'u32[72,128]{1,0:T(1,128)}', space=vmem, size = 0x9000, scoped, tag = 'internal scratch']
  %s0 = inlined_call_operand.vmem [shape: f32[2,11,11,32], index: 0, kind: input, shape index: {}]
  %s1 = inlined_call_operand.vmem [shape: f32[16,32,64], index: 1, kind: input, shape index: {}]
  %s2 = inlined_call_operand.vmem [shape: f32[1,64], index: 2, kind: input, shape index: {}]
  %s3 = inlined_call_operand.vmem [shape: f32[2,4,4,64], index: 3, kind: output, shape index: {}]
  %s4 = sld [smem:[#allocation0]]
  $region45: #{cnn_forward.6} parent=0
    _
  %s6 = ssub.s32 1, %s4
  %s7 = scalar_select 0, %s6, %s4
  loop: start=0, step=1, limit=10
  $region2: #{cnn_forward.6} parent=0 // loop_pre_header
    _
  $region3: #{cnn_forward.6} parent=0 // loop_header
    %s9 = sphi 0, %s13
    %p10 = scmp.ge.s32.totalorder %s9, 10
    %s16 = sphi 0, %s28
    %s17 = sphi 0, %s24
    %s18 = sphi 0, %s16
    %s19 = sphi 0, %s17
    %s20 = sphi 0, %s18
    %s21 = sphi 0, %s19
    %s31 = sphi 0, %s33
    %s34 = sphi 0, %s31
    %s35 = sphi 0, %s34
    %s51 = sphi 0, %s35
    %s55 = sphi 0, %s55
    %s57 = sphi 0, %s55
    %s58 = sphi 0, %s57
    %s72 = sphi 0, %s58
    %s76 = sphi 0, %s76
    %s78 = sphi 0, %s76
    %s79 = sphi 0, %s78
    %s93 = sphi 0, %s79
    %s101 = sphi 0, %s103
    %s104 = sphi 0, %s101
    %s105 = sphi 0, %s104
    %s121 = sphi 0, %s105
  $region4: #{cnn_forward.6} parent=0 // loop_header_branch
    %12 = sbr.rel (%p10) target = $region8
  $region5: #{cnn_forward.6} parent=0 // loop_body
    %s14 = ssub.s32 %s9, 1
    %s15 = ssub.s32 %s9, 2
    %s22 = sadd.s32 1, %s17
    %p23 = scmp.ge.s32.totalorder %s22, 4
    %s24 = scalar_select %p23, 0, %s22
    %s25 = sadd.s32 1, %s16
    %s26 = scalar_select %p23, %s25, %s16
    %p27 = scmp.ge.s32.totalorder %s26, 2
    %s28 = scalar_select %p27, 0, %s26
    %s29 = ssub.s32 %s16, %s28
    %p30 = scmp.eq.s32.totalorder %s29, 0
    %s32 = sadd.s32 %s31, 1
    %s33 = scalar_select %p30, %s31, %s32
    %p36 = pneg %p30
    %p37 = scmp.eq.s32.totalorder %s9, 7
    %p38 = por %p36, %p37
    %p39 = scmp.ne.s32.totalorder %s31, %s34
    %p40 = scmp.eq.s32.totalorder %s9, 0
    %p41 = por %p39, %p40
    %p42 = scmp.ne.s32.totalorder %s31, %s34
    %p43 = scmp.eq.s32.totalorder %s14, 7
    %p44 = por %p42, %p43
    %p45 = scmp.ne.s32.totalorder %s34, %s35
    %p46 = scmp.eq.s32.totalorder %s14, 0
    %p47 = por %p45, %p46
    %p48 = scmp.ne.s32.totalorder %s34, %s35
    %p49 = scmp.eq.s32.totalorder %s15, 7
    %p50 = por %p48, %p49
    %p52 = scmp.ne.s32.totalorder %s35, %s51
    %p53 = scmp.eq.s32.totalorder %s15, 0
    %p54 = por %p52, %p53
    %s56 = sadd.s32 %s55, 1
    %p59 = scmp.eq.s32.totalorder %s9, 7
    %p60 = scmp.ne.s32.totalorder %s55, %s57
    %p61 = scmp.eq.s32.totalorder %s9, 0
    %p62 = por %p60, %p61
    %p63 = scmp.ne.s32.totalorder %s55, %s57
    %p64 = scmp.eq.s32.totalorder %s14, 7
    %p65 = por %p63, %p64
    %p66 = scmp.ne.s32.totalorder %s57, %s58
    %p67 = scmp.eq.s32.totalorder %s14, 0
    %p68 = por %p66, %p67
    %p69 = scmp.ne.s32.totalorder %s57, %s58
    %p70 = scmp.eq.s32.totalorder %s15, 7
    %p71 = por %p69, %p70
    %p73 = scmp.ne.s32.totalorder %s58, %s72
    %p74 = scmp.eq.s32.totalorder %s15, 0
    %p75 = por %p73, %p74
    %s77 = sadd.s32 %s76, 1
    %p80 = scmp.eq.s32.totalorder %s9, 7
    %p81 = scmp.ne.s32.totalorder %s76, %s78
    %p82 = scmp.eq.s32.totalorder %s9, 0
    %p83 = por %p81, %p82
    %p84 = scmp.ne.s32.totalorder %s76, %s78
    %p85 = scmp.eq.s32.totalorder %s14, 7
    %p86 = por %p84, %p85
    %p87 = scmp.ne.s32.totalorder %s78, %s79
    %p88 = scmp.eq.s32.totalorder %s14, 0
    %p89 = por %p87, %p88
    %p90 = scmp.ne.s32.totalorder %s78, %s79
    %p91 = scmp.eq.s32.totalorder %s15, 7
    %p92 = por %p90, %p91
    %p94 = scmp.ne.s32.totalorder %s79, %s93
    %p95 = scmp.eq.s32.totalorder %s15, 0
    %p96 = por %p94, %p95
    %s97 = ssub.s32 %s16, %s28
    %s98 = ssub.s32 %s17, %s24
    %s99 = sor.u32 %s97, %s98
    %p100 = scmp.eq.s32.totalorder %s99, 0
    %s102 = sadd.s32 %s101, 1
    %s103 = scalar_select %p100, %s101, %s102
    %p106 = pneg %p100
    %p107 = scmp.eq.s32.totalorder %s9, 7
    %p108 = por %p106, %p107
    %p109 = scmp.ne.s32.totalorder %s101, %s104
    %p110 = scmp.eq.s32.totalorder %s9, 0
    %p111 = por %p109, %p110
    %p112 = scmp.ne.s32.totalorder %s101, %s104
    %p113 = scmp.eq.s32.totalorder %s14, 7
    %p114 = por %p112, %p113
    %p115 = scmp.ne.s32.totalorder %s104, %s105
    %p116 = scmp.eq.s32.totalorder %s14, 0
    %p117 = por %p115, %p116
    %p118 = scmp.ne.s32.totalorder %s104, %s105
    %p119 = scmp.eq.s32.totalorder %s15, 7
    %p120 = por %p118, %p119
    %p122 = scmp.ne.s32.totalorder %s105, %s121
    %p123 = scmp.eq.s32.totalorder %s15, 0
    %p124 = por %p122, %p123
    %p125 = scmp.le.s32.totalorder 1, %s9
    %p126 = scmp.lt.s32.totalorder %s9, 9
    %p127 = pnand %p125, %p126
    %p128 = pneg %p127
    // Predicated region
    $region9: #{cnn_forward.6} parent=5 // pred_check
      _
    $region10: #{cnn_forward.6} parent=5 // pred_check_branch
      %130 = sbr.rel (%p127) target = $region12
    $region11: #{cnn_forward.6} parent=5 // pred_region
      %s131 = ssub.s32 %s9, 1
      // Predicated region
      $region13: #{cnn_forward.6} parent=11 // pred_check
        %p132 = pneg %p68
      $region14: #{cnn_forward.6} parent=11 // pred_check_branch
        %134 = sbr.rel (%p132) target = $region16
      $region15: #{cnn_forward.6} parent=11 // pred_region
        _
      $region16: #{cnn_forward.6} parent=11 // pred_fallthru
        _
      // Predicated region
      $region17: #{cnn_forward.6} parent=11 // pred_check
        %p135 = pneg %p89
      $region18: #{cnn_forward.6} parent=11 // pred_check_branch
        %137 = sbr.rel (%p135) target = $region20
      $region19: #{cnn_forward.6} parent=11 // pred_region
        _
      $region20: #{cnn_forward.6} parent=11 // pred_fallthru
        _
    $region12: #{cnn_forward.6} parent=5 // pred_fallthru
      _
    %p138 = scmp.lt.s32.totalorder %s9, 8
    // Predicated region
    $region21: #{cnn_forward.6} parent=5 // pred_check
      %p139 = pneg %p138
    $region22: #{cnn_forward.6} parent=5 // pred_check_branch
      %141 = sbr.rel (%p139) target = $region24
    $region23: #{cnn_forward.6} parent=5 // pred_region
      // Predicated region
      $region25: #{cnn_forward.6} parent=23 // pred_check
        %p142 = pneg %p41
      $region26: #{cnn_forward.6} parent=23 // pred_check_branch
        %144 = sbr.rel (%p142) target = $region28
      $region27: #{cnn_forward.6} parent=23 // pred_region
        %p145 = scmp.lt.s32.totalorder %s16, 1
        %s146 = scalar_select %p145, %s16, 1
        %s147 = smul.addr %s146, 22
        %s148 = smul.addr %s147, 8
        %s149 = scalar_lea.vmem %s0, %s148
      $region28: #{cnn_forward.6} parent=23 // pred_fallthru
        _
    $region24: #{cnn_forward.6} parent=5 // pred_fallthru
      _
    %p150 = scmp.le.s32.totalorder 1, %s9
    %p151 = scmp.lt.s32.totalorder %s9, 9
    %p152 = pnand %p150, %p151
    %p153 = pneg %p152
    // Predicated region
    $region29: #{cnn_forward.6} parent=5 // pred_check
      _
    $region30: #{cnn_forward.6} parent=5 // pred_check_branch
      %155 = sbr.rel (%p152) target = $region32
    $region31: #{cnn_forward.6} parent=5 // pred_region
      %s156 = ssub.s32 %s9, 1
      %p157 = scmp.lt.s32.totalorder %s18, 1
      %s158 = scalar_select %p157, %s18, 1
      %s159 = smul.addr %s158, 22
      %s160 = smul.addr %s159, 8
      %s161 = scalar_lea.vmem %s0, %s160
      %p162 = pneg %p47
      %p163 = pneg %p44
      %p164 = pneg %p68
      %p165 = pneg %p65
      %p166 = pneg %p89
      %p167 = pneg %p86
      %p168 = pneg %p117
      %p169 = pneg %p114
      %p170 = scmp.lt.s32.totalorder %s18, 1
      %s171 = scalar_select %p170, %s18, 1
      %p172 = scmp.lt.s32.totalorder %s19, 3
      %s173 = scalar_select %p172, %s19, 3
      %s174 = smul.addr %s171, 4
      %s175 = sadd.s32 %s173, %s174
      %s176 = smul.addr %s175, 4
      %s177 = scalar_lea.vmem %s3, %s176
      %p178 = scmp.lt.s32.totalorder %s18, 1
      %s179 = scalar_select %p178, %s18, 1
      %s180 = smul.addr %s179, 22
      %s181 = smul.addr %s180, 8
      %s182 = scalar_lea.vmem %s0, %s181
      %p183 = scmp.lt.s32.totalorder %s18, 1
      %s184 = scalar_select %p183, %s18, 1
      %p185 = scmp.lt.s32.totalorder %s19, 3
      %s186 = scalar_select %p185, %s19, 3
      %s187 = smul.addr %s184, 4
      %s188 = sadd.s32 %s186, %s187
      %s189 = smul.addr %s188, 4
      %s190 = scalar_lea.vmem %s3, %s189
      %s191 = smul.u32 %s19, 2
      %s192 = smul.u32 %s191, 16
      %s193 = scalar_lea.vmem %s182, %s192
      %v194 = vld [vmem:[%s193] sm:$0xff]
      %v195 = vld [vmem:[%s193 + $0x8] sm:$0x7]
      %v196 = vld [vmem:[%s193 + $0x10] sm:$0xff]
      %v197 = vld [vmem:[%s193 + $0x18] sm:$0x7]
      %v198 = vld [vmem:[%s193 + $0x20] sm:$0xff]
      %v199 = vld [vmem:[%s193 + $0x28] sm:$0x7]
      %v200 = vld [vmem:[%s193 + $0x30] sm:$0xff]
      %v201 = vld [vmem:[%s193 + $0x38] sm:$0x7]
      %v202 = vld [vmem:[%s193 + $0x40] sm:$0xff]
      %v203 = vld [vmem:[%s193 + $0x48] sm:$0x7]
      %v204 = vld [vmem:[%s2] sm:$0x1]
      %v205 = vld [vmem:[%s1] sm:$0xff]
      %v206 = vld [vmem:[%s1 + $0x8] sm:$0xff]
      %v207 = vld [vmem:[%s1 + $0x10] sm:$0xff]
      %v208 = vld [vmem:[%s1 + $0x18] sm:$0xff]
      %s209 = scalar_lea.vmem %s1, 32
      %v210 = vld [vmem:[%s209] sm:$0xff]
      %v211 = vld [vmem:[%s209 + $0x8] sm:$0xff]
      %v212 = vld [vmem:[%s209 + $0x10] sm:$0xff]
      %v213 = vld [vmem:[%s209 + $0x18] sm:$0xff]
      %vm216 = vcmask 1046528
      %v217 = vrot.slane %v194, 1
      %v218 = vrot.slane %v195, 1
      %v219 = vsel %vm216, %v217, %v218
      %vm220 = vcmask 261120
      %v221 = vsel %vm220, %v219, 0
      %223 = vmatpush.msra.mxu0 0.0
      %224 = vmatpush.msra.mxu0 0.0
      %225 = vmatpush.msra.mxu0 0.0
      %226 = vmatpush.msra.mxu0 0.0
      %227 = vmatpush.msra.mxu0 0.0
      %228 = vmatpush.msra.mxu0 0.0
      %229 = vmatpush.msra.mxu0 0.0
      %230 = vmatpush.msra.mxu0 0.0
      %231 = vmatpush.msra.mxu0 0.0
      %232 = vmatpush.msra.mxu0 0.0
      %233 = vmatpush.msra.mxu0 0.0
      %234 = vmatpush.msra.mxu0 0.0
      %235 = vmatpush.msra.mxu0 %v213
      %236 = vmatpush.msra.mxu0 %v212
      %237 = vmatpush.msra.mxu0 %v211
      %238 = vmatpush.msra.mxu0 %v210
      %239 = vmatmul.f32.gmra.mxu0 %v221
      %v240 = vpop.f32.mrf.mxu0
      %v241 = vadd.f32 0.0, %v240
      %242 = vdwg.mxu0
      %v243 = vsel %vm220, %v194, 0
      %245 = vmatpush.msra.mxu0 0.0
      %246 = vmatpush.msra.mxu0 0.0
      %247 = vmatpush.msra.mxu0 0.0
      %248 = vmatpush.msra.mxu0 0.0
      %249 = vmatpush.msra.mxu0 0.0
      %250 = vmatpush.msra.mxu0 0.0
      %251 = vmatpush.msra.mxu0 0.0
      %252 = vmatpush.msra.mxu0 0.0
      %253 = vmatpush.msra.mxu0 0.0
      %254 = vmatpush.msra.mxu0 0.0
      %255 = vmatpush.msra.mxu0 0.0
      %256 = vmatpush.msra.mxu0 0.0
      %257 = vmatpush.msra.mxu0 %v208
      %258 = vmatpush.msra.mxu0 %v207
      %259 = vmatpush.msra.mxu0 %v206
      %260 = vmatpush.msra.mxu0 %v205
      %261 = vmatmul.f32.gmra.mxu0 %v243
      %v262 = vpop.f32.mrf.mxu0
      %v263 = vadd.f32 %v241, %v262
      %264 = vdwg.mxu0
      %s265 = scalar_lea.vmem %s1, 64
      %v266 = vld [vmem:[%s265] sm:$0xff]
      %v267 = vld [vmem:[%s265 + $0x8] sm:$0xff]
      %v268 = vld [vmem:[%s265 + $0x10] sm:$0xff]
      %v269 = vld [vmem:[%s265 + $0x18] sm:$0xff]
      %vm270 = vcmask 1045504
      %v271 = vrot.slane %v194, 2
      %v272 = vrot.slane %v195, 2
      %v273 = vsel %vm270, %v271, %v272
      %v274 = vsel %vm220, %v273, 0
      %276 = vmatpush.msra.mxu0 0.0
      %277 = vmatpush.msra.mxu0 0.0
      %278 = vmatpush.msra.mxu0 0.0
      %279 = vmatpush.msra.mxu0 0.0
      %280 = vmatpush.msra.mxu0 0.0
      %281 = vmatpush.msra.mxu0 0.0
      %282 = vmatpush.msra.mxu0 0.0
      %283 = vmatpush.msra.mxu0 0.0
      %284 = vmatpush.msra.mxu0 0.0
      %285 = vmatpush.msra.mxu0 0.0
      %286 = vmatpush.msra.mxu0 0.0
      %287 = vmatpush.msra.mxu0 0.0
      %288 = vmatpush.msra.mxu0 %v269
      %289 = vmatpush.msra.mxu0 %v268
      %290 = vmatpush.msra.mxu0 %v267
      %291 = vmatpush.msra.mxu0 %v266
      %292 = vmatmul.f32.gmra.mxu0 %v274
      %v293 = vpop.f32.mrf.mxu0
      %v294 = vadd.f32 0.0, %v293
      %295 = vdwg.mxu0
      %v296 = vadd.f32 %v263, %v294
      %s297 = scalar_lea.vmem %s1, 96
      %v298 = vld [vmem:[%s297] sm:$0xff]
      %v299 = vld [vmem:[%s297 + $0x8] sm:$0xff]
      %v300 = vld [vmem:[%s297 + $0x10] sm:$0xff]
      %v301 = vld [vmem:[%s297 + $0x18] sm:$0xff]
      %vm302 = vcmask 1044480
      %v303 = vrot.slane %v194, 3
      %v304 = vrot.slane %v195, 3
      %v305 = vsel %vm302, %v303, %v304
      %v306 = vsel %vm220, %v305, 0
      %308 = vmatpush.msra.mxu0 0.0
      %309 = vmatpush.msra.mxu0 0.0
      %310 = vmatpush.msra.mxu0 0.0
      %311 = vmatpush.msra.mxu0 0.0
      %312 = vmatpush.msra.mxu0 0.0
      %313 = vmatpush.msra.mxu0 0.0
      %314 = vmatpush.msra.mxu0 0.0
      %315 = vmatpush.msra.mxu0 0.0
      %316 = vmatpush.msra.mxu0 0.0
      %317 = vmatpush.msra.mxu0 0.0
      %318 = vmatpush.msra.mxu0 0.0
      %319 = vmatpush.msra.mxu0 0.0
      %320 = vmatpush.msra.mxu0 %v301
      %321 = vmatpush.msra.mxu0 %v300
      %322 = vmatpush.msra.mxu0 %v299
      %323 = vmatpush.msra.mxu0 %v298
      %324 = vmatmul.f32.gmra.mxu0 %v306
      %v325 = vpop.f32.mrf.mxu0
      %v326 = vadd.f32 0.0, %v325
      %327 = vdwg.mxu0
      %v328 = vadd.f32 %v296, %v326
      %s329 = scalar_lea.vmem %s1, 128
      %v330 = vld [vmem:[%s329] sm:$0xff]
      %v331 = vld [vmem:[%s329 + $0x8] sm:$0xff]
      %v332 = vld [vmem:[%s329 + $0x10] sm:$0xff]
      %v333 = vld [vmem:[%s329 + $0x18] sm:$0xff]
      %v335 = vsel %vm220, %v196, 0
      %337 = vmatpush.msra.mxu0 0.0
      %338 = vmatpush.msra.mxu0 0.0
      %339 = vmatpush.msra.mxu0 0.0
      %340 = vmatpush.msra.mxu0 0.0
      %341 = vmatpush.msra.mxu0 0.0
      %342 = vmatpush.msra.mxu0 0.0
      %343 = vmatpush.msra.mxu0 0.0
      %344 = vmatpush.msra.mxu0 0.0
      %345 = vmatpush.msra.mxu0 0.0
      %346 = vmatpush.msra.mxu0 0.0
      %347 = vmatpush.msra.mxu0 0.0
      %348 = vmatpush.msra.mxu0 0.0
      %349 = vmatpush.msra.mxu0 %v333
      %350 = vmatpush.msra.mxu0 %v332
      %351 = vmatpush.msra.mxu0 %v331
      %352 = vmatpush.msra.mxu0 %v330
      %353 = vmatmul.f32.gmra.mxu0 %v335
      %v354 = vpop.f32.mrf.mxu0
      %v355 = vadd.f32 0.0, %v354
      %356 = vdwg.mxu0
      %v357 = vadd.f32 %v328, %v355
      %s358 = scalar_lea.vmem %s1, 160
      %v359 = vld [vmem:[%s358] sm:$0xff]
      %v360 = vld [vmem:[%s358 + $0x8] sm:$0xff]
      %v361 = vld [vmem:[%s358 + $0x10] sm:$0xff]
      %v362 = vld [vmem:[%s358 + $0x18] sm:$0xff]
      %v364 = vrot.slane %v196, 1
      %v365 = vrot.slane %v197, 1
      %v366 = vsel %vm216, %v364, %v365
      %v367 = vsel %vm220, %v366, 0
      %369 = vmatpush.msra.mxu0 0.0
      %370 = vmatpush.msra.mxu0 0.0
      %371 = vmatpush.msra.mxu0 0.0
      %372 = vmatpush.msra.mxu0 0.0
      %373 = vmatpush.msra.mxu0 0.0
      %374 = vmatpush.msra.mxu0 0.0
      %375 = vmatpush.msra.mxu0 0.0
      %376 = vmatpush.msra.mxu0 0.0
      %377 = vmatpush.msra.mxu0 0.0
      %378 = vmatpush.msra.mxu0 0.0
      %379 = vmatpush.msra.mxu0 0.0
      %380 = vmatpush.msra.mxu0 0.0
      %381 = vmatpush.msra.mxu0 %v362
      %382 = vmatpush.msra.mxu0 %v361
      %383 = vmatpush.msra.mxu0 %v360
      %384 = vmatpush.msra.mxu0 %v359
      %385 = vmatmul.f32.gmra.mxu0 %v367
      %v386 = vpop.f32.mrf.mxu0
      %v387 = vadd.f32 0.0, %v386
      %388 = vdwg.mxu0
      %v389 = vadd.f32 %v357, %v387
      %s390 = scalar_lea.vmem %s1, 192
      %v391 = vld [vmem:[%s390] sm:$0xff]
      %v392 = vld [vmem:[%s390 + $0x8] sm:$0xff]
      %v393 = vld [vmem:[%s390 + $0x10] sm:$0xff]
      %v394 = vld [vmem:[%s390 + $0x18] sm:$0xff]
      %v395 = vrot.slane %v196, 2
      %v396 = vrot.slane %v197, 2
      %v397 = vsel %vm270, %v395, %v396
      %v398 = vsel %vm220, %v397, 0
      %400 = vmatpush.msra.mxu0 0.0
      %401 = vmatpush.msra.mxu0 0.0
      %402 = vmatpush.msra.mxu0 0.0
      %403 = vmatpush.msra.mxu0 0.0
      %404 = vmatpush.msra.mxu0 0.0
      %405 = vmatpush.msra.mxu0 0.0
      %406 = vmatpush.msra.mxu0 0.0
      %407 = vmatpush.msra.mxu0 0.0
      %408 = vmatpush.msra.mxu0 0.0
      %409 = vmatpush.msra.mxu0 0.0
      %410 = vmatpush.msra.mxu0 0.0
      %411 = vmatpush.msra.mxu0 0.0
      %412 = vmatpush.msra.mxu0 %v394
      %413 = vmatpush.msra.mxu0 %v393
      %414 = vmatpush.msra.mxu0 %v392
      %415 = vmatpush.msra.mxu0 %v391
      %416 = vmatmul.f32.gmra.mxu0 %v398
      %v417 = vpop.f32.mrf.mxu0
      %v418 = vadd.f32 0.0, %v417
      %419 = vdwg.mxu0
      %v420 = vadd.f32 %v389, %v418
      %s421 = scalar_lea.vmem %s1, 224
      %v422 = vld [vmem:[%s421] sm:$0xff]
      %v423 = vld [vmem:[%s421 + $0x8] sm:$0xff]
      %v424 = vld [vmem:[%s421 + $0x10] sm:$0xff]
      %v425 = vld [vmem:[%s421 + $0x18] sm:$0xff]
      %v426 = vrot.slane %v196, 3
      %v427 = vrot.slane %v197, 3
      %v428 = vsel %vm302, %v426, %v427
      %v429 = vsel %vm220, %v428, 0
      %431 = vmatpush.msra.mxu0 0.0
      %432 = vmatpush.msra.mxu0 0.0
      %433 = vmatpush.msra.mxu0 0.0
      %434 = vmatpush.msra.mxu0 0.0
      %435 = vmatpush.msra.mxu0 0.0
      %436 = vmatpush.msra.mxu0 0.0
      %437 = vmatpush.msra.mxu0 0.0
      %438 = vmatpush.msra.mxu0 0.0
      %439 = vmatpush.msra.mxu0 0.0
      %440 = vmatpush.msra.mxu0 0.0
      %441 = vmatpush.msra.mxu0 0.0
      %442 = vmatpush.msra.mxu0 0.0
      %443 = vmatpush.msra.mxu0 %v425
      %444 = vmatpush.msra.mxu0 %v424
      %445 = vmatpush.msra.mxu0 %v423
      %446 = vmatpush.msra.mxu0 %v422
      %447 = vmatmul.f32.gmra.mxu0 %v429
      %v448 = vpop.f32.mrf.mxu0
      %v449 = vadd.f32 0.0, %v448
      %450 = vdwg.mxu0
      %v451 = vadd.f32 %v420, %v449
      %s452 = scalar_lea.vmem %s1, 256
      %v453 = vld [vmem:[%s452] sm:$0xff]
      %v454 = vld [vmem:[%s452 + $0x8] sm:$0xff]
      %v455 = vld [vmem:[%s452 + $0x10] sm:$0xff]
      %v456 = vld [vmem:[%s452 + $0x18] sm:$0xff]
      %v458 = vsel %vm220, %v198, 0
      %460 = vmatpush.msra.mxu0 0.0
      %461 = vmatpush.msra.mxu0 0.0
      %462 = vmatpush.msra.mxu0 0.0
      %463 = vmatpush.msra.mxu0 0.0
      %464 = vmatpush.msra.mxu0 0.0
      %465 = vmatpush.msra.mxu0 0.0
      %466 = vmatpush.msra.mxu0 0.0
      %467 = vmatpush.msra.mxu0 0.0
      %468 = vmatpush.msra.mxu0 0.0
      %469 = vmatpush.msra.mxu0 0.0
      %470 = vmatpush.msra.mxu0 0.0
      %471 = vmatpush.msra.mxu0 0.0
      %472 = vmatpush.msra.mxu0 %v456
      %473 = vmatpush.msra.mxu0 %v455
      %474 = vmatpush.msra.mxu0 %v454
      %475 = vmatpush.msra.mxu0 %v453
      %476 = vmatmul.f32.gmra.mxu0 %v458
      %v477 = vpop.f32.mrf.mxu0
      %v478 = vadd.f32 0.0, %v477
      %479 = vdwg.mxu0
      %v480 = vadd.f32 %v451, %v478
      %s481 = scalar_lea.vmem %s1, 288
      %v482 = vld [vmem:[%s481] sm:$0xff]
      %v483 = vld [vmem:[%s481 + $0x8] sm:$0xff]
      %v484 = vld [vmem:[%s481 + $0x10] sm:$0xff]
      %v485 = vld [vmem:[%s481 + $0x18] sm:$0xff]
      %v487 = vrot.slane %v198, 1
      %v488 = vrot.slane %v199, 1
      %v489 = vsel %vm216, %v487, %v488
      %v490 = vsel %vm220, %v489, 0
      %492 = vmatpush.msra.mxu0 0.0
      %493 = vmatpush.msra.mxu0 0.0
      %494 = vmatpush.msra.mxu0 0.0
      %495 = vmatpush.msra.mxu0 0.0
      %496 = vmatpush.msra.mxu0 0.0
      %497 = vmatpush.msra.mxu0 0.0
      %498 = vmatpush.msra.mxu0 0.0
      %499 = vmatpush.msra.mxu0 0.0
      %500 = vmatpush.msra.mxu0 0.0
      %501 = vmatpush.msra.mxu0 0.0
      %502 = vmatpush.msra.mxu0 0.0
      %503 = vmatpush.msra.mxu0 0.0
      %504 = vmatpush.msra.mxu0 %v485
      %505 = vmatpush.msra.mxu0 %v484
      %506 = vmatpush.msra.mxu0 %v483
      %507 = vmatpush.msra.mxu0 %v482
      %508 = vmatmul.f32.gmra.mxu0 %v490
      %v509 = vpop.f32.mrf.mxu0
      %v510 = vadd.f32 0.0, %v509
      %511 = vdwg.mxu0
      %v512 = vadd.f32 %v480, %v510
      %s513 = scalar_lea.vmem %s1, 320
      %v514 = vld [vmem:[%s513] sm:$0xff]
      %v515 = vld [vmem:[%s513 + $0x8] sm:$0xff]
      %v516 = vld [vmem:[%s513 + $0x10] sm:$0xff]
      %v517 = vld [vmem:[%s513 + $0x18] sm:$0xff]
      %v518 = vrot.slane %v198, 2
      %v519 = vrot.slane %v199, 2
      %v520 = vsel %vm270, %v518, %v519
      %v521 = vsel %vm220, %v520, 0
      %523 = vmatpush.msra.mxu0 0.0
      %524 = vmatpush.msra.mxu0 0.0
      %525 = vmatpush.msra.mxu0 0.0
      %526 = vmatpush.msra.mxu0 0.0
      %527 = vmatpush.msra.mxu0 0.0
      %528 = vmatpush.msra.mxu0 0.0
      %529 = vmatpush.msra.mxu0 0.0
      %530 = vmatpush.msra.mxu0 0.0
      %531 = vmatpush.msra.mxu0 0.0
      %532 = vmatpush.msra.mxu0 0.0
      %533 = vmatpush.msra.mxu0 0.0
      %534 = vmatpush.msra.mxu0 0.0
      %535 = vmatpush.msra.mxu0 %v517
      %536 = vmatpush.msra.mxu0 %v516
      %537 = vmatpush.msra.mxu0 %v515
      %538 = vmatpush.msra.mxu0 %v514
      %539 = vmatmul.f32.gmra.mxu0 %v521
      %v540 = vpop.f32.mrf.mxu0
      %v541 = vadd.f32 0.0, %v540
      %542 = vdwg.mxu0
      %v543 = vadd.f32 %v512, %v541
      %s544 = scalar_lea.vmem %s1, 352
      %v545 = vld [vmem:[%s544] sm:$0xff]
      %v546 = vld [vmem:[%s544 + $0x8] sm:$0xff]
      %v547 = vld [vmem:[%s544 + $0x10] sm:$0xff]
      %v548 = vld [vmem:[%s544 + $0x18] sm:$0xff]
      %v549 = vrot.slane %v198, 3
      %v550 = vrot.slane %v199, 3
      %v551 = vsel %vm302, %v549, %v550
      %v552 = vsel %vm220, %v551, 0
      %554 = vmatpush.msra.mxu0 0.0
      %555 = vmatpush.msra.mxu0 0.0
      %556 = vmatpush.msra.mxu0 0.0
      %557 = vmatpush.msra.mxu0 0.0
      %558 = vmatpush.msra.mxu0 0.0
      %559 = vmatpush.msra.mxu0 0.0
      %560 = vmatpush.msra.mxu0 0.0
      %561 = vmatpush.msra.mxu0 0.0
      %562 = vmatpush.msra.mxu0 0.0
      %563 = vmatpush.msra.mxu0 0.0
      %564 = vmatpush.msra.mxu0 0.0
      %565 = vmatpush.msra.mxu0 0.0
      %566 = vmatpush.msra.mxu0 %v548
      %567 = vmatpush.msra.mxu0 %v547
      %568 = vmatpush.msra.mxu0 %v546
      %569 = vmatpush.msra.mxu0 %v545
      %570 = vmatmul.f32.gmra.mxu0 %v552
      %v571 = vpop.f32.mrf.mxu0
      %v572 = vadd.f32 0.0, %v571
      %573 = vdwg.mxu0
      %v574 = vadd.f32 %v543, %v572
      %s575 = scalar_lea.vmem %s1, 384
      %v576 = vld [vmem:[%s575] sm:$0xff]
      %v577 = vld [vmem:[%s575 + $0x8] sm:$0xff]
      %v578 = vld [vmem:[%s575 + $0x10] sm:$0xff]
      %v579 = vld [vmem:[%s575 + $0x18] sm:$0xff]
      %v581 = vsel %vm220, %v200, 0
      %583 = vmatpush.msra.mxu0 0.0
      %584 = vmatpush.msra.mxu0 0.0
      %585 = vmatpush.msra.mxu0 0.0
      %586 = vmatpush.msra.mxu0 0.0
      %587 = vmatpush.msra.mxu0 0.0
      %588 = vmatpush.msra.mxu0 0.0
      %589 = vmatpush.msra.mxu0 0.0
      %590 = vmatpush.msra.mxu0 0.0
      %591 = vmatpush.msra.mxu0 0.0
      %592 = vmatpush.msra.mxu0 0.0
      %593 = vmatpush.msra.mxu0 0.0
      %594 = vmatpush.msra.mxu0 0.0
      %595 = vmatpush.msra.mxu0 %v579
      %596 = vmatpush.msra.mxu0 %v578
      %597 = vmatpush.msra.mxu0 %v577
      %598 = vmatpush.msra.mxu0 %v576
      %599 = vmatmul.f32.gmra.mxu0 %v581
      %v600 = vpop.f32.mrf.mxu0
      %v601 = vadd.f32 0.0, %v600
      %602 = vdwg.mxu0
      %v603 = vadd.f32 %v574, %v601
      %s604 = scalar_lea.vmem %s1, 416
      %v605 = vld [vmem:[%s604] sm:$0xff]
      %v606 = vld [vmem:[%s604 + $0x8] sm:$0xff]
      %v607 = vld [vmem:[%s604 + $0x10] sm:$0xff]
      %v608 = vld [vmem:[%s604 + $0x18] sm:$0xff]
      %v610 = vrot.slane %v200, 1
      %v611 = vrot.slane %v201, 1
      %v612 = vsel %vm216, %v610, %v611
      %v613 = vsel %vm220, %v612, 0
      %615 = vmatpush.msra.mxu0 0.0
      %616 = vmatpush.msra.mxu0 0.0
      %617 = vmatpush.msra.mxu0 0.0
      %618 = vmatpush.msra.mxu0 0.0
      %619 = vmatpush.msra.mxu0 0.0
      %620 = vmatpush.msra.mxu0 0.0
      %621 = vmatpush.msra.mxu0 0.0
      %622 = vmatpush.msra.mxu0 0.0
      %623 = vmatpush.msra.mxu0 0.0
      %624 = vmatpush.msra.mxu0 0.0
      %625 = vmatpush.msra.mxu0 0.0
      %626 = vmatpush.msra.mxu0 0.0
      %627 = vmatpush.msra.mxu0 %v608
      %628 = vmatpush.msra.mxu0 %v607
      %629 = vmatpush.msra.mxu0 %v606
      %630 = vmatpush.msra.mxu0 %v605
      %631 = vmatmul.f32.gmra.mxu0 %v613
      %v632 = vpop.f32.mrf.mxu0
      %v633 = vadd.f32 0.0, %v632
      %634 = vdwg.mxu0
      %v635 = vadd.f32 %v603, %v633
      %s636 = scalar_lea.vmem %s1, 448
      %v637 = vld [vmem:[%s636] sm:$0xff]
      %v638 = vld [vmem:[%s636 + $0x8] sm:$0xff]
      %v639 = vld [vmem:[%s636 + $0x10] sm:$0xff]
      %v640 = vld [vmem:[%s636 + $0x18] sm:$0xff]
      %v641 = vrot.slane %v200, 2
      %v642 = vrot.slane %v201, 2
      %v643 = vsel %vm270, %v641, %v642
      %v644 = vsel %vm220, %v643, 0
      %646 = vmatpush.msra.mxu0 0.0
      %647 = vmatpush.msra.mxu0 0.0
      %648 = vmatpush.msra.mxu0 0.0
      %649 = vmatpush.msra.mxu0 0.0
      %650 = vmatpush.msra.mxu0 0.0
      %651 = vmatpush.msra.mxu0 0.0
      %652 = vmatpush.msra.mxu0 0.0
      %653 = vmatpush.msra.mxu0 0.0
      %654 = vmatpush.msra.mxu0 0.0
      %655 = vmatpush.msra.mxu0 0.0
      %656 = vmatpush.msra.mxu0 0.0
      %657 = vmatpush.msra.mxu0 0.0
      %658 = vmatpush.msra.mxu0 %v640
      %659 = vmatpush.msra.mxu0 %v639
      %660 = vmatpush.msra.mxu0 %v638
      %661 = vmatpush.msra.mxu0 %v637
      %662 = vmatmul.f32.gmra.mxu0 %v644
      %v663 = vpop.f32.mrf.mxu0
      %v664 = vadd.f32 0.0, %v663
      %665 = vdwg.mxu0
      %v666 = vadd.f32 %v635, %v664
      %s667 = scalar_lea.vmem %s1, 480
      %v668 = vld [vmem:[%s667] sm:$0xff]
      %v669 = vld [vmem:[%s667 + $0x8] sm:$0xff]
      %v670 = vld [vmem:[%s667 + $0x10] sm:$0xff]
      %v671 = vld [vmem:[%s667 + $0x18] sm:$0xff]
      %v672 = vrot.slane %v200, 3
      %v673 = vrot.slane %v201, 3
      %v674 = vsel %vm302, %v672, %v673
      %v675 = vsel %vm220, %v674, 0
      %677 = vmatpush.msra.mxu0 0.0
      %678 = vmatpush.msra.mxu0 0.0
      %679 = vmatpush.msra.mxu0 0.0
      %680 = vmatpush.msra.mxu0 0.0
      %681 = vmatpush.msra.mxu0 0.0
      %682 = vmatpush.msra.mxu0 0.0
      %683 = vmatpush.msra.mxu0 0.0
      %684 = vmatpush.msra.mxu0 0.0
      %685 = vmatpush.msra.mxu0 0.0
      %686 = vmatpush.msra.mxu0 0.0
      %687 = vmatpush.msra.mxu0 0.0
      %688 = vmatpush.msra.mxu0 0.0
      %689 = vmatpush.msra.mxu0 %v671
      %690 = vmatpush.msra.mxu0 %v670
      %691 = vmatpush.msra.mxu0 %v669
      %692 = vmatpush.msra.mxu0 %v668
      %693 = vmatmul.f32.gmra.mxu0 %v675
      %v694 = vpop.f32.mrf.mxu0
      %v695 = vadd.f32 0.0, %v694
      %696 = vdwg.mxu0
      %v697 = vadd.f32 %v666, %v695
      %v699 = vperm.slane %v204, 0
      %v701 = vadd.f32 %v697, %v699
      %v702 = vmax.f32 %v701, 0.0
      %703 = vmatpush.msra.mxu0 0.0
      %704 = vmatpush.msra.mxu0 0.0
      %705 = vmatpush.msra.mxu0 0.0
      %706 = vmatpush.msra.mxu0 0.0
      %707 = vmatpush.msra.mxu0 0.0
      %708 = vmatpush.msra.mxu0 0.0
      %709 = vmatpush.msra.mxu0 0.0
      %710 = vmatpush.msra.mxu0 0.0
      %711 = vmatpush.msra.mxu0 0.0
      %712 = vmatpush.msra.mxu0 0.0
      %713 = vmatpush.msra.mxu0 0.0
      %714 = vmatpush.msra.mxu0 0.0
      %715 = vmatpush.msra.mxu0 %v213
      %716 = vmatpush.msra.mxu0 %v212
      %717 = vmatpush.msra.mxu0 %v211
      %718 = vmatpush.msra.mxu0 %v210
      %719 = vmatmul.f32.gmra.mxu0 %v367
      %v720 = vpop.f32.mrf.mxu0
      %v721 = vadd.f32 0.0, %v720
      %722 = vdwg.mxu0
      %723 = vmatpush.msra.mxu0 0.0
      %724 = vmatpush.msra.mxu0 0.0
      %725 = vmatpush.msra.mxu0 0.0
      %726 = vmatpush.msra.mxu0 0.0
      %727 = vmatpush.msra.mxu0 0.0
      %728 = vmatpush.msra.mxu0 0.0
      %729 = vmatpush.msra.mxu0 0.0
      %730 = vmatpush.msra.mxu0 0.0
      %731 = vmatpush.msra.mxu0 0.0
      %732 = vmatpush.msra.mxu0 0.0
      %733 = vmatpush.msra.mxu0 0.0
      %734 = vmatpush.msra.mxu0 0.0
      %735 = vmatpush.msra.mxu0 %v208
      %736 = vmatpush.msra.mxu0 %v207
      %737 = vmatpush.msra.mxu0 %v206
      %738 = vmatpush.msra.mxu0 %v205
      %739 = vmatmul.f32.gmra.mxu0 %v335
      %v740 = vpop.f32.mrf.mxu0
      %v741 = vadd.f32 %v721, %v740
      %742 = vdwg.mxu0
      %743 = vmatpush.msra.mxu0 0.0
      %744 = vmatpush.msra.mxu0 0.0
      %745 = vmatpush.msra.mxu0 0.0
      %746 = vmatpush.msra.mxu0 0.0
      %747 = vmatpush.msra.mxu0 0.0
      %748 = vmatpush.msra.mxu0 0.0
      %749 = vmatpush.msra.mxu0 0.0
      %750 = vmatpush.msra.mxu0 0.0
      %751 = vmatpush.msra.mxu0 0.0
      %752 = vmatpush.msra.mxu0 0.0
      %753 = vmatpush.msra.mxu0 0.0
      %754 = vmatpush.msra.mxu0 0.0
      %755 = vmatpush.msra.mxu0 %v269
      %756 = vmatpush.msra.mxu0 %v268
      %757 = vmatpush.msra.mxu0 %v267
      %758 = vmatpush.msra.mxu0 %v266
      %759 = vmatmul.f32.gmra.mxu0 %v398
      %v760 = vpop.f32.mrf.mxu0
      %v761 = vadd.f32 0.0, %v760
      %762 = vdwg.mxu0
      %v763 = vadd.f32 %v741, %v761
      %764 = vmatpush.msra.mxu0 0.0
      %765 = vmatpush.msra.mxu0 0.0
      %766 = vmatpush.msra.mxu0 0.0
      %767 = vmatpush.msra.mxu0 0.0
      %768 = vmatpush.msra.mxu0 0.0
      %769 = vmatpush.msra.mxu0 0.0
      %770 = vmatpush.msra.mxu0 0.0
      %771 = vmatpush.msra.mxu0 0.0
      %772 = vmatpush.msra.mxu0 0.0
      %773 = vmatpush.msra.mxu0 0.0
      %774 = vmatpush.msra.mxu0 0.0
      %775 = vmatpush.msra.mxu0 0.0
      %776 = vmatpush.msra.mxu0 %v301
      %777 = vmatpush.msra.mxu0 %v300
      %778 = vmatpush.msra.mxu0 %v299
      %779 = vmatpush.msra.mxu0 %v298
      %780 = vmatmul.f32.gmra.mxu0 %v429
      %v781 = vpop.f32.mrf.mxu0
      %v782 = vadd.f32 0.0, %v781
      %783 = vdwg.mxu0
      %v784 = vadd.f32 %v763, %v782
      %785 = vmatpush.msra.mxu0 0.0
      %786 = vmatpush.msra.mxu0 0.0
      %787 = vmatpush.msra.mxu0 0.0
      %788 = vmatpush.msra.mxu0 0.0
      %789 = vmatpush.msra.mxu0 0.0
      %790 = vmatpush.msra.mxu0 0.0
      %791 = vmatpush.msra.mxu0 0.0
      %792 = vmatpush.msra.mxu0 0.0
      %793 = vmatpush.msra.mxu0 0.0
      %794 = vmatpush.msra.mxu0 0.0
      %795 = vmatpush.msra.mxu0 0.0
      %796 = vmatpush.msra.mxu0 0.0
      %797 = vmatpush.msra.mxu0 %v333
      %798 = vmatpush.msra.mxu0 %v332
      %799 = vmatpush.msra.mxu0 %v331
      %800 = vmatpush.msra.mxu0 %v330
      %801 = vmatmul.f32.gmra.mxu0 %v458
      %v802 = vpop.f32.mrf.mxu0
      %v803 = vadd.f32 0.0, %v802
      %804 = vdwg.mxu0
      %v805 = vadd.f32 %v784, %v803
      %806 = vmatpush.msra.mxu0 0.0
      %807 = vmatpush.msra.mxu0 0.0
      %808 = vmatpush.msra.mxu0 0.0
      %809 = vmatpush.msra.mxu0 0.0
      %810 = vmatpush.msra.mxu0 0.0
      %811 = vmatpush.msra.mxu0 0.0
      %812 = vmatpush.msra.mxu0 0.0
      %813 = vmatpush.msra.mxu0 0.0
      %814 = vmatpush.msra.mxu0 0.0
      %815 = vmatpush.msra.mxu0 0.0
      %816 = vmatpush.msra.mxu0 0.0
      %817 = vmatpush.msra.mxu0 0.0
      %818 = vmatpush.msra.mxu0 %v362
      %819 = vmatpush.msra.mxu0 %v361
      %820 = vmatpush.msra.mxu0 %v360
      %821 = vmatpush.msra.mxu0 %v359
      %822 = vmatmul.f32.gmra.mxu0 %v490
      %v823 = vpop.f32.mrf.mxu0
      %v824 = vadd.f32 0.0, %v823
      %825 = vdwg.mxu0
      %v826 = vadd.f32 %v805, %v824
      %827 = vmatpush.msra.mxu0 0.0
      %828 = vmatpush.msra.mxu0 0.0
      %829 = vmatpush.msra.mxu0 0.0
      %830 = vmatpush.msra.mxu0 0.0
      %831 = vmatpush.msra.mxu0 0.0
      %832 = vmatpush.msra.mxu0 0.0
      %833 = vmatpush.msra.mxu0 0.0
      %834 = vmatpush.msra.mxu0 0.0
      %835 = vmatpush.msra.mxu0 0.0
      %836 = vmatpush.msra.mxu0 0.0
      %837 = vmatpush.msra.mxu0 0.0
      %838 = vmatpush.msra.mxu0 0.0
      %839 = vmatpush.msra.mxu0 %v394
      %840 = vmatpush.msra.mxu0 %v393
      %841 = vmatpush.msra.mxu0 %v392
      %842 = vmatpush.msra.mxu0 %v391
      %843 = vmatmul.f32.gmra.mxu0 %v521
      %v844 = vpop.f32.mrf.mxu0
      %v845 = vadd.f32 0.0, %v844
      %846 = vdwg.mxu0
      %v847 = vadd.f32 %v826, %v845
      %848 = vmatpush.msra.mxu0 0.0
      %849 = vmatpush.msra.mxu0 0.0
      %850 = vmatpush.msra.mxu0 0.0
      %851 = vmatpush.msra.mxu0 0.0
      %852 = vmatpush.msra.mxu0 0.0
      %853 = vmatpush.msra.mxu0 0.0
      %854 = vmatpush.msra.mxu0 0.0
      %855 = vmatpush.msra.mxu0 0.0
      %856 = vmatpush.msra.mxu0 0.0
      %857 = vmatpush.msra.mxu0 0.0
      %858 = vmatpush.msra.mxu0 0.0
      %859 = vmatpush.msra.mxu0 0.0
      %860 = vmatpush.msra.mxu0 %v425
      %861 = vmatpush.msra.mxu0 %v424
      %862 = vmatpush.msra.mxu0 %v423
      %863 = vmatpush.msra.mxu0 %v422
      %864 = vmatmul.f32.gmra.mxu0 %v552
      %v865 = vpop.f32.mrf.mxu0
      %v866 = vadd.f32 0.0, %v865
      %867 = vdwg.mxu0
      %v868 = vadd.f32 %v847, %v866
      %869 = vmatpush.msra.mxu0 0.0
      %870 = vmatpush.msra.mxu0 0.0
      %871 = vmatpush.msra.mxu0 0.0
      %872 = vmatpush.msra.mxu0 0.0
      %873 = vmatpush.msra.mxu0 0.0
      %874 = vmatpush.msra.mxu0 0.0
      %875 = vmatpush.msra.mxu0 0.0
      %876 = vmatpush.msra.mxu0 0.0
      %877 = vmatpush.msra.mxu0 0.0
      %878 = vmatpush.msra.mxu0 0.0
      %879 = vmatpush.msra.mxu0 0.0
      %880 = vmatpush.msra.mxu0 0.0
      %881 = vmatpush.msra.mxu0 %v456
      %882 = vmatpush.msra.mxu0 %v455
      %883 = vmatpush.msra.mxu0 %v454
      %884 = vmatpush.msra.mxu0 %v453
      %885 = vmatmul.f32.gmra.mxu0 %v581
      %v886 = vpop.f32.mrf.mxu0
      %v887 = vadd.f32 0.0, %v886
      %888 = vdwg.mxu0
      %v889 = vadd.f32 %v868, %v887
      %890 = vmatpush.msra.mxu0 0.0
      %891 = vmatpush.msra.mxu0 0.0
      %892 = vmatpush.msra.mxu0 0.0
      %893 = vmatpush.msra.mxu0 0.0
      %894 = vmatpush.msra.mxu0 0.0
      %895 = vmatpush.msra.mxu0 0.0
      %896 = vmatpush.msra.mxu0 0.0
      %897 = vmatpush.msra.mxu0 0.0
      %898 = vmatpush.msra.mxu0 0.0
      %899 = vmatpush.msra.mxu0 0.0
      %900 = vmatpush.msra.mxu0 0.0
      %901 = vmatpush.msra.mxu0 0.0
      %902 = vmatpush.msra.mxu0 %v485
      %903 = vmatpush.msra.mxu0 %v484
      %904 = vmatpush.msra.mxu0 %v483
      %905 = vmatpush.msra.mxu0 %v482
      %906 = vmatmul.f32.gmra.mxu0 %v613
      %v907 = vpop.f32.mrf.mxu0
      %v908 = vadd.f32 0.0, %v907
      %909 = vdwg.mxu0
      %v910 = vadd.f32 %v889, %v908
      %911 = vmatpush.msra.mxu0 0.0
      %912 = vmatpush.msra.mxu0 0.0
      %913 = vmatpush.msra.mxu0 0.0
      %914 = vmatpush.msra.mxu0 0.0
      %915 = vmatpush.msra.mxu0 0.0
      %916 = vmatpush.msra.mxu0 0.0
      %917 = vmatpush.msra.mxu0 0.0
      %918 = vmatpush.msra.mxu0 0.0
      %919 = vmatpush.msra.mxu0 0.0
      %920 = vmatpush.msra.mxu0 0.0
      %921 = vmatpush.msra.mxu0 0.0
      %922 = vmatpush.msra.mxu0 0.0
      %923 = vmatpush.msra.mxu0 %v517
      %924 = vmatpush.msra.mxu0 %v516
      %925 = vmatpush.msra.mxu0 %v515
      %926 = vmatpush.msra.mxu0 %v514
      %927 = vmatmul.f32.gmra.mxu0 %v644
      %v928 = vpop.f32.mrf.mxu0
      %v929 = vadd.f32 0.0, %v928
      %930 = vdwg.mxu0
      %v931 = vadd.f32 %v910, %v929
      %932 = vmatpush.msra.mxu0 0.0
      %933 = vmatpush.msra.mxu0 0.0
      %934 = vmatpush.msra.mxu0 0.0
      %935 = vmatpush.msra.mxu0 0.0
      %936 = vmatpush.msra.mxu0 0.0
      %937 = vmatpush.msra.mxu0 0.0
      %938 = vmatpush.msra.mxu0 0.0
      %939 = vmatpush.msra.mxu0 0.0
      %940 = vmatpush.msra.mxu0 0.0
      %941 = vmatpush.msra.mxu0 0.0
      %942 = vmatpush.msra.mxu0 0.0
      %943 = vmatpush.msra.mxu0 0.0
      %944 = vmatpush.msra.mxu0 %v548
      %945 = vmatpush.msra.mxu0 %v547
      %946 = vmatpush.msra.mxu0 %v546
      %947 = vmatpush.msra.mxu0 %v545
      %948 = vmatmul.f32.gmra.mxu0 %v675
      %v949 = vpop.f32.mrf.mxu0
      %v950 = vadd.f32 0.0, %v949
      %951 = vdwg.mxu0
      %v952 = vadd.f32 %v931, %v950
      %v954 = vsel %vm220, %v202, 0
      %956 = vmatpush.msra.mxu0 0.0
      %957 = vmatpush.msra.mxu0 0.0
      %958 = vmatpush.msra.mxu0 0.0
      %959 = vmatpush.msra.mxu0 0.0
      %960 = vmatpush.msra.mxu0 0.0
      %961 = vmatpush.msra.mxu0 0.0
      %962 = vmatpush.msra.mxu0 0.0
      %963 = vmatpush.msra.mxu0 0.0
      %964 = vmatpush.msra.mxu0 0.0
      %965 = vmatpush.msra.mxu0 0.0
      %966 = vmatpush.msra.mxu0 0.0
      %967 = vmatpush.msra.mxu0 0.0
      %968 = vmatpush.msra.mxu0 %v579
      %969 = vmatpush.msra.mxu0 %v578
      %970 = vmatpush.msra.mxu0 %v577
      %971 = vmatpush.msra.mxu0 %v576
      %972 = vmatmul.f32.gmra.mxu0 %v954
      %v973 = vpop.f32.mrf.mxu0
      %v974 = vadd.f32 0.0, %v973
      %975 = vdwg.mxu0
      %v976 = vadd.f32 %v952, %v974
      %v978 = vrot.slane %v202, 1
      %v979 = vrot.slane %v203, 1
      %v980 = vsel %vm216, %v978, %v979
      %v981 = vsel %vm220, %v980, 0
      %983 = vmatpush.msra.mxu0 0.0
      %984 = vmatpush.msra.mxu0 0.0
      %985 = vmatpush.msra.mxu0 0.0
      %986 = vmatpush.msra.mxu0 0.0
      %987 = vmatpush.msra.mxu0 0.0
      %988 = vmatpush.msra.mxu0 0.0
      %989 = vmatpush.msra.mxu0 0.0
      %990 = vmatpush.msra.mxu0 0.0
      %991 = vmatpush.msra.mxu0 0.0
      %992 = vmatpush.msra.mxu0 0.0
      %993 = vmatpush.msra.mxu0 0.0
      %994 = vmatpush.msra.mxu0 0.0
      %995 = vmatpush.msra.mxu0 %v608
      %996 = vmatpush.msra.mxu0 %v607
      %997 = vmatpush.msra.mxu0 %v606
      %998 = vmatpush.msra.mxu0 %v605
      %999 = vmatmul.f32.gmra.mxu0 %v981
      %v1000 = vpop.f32.mrf.mxu0
      %v1001 = vadd.f32 0.0, %v1000
      %1002 = vdwg.mxu0
      %v1003 = vadd.f32 %v976, %v1001
      %v1004 = vrot.slane %v202, 2
      %v1005 = vrot.slane %v203, 2
      %v1006 = vsel %vm270, %v1004, %v1005
      %v1007 = vsel %vm220, %v1006, 0
      %1009 = vmatpush.msra.mxu0 0.0
      %1010 = vmatpush.msra.mxu0 0.0
      %1011 = vmatpush.msra.mxu0 0.0
      %1012 = vmatpush.msra.mxu0 0.0
      %1013 = vmatpush.msra.mxu0 0.0
      %1014 = vmatpush.msra.mxu0 0.0
      %1015 = vmatpush.msra.mxu0 0.0
      %1016 = vmatpush.msra.mxu0 0.0
      %1017 = vmatpush.msra.mxu0 0.0
      %1018 = vmatpush.msra.mxu0 0.0
      %1019 = vmatpush.msra.mxu0 0.0
      %1020 = vmatpush.msra.mxu0 0.0
      %1021 = vmatpush.msra.mxu0 %v640
      %1022 = vmatpush.msra.mxu0 %v639
      %1023 = vmatpush.msra.mxu0 %v638
      %1024 = vmatpush.msra.mxu0 %v637
      %1025 = vmatmul.f32.gmra.mxu0 %v1007
      %v1026 = vpop.f32.mrf.mxu0
      %v1027 = vadd.f32 0.0, %v1026
      %1028 = vdwg.mxu0
      %v1029 = vadd.f32 %v1003, %v1027
      %v1030 = vrot.slane %v202, 3
      %v1031 = vrot.slane %v203, 3
      %v1032 = vsel %vm302, %v1030, %v1031
      %v1033 = vsel %vm220, %v1032, 0
      %1035 = vmatpush.msra.mxu0 0.0
      %1036 = vmatpush.msra.mxu0 0.0
      %1037 = vmatpush.msra.mxu0 0.0
      %1038 = vmatpush.msra.mxu0 0.0
      %1039 = vmatpush.msra.mxu0 0.0
      %1040 = vmatpush.msra.mxu0 0.0
      %1041 = vmatpush.msra.mxu0 0.0
      %1042 = vmatpush.msra.mxu0 0.0
      %1043 = vmatpush.msra.mxu0 0.0
      %1044 = vmatpush.msra.mxu0 0.0
      %1045 = vmatpush.msra.mxu0 0.0
      %1046 = vmatpush.msra.mxu0 0.0
      %1047 = vmatpush.msra.mxu0 %v671
      %1048 = vmatpush.msra.mxu0 %v670
      %1049 = vmatpush.msra.mxu0 %v669
      %1050 = vmatpush.msra.mxu0 %v668
      %1051 = vmatmul.f32.gmra.mxu0 %v1033
      %v1052 = vpop.f32.mrf.mxu0
      %v1053 = vadd.f32 0.0, %v1052
      %1054 = vdwg.mxu0
      %v1055 = vadd.f32 %v1029, %v1053
      %v1056 = vadd.f32 %v1055, %v699
      %v1057 = vmax.f32 %v1056, 0.0
      %v1058 = vmax.f32 %v702, %v1057
      %vm1059 = vcmask 517120
      %v1060 = vsel %vm1059, %v1058, -inf
      %v1061 = vrot.slane %v1060, 4
      %v1062 = vmax.f32 %v1060, %v1061
      %v1063 = vrot.slane %v1062, 2
      %v1064 = vmax.f32 %v1062, %v1063
      %v1065 = vrot.slane %v1064, 1
      %v1066 = vmax.f32 %v1064, %v1065
      %vm1067 = vcmask 519170
      %v1068 = vsel %vm1067, %v1058, -inf
      %v1069 = vrot.slane %v1068, 4
      %v1070 = vmax.f32 %v1068, %v1069
      %v1071 = vrot.slane %v1070, 2
      %v1072 = vmax.f32 %v1070, %v1071
      %v1073 = vrot.slane %v1072, 1
      %v1074 = vmax.f32 %v1072, %v1073
      %vm1075 = vcmask 521220
      %v1076 = vsel %vm1075, %v1058, -inf
      %v1077 = vrot.slane %v1076, 4
      %v1078 = vmax.f32 %v1076, %v1077
      %v1079 = vrot.slane %v1078, 2
      %v1080 = vmax.f32 %v1078, %v1079
      %v1081 = vrot.slane %v1080, 1
      %v1082 = vmax.f32 %v1080, %v1081
      %vm1083 = vcmask 523270
      %v1084 = vsel %vm1083, %v1058, -inf
      %v1085 = vrot.slane %v1084, 4
      %v1086 = vmax.f32 %v1084, %v1085
      %v1087 = vrot.slane %v1086, 2
      %v1088 = vmax.f32 %v1086, %v1087
      %v1089 = vrot.slane %v1088, 1
      %v1090 = vmax.f32 %v1088, %v1089
      %vm1091 = vcmask 1040384
      %v1092 = vsel %vm1091, %v1066, %v1074
      %vm1093 = vcmask 1041408
      %v1094 = vsel %vm1093, %v1092, %v1082
      %vm1095 = vcmask 1042432
      %v1096 = vsel %vm1095, %v1094, %v1090
      %vm1097 = vcmask 519168
      %1098 = vst.msk [vmem:[%s190] sm:$0xf] %vm1097, %v1096
      %p1099 = scmp.lt.s32.totalorder %s18, 1
      %s1100 = scalar_select %p1099, %s18, 1
      %p1101 = scmp.lt.s32.totalorder %s19, 3
      %s1102 = scalar_select %p1101, %s19, 3
      %s1103 = smul.addr %s1100, 4
      %s1104 = sadd.s32 %s1102, %s1103
      %s1105 = smul.addr %s1104, 4
      %s1106 = scalar_lea.vmem %s3, %s1105
      // Predicated region
      $region33: #{cnn_forward.6} parent=31 // pred_check
        %p1107 = pneg %p114
      $region34: #{cnn_forward.6} parent=31 // pred_check_branch
        %1109 = sbr.rel (%p1107) target = $region36
      $region35: #{cnn_forward.6} parent=31 // pred_region
        _
      $region36: #{cnn_forward.6} parent=31 // pred_fallthru
        _
    $region32: #{cnn_forward.6} parent=5 // pred_fallthru
      _
    %p1110 = scmp.le.s32.totalorder 2, %s9
    // Predicated region
    $region37: #{cnn_forward.6} parent=5 // pred_check
      %p1111 = pneg %p1110
    $region38: #{cnn_forward.6} parent=5 // pred_check_branch
      %1113 = sbr.rel (%p1111) target = $region40
    $region39: #{cnn_forward.6} parent=5 // pred_region
      %s1114 = ssub.s32 %s9, 2
      // Predicated region
      $region41: #{cnn_forward.6} parent=39 // pred_check
        %p1115 = pneg %p120
      $region42: #{cnn_forward.6} parent=39 // pred_check_branch
        %1117 = sbr.rel (%p1115) target = $region44
      $region43: #{cnn_forward.6} parent=39 // pred_region
        %p1118 = scmp.lt.s32.totalorder %s20, 1
        %s1119 = scalar_select %p1118, %s20, 1
        %p1120 = scmp.lt.s32.totalorder %s21, 3
        %s1121 = scalar_select %p1120, %s21, 3
        %s1122 = smul.addr %s1119, 4
        %s1123 = sadd.s32 %s1121, %s1122
        %s1124 = smul.addr %s1123, 4
        %s1125 = scalar_lea.vmem %s3, %s1124
      $region44: #{cnn_forward.6} parent=39 // pred_fallthru
        _
    $region40: #{cnn_forward.6} parent=5 // pred_fallthru
      _
  $region6: #{cnn_forward.6} parent=0 // loop_footer
    %s13 = sadd.s32 1, %s9
  $region7: #{cnn_forward.6} parent=0 // loop_footer_branch
    %8 = sbr.rel target = $region3
  $region8: #{cnn_forward.6} parent=0 // loop_exit
    _

// kernel: cnn_forward.7
$region0: #{cnn_forward.7}
  #allocation0 [shape = 'u32[]', space=smem, size = 0x4, offset = 0x4, fixed_abs, tag = 'smem constant byte address 0x4 - core index']
  #allocation1 [shape = 'u32[72,128]{1,0:T(1,128)}', space=vmem, size = 0x9000, scoped, tag = 'internal scratch']
  #allocation2 [shape = 'f32[1,1]{1,0:T(1,128)S(1)}', space=vmem, size = 0x200, scoped, tag = 'scoped memory for cnn_forward.7']
  %s0 = inlined_call_operand.vmem [shape: f32[8,1024], index: 0, kind: input, shape index: {}]
  %s1 = inlined_call_operand.vmem [shape: f32[1024,256], index: 1, kind: input, shape index: {}]
  %s2 = inlined_call_operand.vmem [shape: f32[1,256], index: 2, kind: input, shape index: {}]
  %s3 = inlined_call_operand.vmem [shape: f32[256,128], index: 3, kind: input, shape index: {}]
  %s4 = inlined_call_operand.vmem [shape: f32[1,128], index: 4, kind: input, shape index: {}]
  %s5 = inlined_call_operand.vmem [shape: f32[128,16], index: 5, kind: input, shape index: {}]
  %s6 = inlined_call_operand.vmem [shape: f32[1,16], index: 6, kind: input, shape index: {}]
  %s7 = inlined_call_operand.vmem [shape: f32[16,1], index: 7, kind: input, shape index: {}]
  %s8 = inlined_call_operand.<no memory space> [shape: f32[1,1], index: 8, kind: input, shape index: {}]
  %s9 = inlined_call_operand.vmem [shape: f32[8,1], index: 9, kind: output, shape index: {}]
  %s10 = sld [smem:[#allocation0]]
  $region46: #{cnn_forward.7} parent=0
    _
  %s12 = ssub.s32 1, %s10
  %s13 = scalar_select 0, %s12, %s10
  %v14 = vstv %s8
  %15 = vst [vmem:[#allocation2] sm:$0x1] %v14
  // Predicated region
  $region2: #{cnn_forward.7} parent=0 // pred_check
    _
  $region3: #{cnn_forward.7} parent=0 // pred_check_branch
    %17 = sbr.rel (0) target = $region5
  $region4: #{cnn_forward.7} parent=0 // pred_region
    _
  $region5: #{cnn_forward.7} parent=0 // pred_fallthru
    _
  // Predicated region
  $region6: #{cnn_forward.7} parent=0 // pred_check
    _
  $region7: #{cnn_forward.7} parent=0 // pred_check_branch
    %19 = sbr.rel (0) target = $region9
  $region8: #{cnn_forward.7} parent=0 // pred_region
    _
  $region9: #{cnn_forward.7} parent=0 // pred_fallthru
    _
  // Predicated region
  $region10: #{cnn_forward.7} parent=0 // pred_check
    _
  $region11: #{cnn_forward.7} parent=0 // pred_check_branch
    %21 = sbr.rel (0) target = $region13
  $region12: #{cnn_forward.7} parent=0 // pred_region
    _
  $region13: #{cnn_forward.7} parent=0 // pred_fallthru
    _
  // Predicated region
  $region14: #{cnn_forward.7} parent=0 // pred_check
    _
  $region15: #{cnn_forward.7} parent=0 // pred_check_branch
    %23 = sbr.rel (0) target = $region17
  $region16: #{cnn_forward.7} parent=0 // pred_region
    _
  $region17: #{cnn_forward.7} parent=0 // pred_fallthru
    _
  // Predicated region
  $region18: #{cnn_forward.7} parent=0 // pred_check
    _
  $region19: #{cnn_forward.7} parent=0 // pred_check_branch
    %25 = sbr.rel (0) target = $region21
  $region20: #{cnn_forward.7} parent=0 // pred_region
    _
  $region21: #{cnn_forward.7} parent=0 // pred_fallthru
    _
  // Predicated region
  $region22: #{cnn_forward.7} parent=0 // pred_check
    _
  $region23: #{cnn_forward.7} parent=0 // pred_check_branch
    %27 = sbr.rel (0) target = $region25
  $region24: #{cnn_forward.7} parent=0 // pred_region
    _
  $region25: #{cnn_forward.7} parent=0 // pred_fallthru
    _
  // Predicated region
  $region26: #{cnn_forward.7} parent=0 // pred_check
    _
  $region27: #{cnn_forward.7} parent=0 // pred_check_branch
    %29 = sbr.rel (0) target = $region29
  $region28: #{cnn_forward.7} parent=0 // pred_region
    _
  $region29: #{cnn_forward.7} parent=0 // pred_fallthru
    _
  // Predicated region
  $region30: #{cnn_forward.7} parent=0 // pred_check
    _
  $region31: #{cnn_forward.7} parent=0 // pred_check_branch
    %31 = sbr.rel (0) target = $region33
  $region32: #{cnn_forward.7} parent=0 // pred_region
    _
  $region33: #{cnn_forward.7} parent=0 // pred_fallthru
    _
  // Predicated region
  $region34: #{cnn_forward.7} parent=0 // pred_check
    _
  $region35: #{cnn_forward.7} parent=0 // pred_check_branch
    %33 = sbr.rel (0) target = $region37
  $region36: #{cnn_forward.7} parent=0 // pred_region
    _
  $region37: #{cnn_forward.7} parent=0 // pred_fallthru
    _
  %v34 = vld [vmem:[%s0] sm:$0xff]
  %v35 = vld [vmem:[%s0 + $0x8] sm:$0xff]
  %v36 = vld [vmem:[%s0 + $0x10] sm:$0xff]
  %v37 = vld [vmem:[%s0 + $0x18] sm:$0xff]
  %v38 = vld [vmem:[%s0 + $0x20] sm:$0xff]
  %v39 = vld [vmem:[%s0 + $0x28] sm:$0xff]
  %v40 = vld [vmem:[%s0 + $0x30] sm:$0xff]
  %v41 = vld [vmem:[%s0 + $0x38] sm:$0xff]
  %v42 = vld [vmem:[%s1] sm:$0xff]
  %v43 = vld [vmem:[%s1 + $0x8] sm:$0xff]
  %v44 = vld [vmem:[%s1 + $0x10] sm:$0xff]
  %v45 = vld [vmem:[%s1 + $0x18] sm:$0xff]
  %v46 = vld [vmem:[%s1 + $0x20] sm:$0xff]
  %v47 = vld [vmem:[%s1 + $0x28] sm:$0xff]
  %v48 = vld [vmem:[%s1 + $0x30] sm:$0xff]
  %v49 = vld [vmem:[%s1 + $0x38] sm:$0xff]
  %v50 = vld [vmem:[%s1 + $0x40] sm:$0xff]
  %v51 = vld [vmem:[%s1 + $0x48] sm:$0xff]
  %v52 = vld [vmem:[%s1 + $0x50] sm:$0xff]
  %v53 = vld [vmem:[%s1 + $0x58] sm:$0xff]
  %v54 = vld [vmem:[%s1 + $0x60] sm:$0xff]
  %v55 = vld [vmem:[%s1 + $0x68] sm:$0xff]
  %v56 = vld [vmem:[%s1 + $0x70] sm:$0xff]
  %v57 = vld [vmem:[%s1 + $0x78] sm:$0xff]
  %v58 = vld [vmem:[%s1 + $0x80] sm:$0xff]
  %v59 = vld [vmem:[%s1 + $0x88] sm:$0xff]
  %v60 = vld [vmem:[%s1 + $0x90] sm:$0xff]
  %v61 = vld [vmem:[%s1 + $0x98] sm:$0xff]
  %v62 = vld [vmem:[%s1 + $0xa0] sm:$0xff]
  %v63 = vld [vmem:[%s1 + $0xa8] sm:$0xff]
  %v64 = vld [vmem:[%s1 + $0xb0] sm:$0xff]
  %v65 = vld [vmem:[%s1 + $0xb8] sm:$0xff]
  %v66 = vld [vmem:[%s1 + $0xc0] sm:$0xff]
  %v67 = vld [vmem:[%s1 + $0xc8] sm:$0xff]
  %v68 = vld [vmem:[%s1 + $0xd0] sm:$0xff]
  %v69 = vld [vmem:[%s1 + $0xd8] sm:$0xff]
  %v70 = vld [vmem:[%s1 + $0xe0] sm:$0xff]
  %v71 = vld [vmem:[%s1 + $0xe8] sm:$0xff]
  %v72 = vld [vmem:[%s1 + $0xf0] sm:$0xff]
  %v73 = vld [vmem:[%s1 + $0xf8] sm:$0xff]
  %v74 = vld [vmem:[%s1 + $0x100] sm:$0xff]
  %v75 = vld [vmem:[%s1 + $0x108] sm:$0xff]
  %v76 = vld [vmem:[%s1 + $0x110] sm:$0xff]
  %v77 = vld [vmem:[%s1 + $0x118] sm:$0xff]
  %v78 = vld [vmem:[%s1 + $0x120] sm:$0xff]
  %v79 = vld [vmem:[%s1 + $0x128] sm:$0xff]
  %v80 = vld [vmem:[%s1 + $0x130] sm:$0xff]
  %v81 = vld [vmem:[%s1 + $0x138] sm:$0xff]
  %v82 = vld [vmem:[%s1 + $0x140] sm:$0xff]
  %v83 = vld [vmem:[%s1 + $0x148] sm:$0xff]
  %v84 = vld [vmem:[%s1 + $0x150] sm:$0xff]
  %v85 = vld [vmem:[%s1 + $0x158] sm:$0xff]
  %v86 = vld [vmem:[%s1 + $0x160] sm:$0xff]
  %v87 = vld [vmem:[%s1 + $0x168] sm:$0xff]
  %v88 = vld [vmem:[%s1 + $0x170] sm:$0xff]
  %v89 = vld [vmem:[%s1 + $0x178] sm:$0xff]
  %v90 = vld [vmem:[%s1 + $0x180] sm:$0xff]
  %v91 = vld [vmem:[%s1 + $0x188] sm:$0xff]
  %v92 = vld [vmem:[%s1 + $0x190] sm:$0xff]
  %v93 = vld [vmem:[%s1 + $0x198] sm:$0xff]
  %v94 = vld [vmem:[%s1 + $0x1a0] sm:$0xff]
  %v95 = vld [vmem:[%s1 + $0x1a8] sm:$0xff]
  %v96 = vld [vmem:[%s1 + $0x1b0] sm:$0xff]
  %v97 = vld [vmem:[%s1 + $0x1b8] sm:$0xff]
  %v98 = vld [vmem:[%s1 + $0x1c0] sm:$0xff]
  %v99 = vld [vmem:[%s1 + $0x1c8] sm:$0xff]
  %v100 = vld [vmem:[%s1 + $0x1d0] sm:$0xff]
  %v101 = vld [vmem:[%s1 + $0x1d8] sm:$0xff]
  %v102 = vld [vmem:[%s1 + $0x1e0] sm:$0xff]
  %v103 = vld [vmem:[%s1 + $0x1e8] sm:$0xff]
  %v104 = vld [vmem:[%s1 + $0x1f0] sm:$0xff]
  %v105 = vld [vmem:[%s1 + $0x1f8] sm:$0xff]
  %v106 = vld [vmem:[%s1 + $0x200] sm:$0xff]
  %v107 = vld [vmem:[%s1 + $0x208] sm:$0xff]
  %v108 = vld [vmem:[%s1 + $0x210] sm:$0xff]
  %v109 = vld [vmem:[%s1 + $0x218] sm:$0xff]
  %v110 = vld [vmem:[%s1 + $0x220] sm:$0xff]
  %v111 = vld [vmem:[%s1 + $0x228] sm:$0xff]
  %v112 = vld [vmem:[%s1 + $0x230] sm:$0xff]
  %v113 = vld [vmem:[%s1 + $0x238] sm:$0xff]
  %v114 = vld [vmem:[%s1 + $0x240] sm:$0xff]
  %v115 = vld [vmem:[%s1 + $0x248] sm:$0xff]
  %v116 = vld [vmem:[%s1 + $0x250] sm:$0xff]
  %v117 = vld [vmem:[%s1 + $0x258] sm:$0xff]
  %v118 = vld [vmem:[%s1 + $0x260] sm:$0xff]
  %v119 = vld [vmem:[%s1 + $0x268] sm:$0xff]
  %v120 = vld [vmem:[%s1 + $0x270] sm:$0xff]
  %v121 = vld [vmem:[%s1 + $0x278] sm:$0xff]
  %v122 = vld [vmem:[%s1 + $0x280] sm:$0xff]
  %v123 = vld [vmem:[%s1 + $0x288] sm:$0xff]
  %v124 = vld [vmem:[%s1 + $0x290] sm:$0xff]
  %v125 = vld [vmem:[%s1 + $0x298] sm:$0xff]
  %v126 = vld [vmem:[%s1 + $0x2a0] sm:$0xff]
  %v127 = vld [vmem:[%s1 + $0x2a8] sm:$0xff]
  %v128 = vld [vmem:[%s1 + $0x2b0] sm:$0xff]
  %v129 = vld [vmem:[%s1 + $0x2b8] sm:$0xff]
  %v130 = vld [vmem:[%s1 + $0x2c0] sm:$0xff]
  %v131 = vld [vmem:[%s1 + $0x2c8] sm:$0xff]
  %v132 = vld [vmem:[%s1 + $0x2d0] sm:$0xff]
  %v133 = vld [vmem:[%s1 + $0x2d8] sm:$0xff]
  %v134 = vld [vmem:[%s1 + $0x2e0] sm:$0xff]
  %v135 = vld [vmem:[%s1 + $0x2e8] sm:$0xff]
  %v136 = vld [vmem:[%s1 + $0x2f0] sm:$0xff]
  %v137 = vld [vmem:[%s1 + $0x2f8] sm:$0xff]
  %v138 = vld [vmem:[%s1 + $0x300] sm:$0xff]
  %v139 = vld [vmem:[%s1 + $0x308] sm:$0xff]
  %v140 = vld [vmem:[%s1 + $0x310] sm:$0xff]
  %v141 = vld [vmem:[%s1 + $0x318] sm:$0xff]
  %v142 = vld [vmem:[%s1 + $0x320] sm:$0xff]
  %v143 = vld [vmem:[%s1 + $0x328] sm:$0xff]
  %v144 = vld [vmem:[%s1 + $0x330] sm:$0xff]
  %v145 = vld [vmem:[%s1 + $0x338] sm:$0xff]
  %v146 = vld [vmem:[%s1 + $0x340] sm:$0xff]
  %v147 = vld [vmem:[%s1 + $0x348] sm:$0xff]
  %v148 = vld [vmem:[%s1 + $0x350] sm:$0xff]
  %v149 = vld [vmem:[%s1 + $0x358] sm:$0xff]
  %v150 = vld [vmem:[%s1 + $0x360] sm:$0xff]
  %v151 = vld [vmem:[%s1 + $0x368] sm:$0xff]
  %v152 = vld [vmem:[%s1 + $0x370] sm:$0xff]
  %v153 = vld [vmem:[%s1 + $0x378] sm:$0xff]
  %v154 = vld [vmem:[%s1 + $0x380] sm:$0xff]
  %v155 = vld [vmem:[%s1 + $0x388] sm:$0xff]
  %v156 = vld [vmem:[%s1 + $0x390] sm:$0xff]
  %v157 = vld [vmem:[%s1 + $0x398] sm:$0xff]
  %v158 = vld [vmem:[%s1 + $0x3a0] sm:$0xff]
  %v159 = vld [vmem:[%s1 + $0x3a8] sm:$0xff]
  %v160 = vld [vmem:[%s1 + $0x3b0] sm:$0xff]
  %v161 = vld [vmem:[%s1 + $0x3b8] sm:$0xff]
  %v162 = vld [vmem:[%s1 + $0x3c0] sm:$0xff]
  %v163 = vld [vmem:[%s1 + $0x3c8] sm:$0xff]
  %v164 = vld [vmem:[%s1 + $0x3d0] sm:$0xff]
  %v165 = vld [vmem:[%s1 + $0x3d8] sm:$0xff]
  %v166 = vld [vmem:[%s1 + $0x3e0] sm:$0xff]
  %v167 = vld [vmem:[%s1 + $0x3e8] sm:$0xff]
  %v168 = vld [vmem:[%s1 + $0x3f0] sm:$0xff]
  %v169 = vld [vmem:[%s1 + $0x3f8] sm:$0xff]
  %v170 = vld [vmem:[%s1 + $0x400] sm:$0xff]
  %v171 = vld [vmem:[%s1 + $0x408] sm:$0xff]
  %v172 = vld [vmem:[%s1 + $0x410] sm:$0xff]
  %v173 = vld [vmem:[%s1 + $0x418] sm:$0xff]
  %v174 = vld [vmem:[%s1 + $0x420] sm:$0xff]
  %v175 = vld [vmem:[%s1 + $0x428] sm:$0xff]
  %v176 = vld [vmem:[%s1 + $0x430] sm:$0xff]
  %v177 = vld [vmem:[%s1 + $0x438] sm:$0xff]
  %v178 = vld [vmem:[%s1 + $0x440] sm:$0xff]
  %v179 = vld [vmem:[%s1 + $0x448] sm:$0xff]
  %v180 = vld [vmem:[%s1 + $0x450] sm:$0xff]
  %v181 = vld [vmem:[%s1 + $0x458] sm:$0xff]
  %v182 = vld [vmem:[%s1 + $0x460] sm:$0xff]
  %v183 = vld [vmem:[%s1 + $0x468] sm:$0xff]
  %v184 = vld [vmem:[%s1 + $0x470] sm:$0xff]
  %v185 = vld [vmem:[%s1 + $0x478] sm:$0xff]
  %v186 = vld [vmem:[%s1 + $0x480] sm:$0xff]
  %v187 = vld [vmem:[%s1 + $0x488] sm:$0xff]
  %v188 = vld [vmem:[%s1 + $0x490] sm:$0xff]
  %v189 = vld [vmem:[%s1 + $0x498] sm:$0xff]
  %v190 = vld [vmem:[%s1 + $0x4a0] sm:$0xff]
  %v191 = vld [vmem:[%s1 + $0x4a8] sm:$0xff]
  %v192 = vld [vmem:[%s1 + $0x4b0] sm:$0xff]
  %v193 = vld [vmem:[%s1 + $0x4b8] sm:$0xff]
  %v194 = vld [vmem:[%s1 + $0x4c0] sm:$0xff]
  %v195 = vld [vmem:[%s1 + $0x4c8] sm:$0xff]
  %v196 = vld [vmem:[%s1 + $0x4d0] sm:$0xff]
  %v197 = vld [vmem:[%s1 + $0x4d8] sm:$0xff]
  %v198 = vld [vmem:[%s1 + $0x4e0] sm:$0xff]
  %v199 = vld [vmem:[%s1 + $0x4e8] sm:$0xff]
  %v200 = vld [vmem:[%s1 + $0x4f0] sm:$0xff]
  %v201 = vld [vmem:[%s1 + $0x4f8] sm:$0xff]
  %v202 = vld [vmem:[%s1 + $0x500] sm:$0xff]
  %v203 = vld [vmem:[%s1 + $0x508] sm:$0xff]
  %v204 = vld [vmem:[%s1 + $0x510] sm:$0xff]
  %v205 = vld [vmem:[%s1 + $0x518] sm:$0xff]
  %v206 = vld [vmem:[%s1 + $0x520] sm:$0xff]
  %v207 = vld [vmem:[%s1 + $0x528] sm:$0xff]
  %v208 = vld [vmem:[%s1 + $0x530] sm:$0xff]
  %v209 = vld [vmem:[%s1 + $0x538] sm:$0xff]
  %v210 = vld [vmem:[%s1 + $0x540] sm:$0xff]
  %v211 = vld [vmem:[%s1 + $0x548] sm:$0xff]
  %v212 = vld [vmem:[%s1 + $0x550] sm:$0xff]
  %v213 = vld [vmem:[%s1 + $0x558] sm:$0xff]
  %v214 = vld [vmem:[%s1 + $0x560] sm:$0xff]
  %v215 = vld [vmem:[%s1 + $0x568] sm:$0xff]
  %v216 = vld [vmem:[%s1 + $0x570] sm:$0xff]
  %v217 = vld [vmem:[%s1 + $0x578] sm:$0xff]
  %v218 = vld [vmem:[%s1 + $0x580] sm:$0xff]
  %v219 = vld [vmem:[%s1 + $0x588] sm:$0xff]
  %v220 = vld [vmem:[%s1 + $0x590] sm:$0xff]
  %v221 = vld [vmem:[%s1 + $0x598] sm:$0xff]
  %v222 = vld [vmem:[%s1 + $0x5a0] sm:$0xff]
  %v223 = vld [vmem:[%s1 + $0x5a8] sm:$0xff]
  %v224 = vld [vmem:[%s1 + $0x5b0] sm:$0xff]
  %v225 = vld [vmem:[%s1 + $0x5b8] sm:$0xff]
  %v226 = vld [vmem:[%s1 + $0x5c0] sm:$0xff]
  %v227 = vld [vmem:[%s1 + $0x5c8] sm:$0xff]
  %v228 = vld [vmem:[%s1 + $0x5d0] sm:$0xff]
  %v229 = vld [vmem:[%s1 + $0x5d8] sm:$0xff]
  %v230 = vld [vmem:[%s1 + $0x5e0] sm:$0xff]
  %v231 = vld [vmem:[%s1 + $0x5e8] sm:$0xff]
  %v232 = vld [vmem:[%s1 + $0x5f0] sm:$0xff]
  %v233 = vld [vmem:[%s1 + $0x5f8] sm:$0xff]
  %v234 = vld [vmem:[%s1 + $0x600] sm:$0xff]
  %v235 = vld [vmem:[%s1 + $0x608] sm:$0xff]
  %v236 = vld [vmem:[%s1 + $0x610] sm:$0xff]
  %v237 = vld [vmem:[%s1 + $0x618] sm:$0xff]
  %v238 = vld [vmem:[%s1 + $0x620] sm:$0xff]
  %v239 = vld [vmem:[%s1 + $0x628] sm:$0xff]
  %v240 = vld [vmem:[%s1 + $0x630] sm:$0xff]
  %v241 = vld [vmem:[%s1 + $0x638] sm:$0xff]
  %v242 = vld [vmem:[%s1 + $0x640] sm:$0xff]
  %v243 = vld [vmem:[%s1 + $0x648] sm:$0xff]
  %v244 = vld [vmem:[%s1 + $0x650] sm:$0xff]
  %v245 = vld [vmem:[%s1 + $0x658] sm:$0xff]
  %v246 = vld [vmem:[%s1 + $0x660] sm:$0xff]
  %v247 = vld [vmem:[%s1 + $0x668] sm:$0xff]
  %v248 = vld [vmem:[%s1 + $0x670] sm:$0xff]
  %v249 = vld [vmem:[%s1 + $0x678] sm:$0xff]
  %v250 = vld [vmem:[%s1 + $0x680] sm:$0xff]
  %v251 = vld [vmem:[%s1 + $0x688] sm:$0xff]
  %v252 = vld [vmem:[%s1 + $0x690] sm:$0xff]
  %v253 = vld [vmem:[%s1 + $0x698] sm:$0xff]
  %v254 = vld [vmem:[%s1 + $0x6a0] sm:$0xff]
  %v255 = vld [vmem:[%s1 + $0x6a8] sm:$0xff]
  %v256 = vld [vmem:[%s1 + $0x6b0] sm:$0xff]
  %v257 = vld [vmem:[%s1 + $0x6b8] sm:$0xff]
  %v258 = vld [vmem:[%s1 + $0x6c0] sm:$0xff]
  %v259 = vld [vmem:[%s1 + $0x6c8] sm:$0xff]
  %v260 = vld [vmem:[%s1 + $0x6d0] sm:$0xff]
  %v261 = vld [vmem:[%s1 + $0x6d8] sm:$0xff]
  %v262 = vld [vmem:[%s1 + $0x6e0] sm:$0xff]
  %v263 = vld [vmem:[%s1 + $0x6e8] sm:$0xff]
  %v264 = vld [vmem:[%s1 + $0x6f0] sm:$0xff]
  %v265 = vld [vmem:[%s1 + $0x6f8] sm:$0xff]
  %v266 = vld [vmem:[%s1 + $0x700] sm:$0xff]
  %v267 = vld [vmem:[%s1 + $0x708] sm:$0xff]
  %v268 = vld [vmem:[%s1 + $0x710] sm:$0xff]
  %v269 = vld [vmem:[%s1 + $0x718] sm:$0xff]
  %v270 = vld [vmem:[%s1 + $0x720] sm:$0xff]
  %v271 = vld [vmem:[%s1 + $0x728] sm:$0xff]
  %v272 = vld [vmem:[%s1 + $0x730] sm:$0xff]
  %v273 = vld [vmem:[%s1 + $0x738] sm:$0xff]
  %v274 = vld [vmem:[%s1 + $0x740] sm:$0xff]
  %v275 = vld [vmem:[%s1 + $0x748] sm:$0xff]
  %v276 = vld [vmem:[%s1 + $0x750] sm:$0xff]
  %v277 = vld [vmem:[%s1 + $0x758] sm:$0xff]
  %v278 = vld [vmem:[%s1 + $0x760] sm:$0xff]
  %v279 = vld [vmem:[%s1 + $0x768] sm:$0xff]
  %v280 = vld [vmem:[%s1 + $0x770] sm:$0xff]
  %v281 = vld [vmem:[%s1 + $0x778] sm:$0xff]
  %v282 = vld [vmem:[%s1 + $0x780] sm:$0xff]
  %v283 = vld [vmem:[%s1 + $0x788] sm:$0xff]
  %v284 = vld [vmem:[%s1 + $0x790] sm:$0xff]
  %v285 = vld [vmem:[%s1 + $0x798] sm:$0xff]
  %v286 = vld [vmem:[%s1 + $0x7a0] sm:$0xff]
  %v287 = vld [vmem:[%s1 + $0x7a8] sm:$0xff]
  %v288 = vld [vmem:[%s1 + $0x7b0] sm:$0xff]
  %v289 = vld [vmem:[%s1 + $0x7b8] sm:$0xff]
  %v290 = vld [vmem:[%s1 + $0x7c0] sm:$0xff]
  %v291 = vld [vmem:[%s1 + $0x7c8] sm:$0xff]
  %v292 = vld [vmem:[%s1 + $0x7d0] sm:$0xff]
  %v293 = vld [vmem:[%s1 + $0x7d8] sm:$0xff]
  %v294 = vld [vmem:[%s1 + $0x7e0] sm:$0xff]
  %v295 = vld [vmem:[%s1 + $0x7e8] sm:$0xff]
  %v296 = vld [vmem:[%s1 + $0x7f0] sm:$0xff]
  %v297 = vld [vmem:[%s1 + $0x7f8] sm:$0xff]
  %v298 = vld [vmem:[%s2] sm:$0x3]
  %v300 = vperm.slane %v298, 0
  %v301 = vperm.slane %v298, 1
  %304 = vmatpush.msra.mxu0 %v72
  %305 = vmatpush.msra.mxu0 %v70
  %306 = vmatpush.msra.mxu0 %v68
  %307 = vmatpush.msra.mxu0 %v66
  %308 = vmatpush.msra.mxu0 %v64
  %309 = vmatpush.msra.mxu0 %v62
  %310 = vmatpush.msra.mxu0 %v60
  %311 = vmatpush.msra.mxu0 %v58
  %312 = vmatpush.msra.mxu0 %v56
  %313 = vmatpush.msra.mxu0 %v54
  %314 = vmatpush.msra.mxu0 %v52
  %315 = vmatpush.msra.mxu0 %v50
  %316 = vmatpush.msra.mxu0 %v48
  %317 = vmatpush.msra.mxu0 %v46
  %318 = vmatpush.msra.mxu0 %v44
  %319 = vmatpush.msra.mxu0 %v42
  %320 = vmatmul.f32.gmra.mxu0 %v34
  %v321 = vpop.f32.mrf.mxu0
  %v322 = vadd.f32 %v300, %v321
  %323 = vdwg.mxu0
  %324 = vmatpush.msra.mxu0 %v104
  %325 = vmatpush.msra.mxu0 %v102
  %326 = vmatpush.msra.mxu0 %v100
  %327 = vmatpush.msra.mxu0 %v98
  %328 = vmatpush.msra.mxu0 %v96
  %329 = vmatpush.msra.mxu0 %v94
  %330 = vmatpush.msra.mxu0 %v92
  %331 = vmatpush.msra.mxu0 %v90
  %332 = vmatpush.msra.mxu0 %v88
  %333 = vmatpush.msra.mxu0 %v86
  %334 = vmatpush.msra.mxu0 %v84
  %335 = vmatpush.msra.mxu0 %v82
  %336 = vmatpush.msra.mxu0 %v80
  %337 = vmatpush.msra.mxu0 %v78
  %338 = vmatpush.msra.mxu0 %v76
  %339 = vmatpush.msra.mxu0 %v74
  %340 = vmatmul.f32.gmra.mxu0 %v35
  %v341 = vpop.f32.mrf.mxu0
  %v342 = vadd.f32 %v322, %v341
  %343 = vdwg.mxu0
  %344 = vmatpush.msra.mxu0 %v136
  %345 = vmatpush.msra.mxu0 %v134
  %346 = vmatpush.msra.mxu0 %v132
  %347 = vmatpush.msra.mxu0 %v130
  %348 = vmatpush.msra.mxu0 %v128
  %349 = vmatpush.msra.mxu0 %v126
  %350 = vmatpush.msra.mxu0 %v124
  %351 = vmatpush.msra.mxu0 %v122
  %352 = vmatpush.msra.mxu0 %v120
  %353 = vmatpush.msra.mxu0 %v118
  %354 = vmatpush.msra.mxu0 %v116
  %355 = vmatpush.msra.mxu0 %v114
  %356 = vmatpush.msra.mxu0 %v112
  %357 = vmatpush.msra.mxu0 %v110
  %358 = vmatpush.msra.mxu0 %v108
  %359 = vmatpush.msra.mxu0 %v106
  %360 = vmatmul.f32.gmra.mxu0 %v36
  %v361 = vpop.f32.mrf.mxu0
  %v362 = vadd.f32 %v342, %v361
  %363 = vdwg.mxu0
  %364 = vmatpush.msra.mxu0 %v168
  %365 = vmatpush.msra.mxu0 %v166
  %366 = vmatpush.msra.mxu0 %v164
  %367 = vmatpush.msra.mxu0 %v162
  %368 = vmatpush.msra.mxu0 %v160
  %369 = vmatpush.msra.mxu0 %v158
  %370 = vmatpush.msra.mxu0 %v156
  %371 = vmatpush.msra.mxu0 %v154
  %372 = vmatpush.msra.mxu0 %v152
  %373 = vmatpush.msra.mxu0 %v150
  %374 = vmatpush.msra.mxu0 %v148
  %375 = vmatpush.msra.mxu0 %v146
  %376 = vmatpush.msra.mxu0 %v144
  %377 = vmatpush.msra.mxu0 %v142
  %378 = vmatpush.msra.mxu0 %v140
  %379 = vmatpush.msra.mxu0 %v138
  %380 = vmatmul.f32.gmra.mxu0 %v37
  %v381 = vpop.f32.mrf.mxu0
  %v382 = vadd.f32 %v362, %v381
  %383 = vdwg.mxu0
  %384 = vmatpush.msra.mxu0 %v200
  %385 = vmatpush.msra.mxu0 %v198
  %386 = vmatpush.msra.mxu0 %v196
  %387 = vmatpush.msra.mxu0 %v194
  %388 = vmatpush.msra.mxu0 %v192
  %389 = vmatpush.msra.mxu0 %v190
  %390 = vmatpush.msra.mxu0 %v188
  %391 = vmatpush.msra.mxu0 %v186
  %392 = vmatpush.msra.mxu0 %v184
  %393 = vmatpush.msra.mxu0 %v182
  %394 = vmatpush.msra.mxu0 %v180
  %395 = vmatpush.msra.mxu0 %v178
  %396 = vmatpush.msra.mxu0 %v176
  %397 = vmatpush.msra.mxu0 %v174
  %398 = vmatpush.msra.mxu0 %v172
  %399 = vmatpush.msra.mxu0 %v170
  %400 = vmatmul.f32.gmra.mxu0 %v38
  %v401 = vpop.f32.mrf.mxu0
  %v402 = vadd.f32 %v382, %v401
  %403 = vdwg.mxu0
  %404 = vmatpush.msra.mxu0 %v232
  %405 = vmatpush.msra.mxu0 %v230
  %406 = vmatpush.msra.mxu0 %v228
  %407 = vmatpush.msra.mxu0 %v226
  %408 = vmatpush.msra.mxu0 %v224
  %409 = vmatpush.msra.mxu0 %v222
  %410 = vmatpush.msra.mxu0 %v220
  %411 = vmatpush.msra.mxu0 %v218
  %412 = vmatpush.msra.mxu0 %v216
  %413 = vmatpush.msra.mxu0 %v214
  %414 = vmatpush.msra.mxu0 %v212
  %415 = vmatpush.msra.mxu0 %v210
  %416 = vmatpush.msra.mxu0 %v208
  %417 = vmatpush.msra.mxu0 %v206
  %418 = vmatpush.msra.mxu0 %v204
  %419 = vmatpush.msra.mxu0 %v202
  %420 = vmatmul.f32.gmra.mxu0 %v39
  %v421 = vpop.f32.mrf.mxu0
  %v422 = vadd.f32 %v402, %v421
  %423 = vdwg.mxu0
  %424 = vmatpush.msra.mxu0 %v264
  %425 = vmatpush.msra.mxu0 %v262
  %426 = vmatpush.msra.mxu0 %v260
  %427 = vmatpush.msra.mxu0 %v258
  %428 = vmatpush.msra.mxu0 %v256
  %429 = vmatpush.msra.mxu0 %v254
  %430 = vmatpush.msra.mxu0 %v252
  %431 = vmatpush.msra.mxu0 %v250
  %432 = vmatpush.msra.mxu0 %v248
  %433 = vmatpush.msra.mxu0 %v246
  %434 = vmatpush.msra.mxu0 %v244
  %435 = vmatpush.msra.mxu0 %v242
  %436 = vmatpush.msra.mxu0 %v240
  %437 = vmatpush.msra.mxu0 %v238
  %438 = vmatpush.msra.mxu0 %v236
  %439 = vmatpush.msra.mxu0 %v234
  %440 = vmatmul.f32.gmra.mxu0 %v40
  %v441 = vpop.f32.mrf.mxu0
  %v442 = vadd.f32 %v422, %v441
  %443 = vdwg.mxu0
  %444 = vmatpush.msra.mxu0 %v296
  %445 = vmatpush.msra.mxu0 %v294
  %446 = vmatpush.msra.mxu0 %v292
  %447 = vmatpush.msra.mxu0 %v290
  %448 = vmatpush.msra.mxu0 %v288
  %449 = vmatpush.msra.mxu0 %v286
  %450 = vmatpush.msra.mxu0 %v284
  %451 = vmatpush.msra.mxu0 %v282
  %452 = vmatpush.msra.mxu0 %v280
  %453 = vmatpush.msra.mxu0 %v278
  %454 = vmatpush.msra.mxu0 %v276
  %455 = vmatpush.msra.mxu0 %v274
  %456 = vmatpush.msra.mxu0 %v272
  %457 = vmatpush.msra.mxu0 %v270
  %458 = vmatpush.msra.mxu0 %v268
  %459 = vmatpush.msra.mxu0 %v266
  %460 = vmatmul.f32.gmra.mxu0 %v41
  %v461 = vpop.f32.mrf.mxu0
  %v462 = vadd.f32 %v442, %v461
  %463 = vdwg.mxu0
  %464 = vmatpush.msra.mxu0 %v73
  %465 = vmatpush.msra.mxu0 %v71
  %466 = vmatpush.msra.mxu0 %v69
  %467 = vmatpush.msra.mxu0 %v67
  %468 = vmatpush.msra.mxu0 %v65
  %469 = vmatpush.msra.mxu0 %v63
  %470 = vmatpush.msra.mxu0 %v61
  %471 = vmatpush.msra.mxu0 %v59
  %472 = vmatpush.msra.mxu0 %v57
  %473 = vmatpush.msra.mxu0 %v55
  %474 = vmatpush.msra.mxu0 %v53
  %475 = vmatpush.msra.mxu0 %v51
  %476 = vmatpush.msra.mxu0 %v49
  %477 = vmatpush.msra.mxu0 %v47
  %478 = vmatpush.msra.mxu0 %v45
  %479 = vmatpush.msra.mxu0 %v43
  %480 = vmatmul.f32.gmra.mxu0 %v34
  %v481 = vpop.f32.mrf.mxu0
  %v482 = vadd.f32 %v301, %v481
  %483 = vdwg.mxu0
  %484 = vmatpush.msra.mxu0 %v105
  %485 = vmatpush.msra.mxu0 %v103
  %486 = vmatpush.msra.mxu0 %v101
  %487 = vmatpush.msra.mxu0 %v99
  %488 = vmatpush.msra.mxu0 %v97
  %489 = vmatpush.msra.mxu0 %v95
  %490 = vmatpush.msra.mxu0 %v93
  %491 = vmatpush.msra.mxu0 %v91
  %492 = vmatpush.msra.mxu0 %v89
  %493 = vmatpush.msra.mxu0 %v87
  %494 = vmatpush.msra.mxu0 %v85
  %495 = vmatpush.msra.mxu0 %v83
  %496 = vmatpush.msra.mxu0 %v81
  %497 = vmatpush.msra.mxu0 %v79
  %498 = vmatpush.msra.mxu0 %v77
  %499 = vmatpush.msra.mxu0 %v75
  %500 = vmatmul.f32.gmra.mxu0 %v35
  %v501 = vpop.f32.mrf.mxu0
  %v502 = vadd.f32 %v482, %v501
  %503 = vdwg.mxu0
  %504 = vmatpush.msra.mxu0 %v137
  %505 = vmatpush.msra.mxu0 %v135
  %506 = vmatpush.msra.mxu0 %v133
  %507 = vmatpush.msra.mxu0 %v131
  %508 = vmatpush.msra.mxu0 %v129
  %509 = vmatpush.msra.mxu0 %v127
  %510 = vmatpush.msra.mxu0 %v125
  %511 = vmatpush.msra.mxu0 %v123
  %512 = vmatpush.msra.mxu0 %v121
  %513 = vmatpush.msra.mxu0 %v119
  %514 = vmatpush.msra.mxu0 %v117
  %515 = vmatpush.msra.mxu0 %v115
  %516 = vmatpush.msra.mxu0 %v113
  %517 = vmatpush.msra.mxu0 %v111
  %518 = vmatpush.msra.mxu0 %v109
  %519 = vmatpush.msra.mxu0 %v107
  %520 = vmatmul.f32.gmra.mxu0 %v36
  %v521 = vpop.f32.mrf.mxu0
  %v522 = vadd.f32 %v502, %v521
  %523 = vdwg.mxu0
  %524 = vmatpush.msra.mxu0 %v169
  %525 = vmatpush.msra.mxu0 %v167
  %526 = vmatpush.msra.mxu0 %v165
  %527 = vmatpush.msra.mxu0 %v163
  %528 = vmatpush.msra.mxu0 %v161
  %529 = vmatpush.msra.mxu0 %v159
  %530 = vmatpush.msra.mxu0 %v157
  %531 = vmatpush.msra.mxu0 %v155
  %532 = vmatpush.msra.mxu0 %v153
  %533 = vmatpush.msra.mxu0 %v151
  %534 = vmatpush.msra.mxu0 %v149
  %535 = vmatpush.msra.mxu0 %v147
  %536 = vmatpush.msra.mxu0 %v145
  %537 = vmatpush.msra.mxu0 %v143
  %538 = vmatpush.msra.mxu0 %v141
  %539 = vmatpush.msra.mxu0 %v139
  %540 = vmatmul.f32.gmra.mxu0 %v37
  %v541 = vpop.f32.mrf.mxu0
  %v542 = vadd.f32 %v522, %v541
  %543 = vdwg.mxu0
  %544 = vmatpush.msra.mxu0 %v201
  %545 = vmatpush.msra.mxu0 %v199
  %546 = vmatpush.msra.mxu0 %v197
  %547 = vmatpush.msra.mxu0 %v195
  %548 = vmatpush.msra.mxu0 %v193
  %549 = vmatpush.msra.mxu0 %v191
  %550 = vmatpush.msra.mxu0 %v189
  %551 = vmatpush.msra.mxu0 %v187
  %552 = vmatpush.msra.mxu0 %v185
  %553 = vmatpush.msra.mxu0 %v183
  %554 = vmatpush.msra.mxu0 %v181
  %555 = vmatpush.msra.mxu0 %v179
  %556 = vmatpush.msra.mxu0 %v177
  %557 = vmatpush.msra.mxu0 %v175
  %558 = vmatpush.msra.mxu0 %v173
  %559 = vmatpush.msra.mxu0 %v171
  %560 = vmatmul.f32.gmra.mxu0 %v38
  %v561 = vpop.f32.mrf.mxu0
  %v562 = vadd.f32 %v542, %v561
  %563 = vdwg.mxu0
  %564 = vmatpush.msra.mxu0 %v233
  %565 = vmatpush.msra.mxu0 %v231
  %566 = vmatpush.msra.mxu0 %v229
  %567 = vmatpush.msra.mxu0 %v227
  %568 = vmatpush.msra.mxu0 %v225
  %569 = vmatpush.msra.mxu0 %v223
  %570 = vmatpush.msra.mxu0 %v221
  %571 = vmatpush.msra.mxu0 %v219
  %572 = vmatpush.msra.mxu0 %v217
  %573 = vmatpush.msra.mxu0 %v215
  %574 = vmatpush.msra.mxu0 %v213
  %575 = vmatpush.msra.mxu0 %v211
  %576 = vmatpush.msra.mxu0 %v209
  %577 = vmatpush.msra.mxu0 %v207
  %578 = vmatpush.msra.mxu0 %v205
  %579 = vmatpush.msra.mxu0 %v203
  %580 = vmatmul.f32.gmra.mxu0 %v39
  %v581 = vpop.f32.mrf.mxu0
  %v582 = vadd.f32 %v562, %v581
  %583 = vdwg.mxu0
  %584 = vmatpush.msra.mxu0 %v265
  %585 = vmatpush.msra.mxu0 %v263
  %586 = vmatpush.msra.mxu0 %v261
  %587 = vmatpush.msra.mxu0 %v259
  %588 = vmatpush.msra.mxu0 %v257
  %589 = vmatpush.msra.mxu0 %v255
  %590 = vmatpush.msra.mxu0 %v253
  %591 = vmatpush.msra.mxu0 %v251
  %592 = vmatpush.msra.mxu0 %v249
  %593 = vmatpush.msra.mxu0 %v247
  %594 = vmatpush.msra.mxu0 %v245
  %595 = vmatpush.msra.mxu0 %v243
  %596 = vmatpush.msra.mxu0 %v241
  %597 = vmatpush.msra.mxu0 %v239
  %598 = vmatpush.msra.mxu0 %v237
  %599 = vmatpush.msra.mxu0 %v235
  %600 = vmatmul.f32.gmra.mxu0 %v40
  %v601 = vpop.f32.mrf.mxu0
  %v602 = vadd.f32 %v582, %v601
  %603 = vdwg.mxu0
  %604 = vmatpush.msra.mxu0 %v297
  %605 = vmatpush.msra.mxu0 %v295
  %606 = vmatpush.msra.mxu0 %v293
  %607 = vmatpush.msra.mxu0 %v291
  %608 = vmatpush.msra.mxu0 %v289
  %609 = vmatpush.msra.mxu0 %v287
  %610 = vmatpush.msra.mxu0 %v285
  %611 = vmatpush.msra.mxu0 %v283
  %612 = vmatpush.msra.mxu0 %v281
  %613 = vmatpush.msra.mxu0 %v279
  %614 = vmatpush.msra.mxu0 %v277
  %615 = vmatpush.msra.mxu0 %v275
  %616 = vmatpush.msra.mxu0 %v273
  %617 = vmatpush.msra.mxu0 %v271
  %618 = vmatpush.msra.mxu0 %v269
  %619 = vmatpush.msra.mxu0 %v267
  %620 = vmatmul.f32.gmra.mxu0 %v41
  %v621 = vpop.f32.mrf.mxu0
  %v622 = vadd.f32 %v602, %v621
  %623 = vdwg.mxu0
  %v624 = vld [vmem:[%s3] sm:$0xff]
  %v625 = vld [vmem:[%s3 + $0x8] sm:$0xff]
  %v626 = vld [vmem:[%s3 + $0x10] sm:$0xff]
  %v627 = vld [vmem:[%s3 + $0x18] sm:$0xff]
  %v628 = vld [vmem:[%s3 + $0x20] sm:$0xff]
  %v629 = vld [vmem:[%s3 + $0x28] sm:$0xff]
  %v630 = vld [vmem:[%s3 + $0x30] sm:$0xff]
  %v631 = vld [vmem:[%s3 + $0x38] sm:$0xff]
  %v632 = vld [vmem:[%s3 + $0x40] sm:$0xff]
  %v633 = vld [vmem:[%s3 + $0x48] sm:$0xff]
  %v634 = vld [vmem:[%s3 + $0x50] sm:$0xff]
  %v635 = vld [vmem:[%s3 + $0x58] sm:$0xff]
  %v636 = vld [vmem:[%s3 + $0x60] sm:$0xff]
  %v637 = vld [vmem:[%s3 + $0x68] sm:$0xff]
  %v638 = vld [vmem:[%s3 + $0x70] sm:$0xff]
  %v639 = vld [vmem:[%s3 + $0x78] sm:$0xff]
  %v640 = vld [vmem:[%s3 + $0x80] sm:$0xff]
  %v641 = vld [vmem:[%s3 + $0x88] sm:$0xff]
  %v642 = vld [vmem:[%s3 + $0x90] sm:$0xff]
  %v643 = vld [vmem:[%s3 + $0x98] sm:$0xff]
  %v644 = vld [vmem:[%s3 + $0xa0] sm:$0xff]
  %v645 = vld [vmem:[%s3 + $0xa8] sm:$0xff]
  %v646 = vld [vmem:[%s3 + $0xb0] sm:$0xff]
  %v647 = vld [vmem:[%s3 + $0xb8] sm:$0xff]
  %v648 = vld [vmem:[%s3 + $0xc0] sm:$0xff]
  %v649 = vld [vmem:[%s3 + $0xc8] sm:$0xff]
  %v650 = vld [vmem:[%s3 + $0xd0] sm:$0xff]
  %v651 = vld [vmem:[%s3 + $0xd8] sm:$0xff]
  %v652 = vld [vmem:[%s3 + $0xe0] sm:$0xff]
  %v653 = vld [vmem:[%s3 + $0xe8] sm:$0xff]
  %v654 = vld [vmem:[%s3 + $0xf0] sm:$0xff]
  %v655 = vld [vmem:[%s3 + $0xf8] sm:$0xff]
  %v656 = vld [vmem:[%s4] sm:$0x1]
  %v658 = vperm.slane %v656, 0
  %660 = vmatpush.msra.mxu0 %v639
  %661 = vmatpush.msra.mxu0 %v638
  %662 = vmatpush.msra.mxu0 %v637
  %663 = vmatpush.msra.mxu0 %v636
  %664 = vmatpush.msra.mxu0 %v635
  %665 = vmatpush.msra.mxu0 %v634
  %666 = vmatpush.msra.mxu0 %v633
  %667 = vmatpush.msra.mxu0 %v632
  %668 = vmatpush.msra.mxu0 %v631
  %669 = vmatpush.msra.mxu0 %v630
  %670 = vmatpush.msra.mxu0 %v629
  %671 = vmatpush.msra.mxu0 %v628
  %672 = vmatpush.msra.mxu0 %v627
  %673 = vmatpush.msra.mxu0 %v626
  %674 = vmatpush.msra.mxu0 %v625
  %675 = vmatpush.msra.mxu0 %v624
  %676 = vmatmul.f32.gmra.mxu0 %v462
  %v677 = vpop.f32.mrf.mxu0
  %v678 = vadd.f32 %v658, %v677
  %679 = vdwg.mxu0
  %680 = vmatpush.msra.mxu0 %v655
  %681 = vmatpush.msra.mxu0 %v654
  %682 = vmatpush.msra.mxu0 %v653
  %683 = vmatpush.msra.mxu0 %v652
  %684 = vmatpush.msra.mxu0 %v651
  %685 = vmatpush.msra.mxu0 %v650
  %686 = vmatpush.msra.mxu0 %v649
  %687 = vmatpush.msra.mxu0 %v648
  %688 = vmatpush.msra.mxu0 %v647
  %689 = vmatpush.msra.mxu0 %v646
  %690 = vmatpush.msra.mxu0 %v645
  %691 = vmatpush.msra.mxu0 %v644
  %692 = vmatpush.msra.mxu0 %v643
  %693 = vmatpush.msra.mxu0 %v642
  %694 = vmatpush.msra.mxu0 %v641
  %695 = vmatpush.msra.mxu0 %v640
  %696 = vmatmul.f32.gmra.mxu0 %v622
  %v697 = vpop.f32.mrf.mxu0
  %v698 = vadd.f32 %v678, %v697
  %699 = vdwg.mxu0
  %v700 = vld [vmem:[%s5] sm:$0xff]
  %v701 = vld [vmem:[%s5 + $0x8] sm:$0xff]
  %v702 = vld [vmem:[%s5 + $0x10] sm:$0xff]
  %v703 = vld [vmem:[%s5 + $0x18] sm:$0xff]
  %v704 = vld [vmem:[%s5 + $0x20] sm:$0xff]
  %v705 = vld [vmem:[%s5 + $0x28] sm:$0xff]
  %v706 = vld [vmem:[%s5 + $0x30] sm:$0xff]
  %v707 = vld [vmem:[%s5 + $0x38] sm:$0xff]
  %v708 = vld [vmem:[%s5 + $0x40] sm:$0xff]
  %v709 = vld [vmem:[%s5 + $0x48] sm:$0xff]
  %v710 = vld [vmem:[%s5 + $0x50] sm:$0xff]
  %v711 = vld [vmem:[%s5 + $0x58] sm:$0xff]
  %v712 = vld [vmem:[%s5 + $0x60] sm:$0xff]
  %v713 = vld [vmem:[%s5 + $0x68] sm:$0xff]
  %v714 = vld [vmem:[%s5 + $0x70] sm:$0xff]
  %v715 = vld [vmem:[%s5 + $0x78] sm:$0xff]
  %v716 = vld [vmem:[%s6] sm:$0x1]
  %v718 = vperm.slane %v716, 0
  %720 = vmatpush.msra.mxu0 %v715
  %721 = vmatpush.msra.mxu0 %v714
  %722 = vmatpush.msra.mxu0 %v713
  %723 = vmatpush.msra.mxu0 %v712
  %724 = vmatpush.msra.mxu0 %v711
  %725 = vmatpush.msra.mxu0 %v710
  %726 = vmatpush.msra.mxu0 %v709
  %727 = vmatpush.msra.mxu0 %v708
  %728 = vmatpush.msra.mxu0 %v707
  %729 = vmatpush.msra.mxu0 %v706
  %730 = vmatpush.msra.mxu0 %v705
  %731 = vmatpush.msra.mxu0 %v704
  %732 = vmatpush.msra.mxu0 %v703
  %733 = vmatpush.msra.mxu0 %v702
  %734 = vmatpush.msra.mxu0 %v701
  %735 = vmatpush.msra.mxu0 %v700
  %736 = vmatmul.f32.gmra.mxu0 %v698
  %v737 = vpop.f32.mrf.mxu0
  %v738 = vadd.f32 %v718, %v737
  %739 = vdwg.mxu0
  %v740 = vld [vmem:[%s7] sm:$0xff]
  %v741 = vld [vmem:[%s7 + $0x8] sm:$0xff]
  %v742 = vld [vmem:[#allocation2] sm:$0x1]
  %v744 = vperm.slane %v742, 0
  %vm746 = vcmask 130048
  %v748 = vsel %vm746, %v738, 0
  %750 = vmatpush.msra.mxu0 0.0
  %751 = vmatpush.msra.mxu0 0.0
  %752 = vmatpush.msra.mxu0 0.0
  %753 = vmatpush.msra.mxu0 0.0
  %754 = vmatpush.msra.mxu0 0.0
  %755 = vmatpush.msra.mxu0 0.0
  %756 = vmatpush.msra.mxu0 0.0
  %757 = vmatpush.msra.mxu0 0.0
  %758 = vmatpush.msra.mxu0 0.0
  %759 = vmatpush.msra.mxu0 0.0
  %760 = vmatpush.msra.mxu0 0.0
  %761 = vmatpush.msra.mxu0 0.0
  %762 = vmatpush.msra.mxu0 0.0
  %763 = vmatpush.msra.mxu0 0.0
  %764 = vmatpush.msra.mxu0 %v741
  %765 = vmatpush.msra.mxu0 %v740
  %766 = vmatmul.f32.gmra.mxu0 %v748
  %v767 = vpop.f32.mrf.mxu0
  %v768 = vadd.f32 %v744, %v767
  %769 = vdwg.mxu0
  %v770 = vand.u32 2147483647, %v768
  %v771 = vadd.f32 %v770, 1.0
  %v772 = vrcp.pop %v771
  %v773 = vmul.f32 %v771, %v772
  %v774 = vsub.f32 1.0, %v773
  %v775 = vmul.f32 %v772, %v774
  %v776 = vadd.f32 %v772, %v775
  %vm777 = vweird.f32 %v771
  %vm778 = vweird.f32 %v772
  %vm779 = vmor %vm777, %vm778
  %v780 = vsel %vm779, %v772, %v776
  %v781 = vand.u32 2147483647, %v771
  %vm782 = vcmp.eq.f32.partialorder %v781, 8.507059e+37
  %v783 = vand.u32 %v771, 2147483648
  %v784 = vor.u32 1.1754944e-38, %v783
  %v785 = vsel %vm782, %v784, %v780
  %v786 = vmul.f32 %v768, %v785
  %vm787 = vcmask 7168
  %788 = vst.msk [vmem:[%s9] sm:$0xff] %vm787, %v786
  // Predicated region
  $region38: #{cnn_forward.7} parent=0 // pred_check
    _
  $region39: #{cnn_forward.7} parent=0 // pred_check_branch
    %790 = sbr.rel (0) target = $region41
  $region40: #{cnn_forward.7} parent=0 // pred_region
    _
  $region41: #{cnn_forward.7} parent=0 // pred_fallthru
    _
  // Predicated region
  $region42: #{cnn_forward.7} parent=0 // pred_check
    _
  $region43: #{cnn_forward.7} parent=0 // pred_check_branch
    %792 = sbr.rel (0) target = $region45
  $region44: #{cnn_forward.7} parent=0 // pred_region
    _
  $region45: #{cnn_forward.7} parent=0 // pred_fallthru
    _

</llo_original>
